<compile_context>
chip_gen: v5e
topology: v5e:2x2
jax: 0.10.0
libtpu: 0.0.40
codegen_flags: <defaults>
</compile_context>

<pallas_src>
import numpy as np
from functools import partial

import jax
import jax.numpy as jnp
from jax.experimental import pallas as pl
from jax.experimental.pallas import tpu as pltpu


def make_skconv_kernel(M):
    def kernel(*args):
        slab_refs = args[0:M]            # branch i: (K_i*K_i*C, HW) bf16 im2col slab
        wmat_refs = args[M:2 * M]        # branch i: (C, K_i*K_i*C)  bf16 block-diag dense weights
        scale_ref = args[2 * M]          # (M, C, 1) f32  folded BN scale
        bias_ref  = args[2 * M + 1]      # (M, C, 1) f32  folded conv-bias + BN shift
        wfc_ref   = args[2 * M + 2]      # (d, C)    f32
        bfc_ref   = args[2 * M + 3]      # (d, 1)    f32
        wfcs_ref  = args[2 * M + 4]      # (M, C, d) f32
        bfcs_ref  = args[2 * M + 5]      # (M, C, 1) f32
        out_ref   = args[2 * M + 6]      # (C, HW)   f32
        feas_ref  = args[2 * M + 7]      # scratch (M, C, HW) f32

        # --- M branch convs (one im2col matmul each) + folded BN + ReLU ---
        # GAP of the branch-sum accumulated on the fly: mean(sum_i fea_i) = sum_i mean(fea_i)
        fea_s = None
        for i in range(M):
            acc = jnp.dot(wmat_refs[i][...], slab_refs[i][...],
                          preferred_element_type=jnp.float32)          # (C, HW) f32
            fea = jnp.maximum(acc * scale_ref[i] + bias_ref[i], 0.0)    # BN(eval)+ReLU, f32
            feas_ref[i] = fea
            m_i = jnp.mean(fea, axis=1, keepdims=True)                  # (C, 1)
            fea_s = m_i if i == 0 else fea_s + m_i

        # --- z = Wfc @ s + bfc ; per-branch logits ; softmax over the M branches ---
        fea_z = jnp.dot(wfc_ref[...], fea_s,
                        preferred_element_type=jnp.float32) + bfc_ref[...]    # (d, 1)
        logits = [jnp.dot(wfcs_ref[i], fea_z,
                          preferred_element_type=jnp.float32) + bfcs_ref[i]
                  for i in range(M)]                                          # each (C, 1)
        mx = logits[0]
        for i in range(1, M):
            mx = jnp.maximum(mx, logits[i])
        exps = [jnp.exp(l - mx) for l in logits]
        den = exps[0]
        for i in range(1, M):
            den = den + exps[i]
        inv = 1.0 / den                                                       # (C, 1)

        # --- select: V = sum_i attn_i * fea_i   (feas scratch read exactly once) ---
        v = (exps[0] * inv) * feas_ref[0]
        for i in range(1, M):
            v = v + (exps[i] * inv) * feas_ref[i]
        out_ref[...] = v.astype(out_ref.dtype)

    return kernel


@partial(jax.jit, static_argnames=("M", "G"))
def skconv_pallas(x_nchw, params, *, M, G):
    N, C, H, W = x_nchw.shape
    HW = H * W
    Ks = [3 + 2 * i for i in range(M)]
    Cg = C // G
    d = params["fc_w"].shape[0]
    eps = 1e-5

    x = x_nchw.astype(jnp.float32)

    slabs, wmats, scales, biases = [], [], [], []
    for i in range(M):
        K = Ks[i]
        p = 1 + i                                   # = K // 2 (same-conv padding)

        # im2col (channel-major): slab[n, kk*C + ic, h*W + w] = x_pad[n, ic, h+kh, w+kw]
        xp = jnp.pad(x, ((0, 0), (0, 0), (p, p), (p, p)))
        patches = [xp[:, :, kh:kh + H, kw:kw + W]
                   for kh in range(K) for kw in range(K)]               # each (N, C, H, W)
        slab = jnp.stack(patches, axis=1).reshape(N, K * K * C, HW)
        slabs.append(slab.astype(jnp.bfloat16))

        # dense block-diagonal (over groups) weights, channel-major: wmat[oc, kk*C + ic]
        Wt = params["conv_w"][i]                                        # (C, C//G, K, K)
        wm = jnp.zeros((C, K * K, C), jnp.float32)
        for g in range(G):
            blk = Wt[g * Cg:(g + 1) * Cg]                               # (Cg, Cg, K, K)
            blk = jnp.transpose(blk, (0, 2, 3, 1)).reshape(Cg, K * K, Cg)
            wm = wm.at[g * Cg:(g + 1) * Cg, :, g * Cg:(g + 1) * Cg].set(blk)
        wmats.append(wm.reshape(C, K * K * C).astype(jnp.bfloat16))

        # fold conv bias + eval-mode BN into per-channel scale/bias (kept f32)
        s = params["bn_gamma"][i] / jnp.sqrt(params["bn_var"][i] + eps)
        scales.append(s)
        biases.append((params["conv_b"][i] - params["bn_mean"][i]) * s + params["bn_beta"][i])

    scale_arr = jnp.stack(scales).reshape(M, C, 1)
    bias_arr = jnp.stack(biases).reshape(M, C, 1)
    wfc = params["fc_w"]                                                # (d, C)
    bfc = params["fc_b"].reshape(d, 1)                                  # (d, 1)
    wfcs = jnp.stack(params["fcs_w"])                                   # (M, C, d)
    bfcs = jnp.stack(params["fcs_b"]).reshape(M, C, 1)                  # (M, C, 1)

    kernel = make_skconv_kernel(M)

    in_specs = (
        [pl.BlockSpec((None, slabs[i].shape[1], HW), lambda n: (n, 0, 0)) for i in range(M)]
        + [pl.BlockSpec(wmats[i].shape, lambda n: (0, 0)) for i in range(M)]
        + [
            pl.BlockSpec((M, C, 1), lambda n: (0, 0, 0)),
            pl.BlockSpec((M, C, 1), lambda n: (0, 0, 0)),
            pl.BlockSpec((d, C), lambda n: (0, 0)),
            pl.BlockSpec((d, 1), lambda n: (0, 0)),
            pl.BlockSpec((M, C, d), lambda n: (0, 0, 0)),
            pl.BlockSpec((M, C, 1), lambda n: (0, 0, 0)),
        ]
    )

    out = pl.pallas_call(
        kernel,
        out_shape=jax.ShapeDtypeStruct((N, C, HW), jnp.float32),
        grid_spec=pltpu.PrefetchScalarGridSpec(
            num_scalar_prefetch=0,
            grid=(N,),
            in_specs=in_specs,
            out_specs=pl.BlockSpec((None, C, HW), lambda n: (n, 0, 0)),
            scratch_shapes=[pltpu.VMEM((M, C, HW), jnp.float32)],
        ),
        compiler_params=pltpu.CompilerParams(dimension_semantics=("parallel",)),
    )(*slabs, *wmats, scale_arr, bias_arr, wfc, bfc, wfcs, bfcs)

    # channel-major output reshapes straight back to NCHW (no transpose needed)
    return out.reshape(N, C, H, W)


def skconv_ref(x_nchw, params, *, M, G):
    """Pure-JAX reference mirroring the PyTorch module (eval-mode BN)."""
    eps = 1e-5
    hp = jax.lax.Precision.HIGHEST
    feas = []
    for i in range(M):
        p = 1 + i
        y = jax.lax.conv_general_dilated(
            x_nchw, params["conv_w"][i], (1, 1), [(p, p), (p, p)],
            feature_group_count=G, dimension_numbers=("NCHW", "OIHW", "NCHW"),
            precision=hp)
        y = y + params["conv_b"][i][None, :, None, None]
        g = params["bn_gamma"][i][None, :, None, None]
        b = params["bn_beta"][i][None, :, None, None]
        mu = params["bn_mean"][i][None, :, None, None]
        var = params["bn_var"][i][None, :, None, None]
        y = g * (y - mu) / jnp.sqrt(var + eps) + b
        feas.append(jnp.maximum(y, 0.0))
    feas = jnp.stack(feas, axis=1)                                 # (N, M, C, H, W)
    fea_U = feas.sum(axis=1)
    fea_s = fea_U.mean(axis=-1).mean(axis=-1)                      # (N, C)
    fea_z = jnp.dot(fea_s, params["fc_w"].T, precision=hp) + params["fc_b"]
    vecs = jnp.stack(
        [jnp.dot(fea_z, params["fcs_w"][i].T, precision=hp) + params["fcs_b"][i]
         for i in range(M)], axis=1)                               # (N, M, C)
    attn = jax.nn.softmax(vecs, axis=1)
    return (feas * attn[:, :, :, None, None]).sum(axis=1)          # (N, C, H, W)


def init_params(key, features, M, G, r, L):
    d = max(int(features / r), L)
    keys = jax.random.split(key, 8 * M + 4)
    it = iter(range(len(keys)))
    p = {"conv_w": [], "conv_b": [], "bn_gamma": [], "bn_beta": [],
         "bn_mean": [], "bn_var": [], "fcs_w": [], "fcs_b": []}
    for i in range(M):
        K = 3 + 2 * i
        p["conv_w"].append(0.1 * jax.random.normal(
            keys[next(it)], (features, features // G, K, K), jnp.float32))
        p["conv_b"].append(0.1 * jax.random.normal(keys[next(it)], (features,), jnp.float32))
        p["bn_gamma"].append(1.0 + 0.1 * jax.random.normal(keys[next(it)], (features,), jnp.float32))
        p["bn_beta"].append(0.1 * jax.random.normal(keys[next(it)], (features,), jnp.float32))
        p["bn_mean"].append(0.05 * jax.random.normal(keys[next(it)], (features,), jnp.float32))
        p["bn_var"].append(0.9 + 0.2 * jax.random.uniform(keys[next(it)], (features,), jnp.float32))
        p["fcs_w"].append(0.1 * jax.random.normal(keys[next(it)], (features, d), jnp.float32))
        p["fcs_b"].append(0.1 * jax.random.normal(keys[next(it)], (features,), jnp.float32))
    p["fc_w"] = 0.1 * jax.random.normal(keys[next(it)], (d, features), jnp.float32)
    p["fc_b"] = 0.1 * jax.random.normal(keys[next(it)], (d,), jnp.float32)
    return p


if __name__ == "__main__":
    # SKConv(features=64, WH=16, M=2, G=4, r=2, L=32)  ->  d = max(64/2, 32) = 32
    N, features, WH, M, G, r, L = 2, 64, 16, 2, 4, 2, 32

    key = jax.random.PRNGKey(0)
    kx, kp = jax.random.split(key)
    x = jax.random.normal(kx, (N, features, WH, WH), jnp.float32)
    params = init_params(kp, features, M, G, r, L)

    out = skconv_pallas(x, params, M=M, G=G)
    out = jax.block_until_ready(out)

    ref = jax.block_until_ready(skconv_ref(x, params, M=M, G=G))
    assert out.shape == ref.shape == (N, features, WH, WH)
    np.testing.assert_allclose(np.asarray(out), np.asarray(ref), rtol=1e-2, atol=1e-2)
    print("KERNEL_OK")
</pallas_src>

<mosaic_0001>
module attributes {stable_mosaic.version = 11 : i64} {
  func.func @kernel(%arg0: i32, %arg1: memref<1x576x256xbf16, #tpu.memory_space<vmem>>, %arg2: memref<1x1600x256xbf16, #tpu.memory_space<vmem>>, %arg3: memref<64x576xbf16, #tpu.memory_space<vmem>>, %arg4: memref<64x1600xbf16, #tpu.memory_space<vmem>>, %arg5: memref<2x64x1xf32, #tpu.memory_space<vmem>>, %arg6: memref<2x64x1xf32, #tpu.memory_space<vmem>>, %arg7: memref<32x64xf32, #tpu.memory_space<vmem>>, %arg8: memref<32x1xf32, #tpu.memory_space<vmem>>, %arg9: memref<2x64x32xf32, #tpu.memory_space<vmem>>, %arg10: memref<2x64x1xf32, #tpu.memory_space<vmem>>, %arg11: memref<1x64x256xf32, #tpu.memory_space<vmem>>, %arg12: memref<2x64x256xf32, #tpu.memory_space<vmem>>) attributes {dimension_semantics = [#tpu.dimension_semantics<parallel>], iteration_bounds = array<i64: 2>, scalar_prefetch = 0 : i64, scratch_operands = 1 : i64, tpu.core_type = #tpu.core_type<tc>, window_params = [{transform_indices = @transform_0, window_bounds = array<i64: 1, 576, 256>}, {transform_indices = @transform_1, window_bounds = array<i64: 1, 1600, 256>}, {pipeline_mode = #tpu.pipeline_mode<synchronous>, transform_indices = @transform_2, window_bounds = array<i64: 64, 576>}, {pipeline_mode = #tpu.pipeline_mode<synchronous>, transform_indices = @transform_3, window_bounds = array<i64: 64, 1600>}, {pipeline_mode = #tpu.pipeline_mode<synchronous>, transform_indices = @transform_4, window_bounds = array<i64: 2, 64, 1>}, {pipeline_mode = #tpu.pipeline_mode<synchronous>, transform_indices = @transform_5, window_bounds = array<i64: 2, 64, 1>}, {pipeline_mode = #tpu.pipeline_mode<synchronous>, transform_indices = @transform_6, window_bounds = array<i64: 32, 64>}, {pipeline_mode = #tpu.pipeline_mode<synchronous>, transform_indices = @transform_7, window_bounds = array<i64: 32, 1>}, {pipeline_mode = #tpu.pipeline_mode<synchronous>, transform_indices = @transform_8, window_bounds = array<i64: 2, 64, 32>}, {pipeline_mode = #tpu.pipeline_mode<synchronous>, transform_indices = @transform_9, window_bounds = array<i64: 2, 64, 1>}, {transform_indices = @transform_10, window_bounds = array<i64: 1, 64, 256>}]} {
    %c0 = arith.constant 0 : index
    %c0_0 = arith.constant 0 : index
    %0 = vector.load %arg3[%c0, %c0_0] : memref<64x576xbf16, #tpu.memory_space<vmem>>, vector<64x576xbf16>
    %c0_1 = arith.constant 0 : index
    %c0_2 = arith.constant 0 : index
    %c0_3 = arith.constant 0 : index
    %1 = vector.load %arg1[%c0_1, %c0_2, %c0_3] : memref<1x576x256xbf16, #tpu.memory_space<vmem>>, vector<1x576x256xbf16>
    %2 = vector.shape_cast %1 : vector<1x576x256xbf16> to vector<576x256xbf16>
    %cst = arith.constant dense<0.000000e+00> : vector<64x256xf32>
    %3 = tpu.matmul %0, %2, %cst {dimension_numbers = #tpu.dot_dimension_numbers<[1], [0], [0], [1], [0, 0, 1, 1], [], []>} : vector<64x576xbf16>, vector<576x256xbf16>, vector<64x256xf32> -> vector<64x256xf32>
    %c0_4 = arith.constant 0 : index
    %c0_5 = arith.constant 0 : index
    %c0_6 = arith.constant 0 : index
    %4 = vector.load %arg5[%c0_4, %c0_5, %c0_6] : memref<2x64x1xf32, #tpu.memory_space<vmem>>, vector<1x64x1xf32>
    %5 = vector.shape_cast %4 : vector<1x64x1xf32> to vector<64x1xf32>
    %6 = vector.broadcast %5 : vector<64x1xf32> to vector<64x256xf32>
    %7 = arith.mulf %3, %6 : vector<64x256xf32>
    %c0_7 = arith.constant 0 : index
    %c0_8 = arith.constant 0 : index
    %c0_9 = arith.constant 0 : index
    %8 = vector.load %arg6[%c0_7, %c0_8, %c0_9] : memref<2x64x1xf32, #tpu.memory_space<vmem>>, vector<1x64x1xf32>
    %9 = vector.shape_cast %8 : vector<1x64x1xf32> to vector<64x1xf32>
    %10 = vector.broadcast %9 : vector<64x1xf32> to vector<64x256xf32>
    %11 = arith.addf %7, %10 : vector<64x256xf32>
    %cst_10 = arith.constant 0.000000e+00 : f32
    %12 = vector.broadcast %cst_10 : f32 to vector<64x256xf32>
    %13 = arith.maximumf %11, %12 : vector<64x256xf32>
    %c0_11 = arith.constant 0 : index
    %c0_12 = arith.constant 0 : index
    %c0_13 = arith.constant 0 : index
    %14 = vector.load %arg12[%c0_11, %c0_12, %c0_13] : memref<2x64x256xf32, #tpu.memory_space<vmem>>, vector<1x64x256xf32>
    %15 = vector.shape_cast %14 : vector<1x64x256xf32> to vector<64x256xf32>
    %16 = vector.shape_cast %13 : vector<64x256xf32> to vector<1x64x256xf32>
    tpu.vector_store %arg12[%c0_11, %c0_12, %c0_13], %16 {strides = array<i32>} : memref<2x64x256xf32, #tpu.memory_space<vmem>>, vector<1x64x256xf32>,
    %cst_14 = arith.constant dense<0.000000e+00> : vector<64xf32>
    %17 = vector.multi_reduction <add>, %13, %cst_14 [1] : vector<64x256xf32> to vector<64xf32>
    %18 = vector.shape_cast %17 : vector<64xf32> to vector<64x1xf32>
    %cst_15 = arith.constant 2.560000e+02 : f32
    %19 = vector.broadcast %cst_15 : f32 to vector<64x1xf32>
    %20 = arith.divf %18, %19 : vector<64x1xf32>
    %c0_16 = arith.constant 0 : index
    %c0_17 = arith.constant 0 : index
    %21 = vector.load %arg4[%c0_16, %c0_17] : memref<64x1600xbf16, #tpu.memory_space<vmem>>, vector<64x1600xbf16>
    %c0_18 = arith.constant 0 : index
    %c0_19 = arith.constant 0 : index
    %c0_20 = arith.constant 0 : index
    %22 = vector.load %arg2[%c0_18, %c0_19, %c0_20] : memref<1x1600x256xbf16, #tpu.memory_space<vmem>>, vector<1x1600x256xbf16>
    %23 = vector.shape_cast %22 : vector<1x1600x256xbf16> to vector<1600x256xbf16>
    %cst_21 = arith.constant dense<0.000000e+00> : vector<64x256xf32>
    %24 = tpu.matmul %21, %23, %cst_21 {dimension_numbers = #tpu.dot_dimension_numbers<[1], [0], [0], [1], [0, 0, 1, 1], [], []>} : vector<64x1600xbf16>, vector<1600x256xbf16>, vector<64x256xf32> -> vector<64x256xf32>
    %c1 = arith.constant 1 : index
    %c0_22 = arith.constant 0 : index
    %c0_23 = arith.constant 0 : index
    %25 = vector.load %arg5[%c1, %c0_22, %c0_23] : memref<2x64x1xf32, #tpu.memory_space<vmem>>, vector<1x64x1xf32>
    %26 = vector.shape_cast %25 : vector<1x64x1xf32> to vector<64x1xf32>
    %27 = vector.broadcast %26 : vector<64x1xf32> to vector<64x256xf32>
    %28 = arith.mulf %24, %27 : vector<64x256xf32>
    %c1_24 = arith.constant 1 : index
    %c0_25 = arith.constant 0 : index
    %c0_26 = arith.constant 0 : index
    %29 = vector.load %arg6[%c1_24, %c0_25, %c0_26] : memref<2x64x1xf32, #tpu.memory_space<vmem>>, vector<1x64x1xf32>
    %30 = vector.shape_cast %29 : vector<1x64x1xf32> to vector<64x1xf32>
    %31 = vector.broadcast %30 : vector<64x1xf32> to vector<64x256xf32>
    %32 = arith.addf %28, %31 : vector<64x256xf32>
    %cst_27 = arith.constant 0.000000e+00 : f32
    %33 = vector.broadcast %cst_27 : f32 to vector<64x256xf32>
    %34 = arith.maximumf %32, %33 : vector<64x256xf32>
    %c1_28 = arith.constant 1 : index
    %c0_29 = arith.constant 0 : index
    %c0_30 = arith.constant 0 : index
    %35 = vector.load %arg12[%c1_28, %c0_29, %c0_30] : memref<2x64x256xf32, #tpu.memory_space<vmem>>, vector<1x64x256xf32>
    %36 = vector.shape_cast %35 : vector<1x64x256xf32> to vector<64x256xf32>
    %37 = vector.shape_cast %34 : vector<64x256xf32> to vector<1x64x256xf32>
    tpu.vector_store %arg12[%c1_28, %c0_29, %c0_30], %37 {strides = array<i32>} : memref<2x64x256xf32, #tpu.memory_space<vmem>>, vector<1x64x256xf32>,
    %cst_31 = arith.constant dense<0.000000e+00> : vector<64xf32>
    %38 = vector.multi_reduction <add>, %34, %cst_31 [1] : vector<64x256xf32> to vector<64xf32>
    %39 = vector.shape_cast %38 : vector<64xf32> to vector<64x1xf32>
    %cst_32 = arith.constant 2.560000e+02 : f32
    %40 = vector.broadcast %cst_32 : f32 to vector<64x1xf32>
    %41 = arith.divf %39, %40 : vector<64x1xf32>
    %42 = arith.addf %20, %41 : vector<64x1xf32>
    %c0_33 = arith.constant 0 : index
    %c0_34 = arith.constant 0 : index
    %43 = vector.load %arg7[%c0_33, %c0_34] : memref<32x64xf32, #tpu.memory_space<vmem>>, vector<32x64xf32>
    %cst_35 = arith.constant dense<0.000000e+00> : vector<32x1xf32>
    %44 = tpu.matmul %43, %42, %cst_35 {dimension_numbers = #tpu.dot_dimension_numbers<[1], [0], [0], [1], [0, 0, 1, 1], [], []>} : vector<32x64xf32>, vector<64x1xf32>, vector<32x1xf32> -> vector<32x1xf32>
    %c0_36 = arith.constant 0 : index
    %c0_37 = arith.constant 0 : index
    %45 = vector.load %arg8[%c0_36, %c0_37] : memref<32x1xf32, #tpu.memory_space<vmem>>, vector<32x1xf32>
    %46 = arith.addf %44, %45 : vector<32x1xf32>
    %c0_38 = arith.constant 0 : index
    %c0_39 = arith.constant 0 : index
    %c0_40 = arith.constant 0 : index
    %47 = vector.load %arg9[%c0_38, %c0_39, %c0_40] : memref<2x64x32xf32, #tpu.memory_space<vmem>>, vector<1x64x32xf32>
    %48 = vector.shape_cast %47 : vector<1x64x32xf32> to vector<64x32xf32>
    %cst_41 = arith.constant dense<0.000000e+00> : vector<64x1xf32>
    %49 = tpu.matmul %48, %46, %cst_41 {dimension_numbers = #tpu.dot_dimension_numbers<[1], [0], [0], [1], [0, 0, 1, 1], [], []>} : vector<64x32xf32>, vector<32x1xf32>, vector<64x1xf32> -> vector<64x1xf32>
    %c0_42 = arith.constant 0 : index
    %c0_43 = arith.constant 0 : index
    %c0_44 = arith.constant 0 : index
    %50 = vector.load %arg10[%c0_42, %c0_43, %c0_44] : memref<2x64x1xf32, #tpu.memory_space<vmem>>, vector<1x64x1xf32>
    %51 = vector.shape_cast %50 : vector<1x64x1xf32> to vector<64x1xf32>
    %52 = arith.addf %49, %51 : vector<64x1xf32>
    %c1_45 = arith.constant 1 : index
    %c0_46 = arith.constant 0 : index
    %c0_47 = arith.constant 0 : index
    %53 = vector.load %arg9[%c1_45, %c0_46, %c0_47] : memref<2x64x32xf32, #tpu.memory_space<vmem>>, vector<1x64x32xf32>
    %54 = vector.shape_cast %53 : vector<1x64x32xf32> to vector<64x32xf32>
    %cst_48 = arith.constant dense<0.000000e+00> : vector<64x1xf32>
    %55 = tpu.matmul %54, %46, %cst_48 {dimension_numbers = #tpu.dot_dimension_numbers<[1], [0], [0], [1], [0, 0, 1, 1], [], []>} : vector<64x32xf32>, vector<32x1xf32>, vector<64x1xf32> -> vector<64x1xf32>
    %c1_49 = arith.constant 1 : index
    %c0_50 = arith.constant 0 : index
    %c0_51 = arith.constant 0 : index
    %56 = vector.load %arg10[%c1_49, %c0_50, %c0_51] : memref<2x64x1xf32, #tpu.memory_space<vmem>>, vector<1x64x1xf32>
    %57 = vector.shape_cast %56 : vector<1x64x1xf32> to vector<64x1xf32>
    %58 = arith.addf %55, %57 : vector<64x1xf32>
    %59 = arith.maximumf %52, %58 : vector<64x1xf32>
    %60 = arith.subf %52, %59 : vector<64x1xf32>
    %61 = math.exp %60 : vector<64x1xf32>
    %62 = arith.subf %58, %59 : vector<64x1xf32>
    %63 = math.exp %62 : vector<64x1xf32>
    %64 = arith.addf %61, %63 : vector<64x1xf32>
    %cst_52 = arith.constant 1.000000e+00 : f32
    %65 = vector.broadcast %cst_52 : f32 to vector<64x1xf32>
    %66 = arith.divf %65, %64 : vector<64x1xf32>
    %67 = arith.mulf %61, %66 : vector<64x1xf32>
    %c0_53 = arith.constant 0 : index
    %c0_54 = arith.constant 0 : index
    %c0_55 = arith.constant 0 : index
    %68 = vector.load %arg12[%c0_53, %c0_54, %c0_55] : memref<2x64x256xf32, #tpu.memory_space<vmem>>, vector<1x64x256xf32>
    %69 = vector.shape_cast %68 : vector<1x64x256xf32> to vector<64x256xf32>
    %70 = vector.broadcast %67 : vector<64x1xf32> to vector<64x256xf32>
    %71 = arith.mulf %70, %69 : vector<64x256xf32>
    %72 = arith.mulf %63, %66 : vector<64x1xf32>
    %c1_56 = arith.constant 1 : index
    %c0_57 = arith.constant 0 : index
    %c0_58 = arith.constant 0 : index
    %73 = vector.load %arg12[%c1_56, %c0_57, %c0_58] : memref<2x64x256xf32, #tpu.memory_space<vmem>>, vector<1x64x256xf32>
    %74 = vector.shape_cast %73 : vector<1x64x256xf32> to vector<64x256xf32>
    %75 = vector.broadcast %72 : vector<64x1xf32> to vector<64x256xf32>
    %76 = arith.mulf %75, %74 : vector<64x256xf32>
    %77 = arith.addf %71, %76 : vector<64x256xf32>
    %c0_59 = arith.constant 0 : index
    %c0_60 = arith.constant 0 : index
    %c0_61 = arith.constant 0 : index
    %78 = vector.load %arg11[%c0_59, %c0_60, %c0_61] : memref<1x64x256xf32, #tpu.memory_space<vmem>>, vector<1x64x256xf32>
    %79 = vector.shape_cast %78 : vector<1x64x256xf32> to vector<64x256xf32>
    %80 = vector.shape_cast %77 : vector<64x256xf32> to vector<1x64x256xf32>
    tpu.vector_store %arg11[%c0_59, %c0_60, %c0_61], %80 {strides = array<i32>} : memref<1x64x256xf32, #tpu.memory_space<vmem>>, vector<1x64x256xf32>,
    return
  }
  func.func @transform_0(%arg0: i32) -> (i32, i32, i32) {
    %c0_i32 = arith.constant 0 : i32
    %c0_i32_0 = arith.constant 0 : i32
    %c0_i32_1 = arith.constant 0 : i32
    return %arg0, %c0_i32, %c0_i32_0 : i32, i32, i32
  }
  func.func @transform_1(%arg0: i32) -> (i32, i32, i32) {
    %c0_i32 = arith.constant 0 : i32
    %c0_i32_0 = arith.constant 0 : i32
    %c0_i32_1 = arith.constant 0 : i32
    return %arg0, %c0_i32, %c0_i32_0 : i32, i32, i32
  }
  func.func @transform_2(%arg0: i32) -> (i32, i32) {
    %c0_i32 = arith.constant 0 : i32
    %c0_i32_0 = arith.constant 0 : i32
    %c0_i32_1 = arith.constant 0 : i32
    return %c0_i32, %c0_i32_0 : i32, i32
  }
  func.func @transform_3(%arg0: i32) -> (i32, i32) {
    %c0_i32 = arith.constant 0 : i32
    %c0_i32_0 = arith.constant 0 : i32
    %c0_i32_1 = arith.constant 0 : i32
    return %c0_i32, %c0_i32_0 : i32, i32
  }
  func.func @transform_4(%arg0: i32) -> (i32, i32, i32) {
    %c0_i32 = arith.constant 0 : i32
    %c0_i32_0 = arith.constant 0 : i32
    %c0_i32_1 = arith.constant 0 : i32
    %c0_i32_2 = arith.constant 0 : i32
    return %c0_i32, %c0_i32_0, %c0_i32_1 : i32, i32, i32
  }
  func.func @transform_5(%arg0: i32) -> (i32, i32, i32) {
    %c0_i32 = arith.constant 0 : i32
    %c0_i32_0 = arith.constant 0 : i32
    %c0_i32_1 = arith.constant 0 : i32
    %c0_i32_2 = arith.constant 0 : i32
    return %c0_i32, %c0_i32_0, %c0_i32_1 : i32, i32, i32
  }
  func.func @transform_6(%arg0: i32) -> (i32, i32) {
    %c0_i32 = arith.constant 0 : i32
    %c0_i32_0 = arith.constant 0 : i32
    %c0_i32_1 = arith.constant 0 : i32
    return %c0_i32, %c0_i32_0 : i32, i32
  }
  func.func @transform_7(%arg0: i32) -> (i32, i32) {
    %c0_i32 = arith.constant 0 : i32
    %c0_i32_0 = arith.constant 0 : i32
    %c0_i32_1 = arith.constant 0 : i32
    return %c0_i32, %c0_i32_0 : i32, i32
  }
  func.func @transform_8(%arg0: i32) -> (i32, i32, i32) {
    %c0_i32 = arith.constant 0 : i32
    %c0_i32_0 = arith.constant 0 : i32
    %c0_i32_1 = arith.constant 0 : i32
    %c0_i32_2 = arith.constant 0 : i32
    return %c0_i32, %c0_i32_0, %c0_i32_1 : i32, i32, i32
  }
  func.func @transform_9(%arg0: i32) -> (i32, i32, i32) {
    %c0_i32 = arith.constant 0 : i32
    %c0_i32_0 = arith.constant 0 : i32
    %c0_i32_1 = arith.constant 0 : i32
    %c0_i32_2 = arith.constant 0 : i32
    return %c0_i32, %c0_i32_0, %c0_i32_1 : i32, i32, i32
  }
  func.func @transform_10(%arg0: i32) -> (i32, i32, i32) {
    %c0_i32 = arith.constant 0 : i32
    %c0_i32_0 = arith.constant 0 : i32
    %c0_i32_1 = arith.constant 0 : i32
    return %arg0, %c0_i32, %c0_i32_0 : i32, i32, i32
  }
}

</mosaic_0001>

<llo_original>
// kernel: skconv_pallas.1
$region0: #{skconv_pallas.1}
  #allocation0 [shape = 'u32[]', space=smem, size = 0x4, offset = 0x4, fixed_abs, tag = 'smem constant byte address 0x4 - core index']
  #allocation1 [shape = 'u32[72,128]{1,0:T(1,128)}', space=vmem, size = 0x9000, scoped, tag = 'internal scratch']
  #allocation2 [shape = 'f32[2,64,256]{2,1,0:T(8,128)}', space=vmem, size = 0x20000, scoped, tag = 'scratch operand']
  %s0 = inlined_call_operand.vmem [shape: bf16[2,576,256], index: 0, kind: input, shape index: {}]
  %s1 = inlined_call_operand.vmem [shape: bf16[2,1600,256], index: 1, kind: input, shape index: {}]
  %s2 = inlined_call_operand.vmem [shape: bf16[64,576], index: 2, kind: input, shape index: {}]
  %s3 = inlined_call_operand.vmem [shape: bf16[64,1600], index: 3, kind: input, shape index: {}]
  %s4 = inlined_call_operand.vmem [shape: f32[2,64,1], index: 4, kind: input, shape index: {}]
  %s5 = inlined_call_operand.vmem [shape: f32[2,64,1], index: 5, kind: input, shape index: {}]
  %s6 = inlined_call_operand.vmem [shape: f32[32,64], index: 6, kind: input, shape index: {}]
  %s7 = inlined_call_operand.vmem [shape: f32[32,1], index: 7, kind: input, shape index: {}]
  %s8 = inlined_call_operand.vmem [shape: f32[2,64,32], index: 8, kind: input, shape index: {}]
  %s9 = inlined_call_operand.vmem [shape: f32[2,64,1], index: 9, kind: input, shape index: {}]
  %s10 = inlined_call_operand.vmem [shape: f32[2,64,256], index: 10, kind: output, shape index: {}]
  %s11 = sld [smem:[#allocation0]]
  $region73: #{skconv_pallas.1} parent=0
    _
  %s13 = ssub.s32 1, %s11
  %s14 = scalar_select 0, %s13, %s11
  loop: start=0, step=1, limit=4
  $region2: #{skconv_pallas.1} parent=0 // loop_pre_header
    _
  $region3: #{skconv_pallas.1} parent=0 // loop_header
    %s16 = sphi 0, %s20
    %p17 = scmp.ge.s32.totalorder %s16, 4
    %s26 = sphi 0, %s28
    %s29 = sphi 0, %s26
    %s30 = sphi 0, %s29
    %s46 = sphi 0, %s30
    %s52 = sphi 0, %s54
    %s55 = sphi 0, %s52
    %s56 = sphi 0, %s55
    %s72 = sphi 0, %s56
    %s76 = sphi 0, %s76
    %s78 = sphi 0, %s76
    %s79 = sphi 0, %s78
    %s93 = sphi 0, %s79
    %s97 = sphi 0, %s97
    %s99 = sphi 0, %s97
    %s100 = sphi 0, %s99
    %s114 = sphi 0, %s100
    %s118 = sphi 0, %s118
    %s120 = sphi 0, %s118
    %s121 = sphi 0, %s120
    %s135 = sphi 0, %s121
    %s139 = sphi 0, %s139
    %s141 = sphi 0, %s139
    %s142 = sphi 0, %s141
    %s156 = sphi 0, %s142
    %s160 = sphi 0, %s160
    %s162 = sphi 0, %s160
    %s163 = sphi 0, %s162
    %s177 = sphi 0, %s163
    %s181 = sphi 0, %s181
    %s183 = sphi 0, %s181
    %s184 = sphi 0, %s183
    %s198 = sphi 0, %s184
    %s202 = sphi 0, %s202
    %s204 = sphi 0, %s202
    %s205 = sphi 0, %s204
    %s219 = sphi 0, %s205
    %s223 = sphi 0, %s223
    %s225 = sphi 0, %s223
    %s226 = sphi 0, %s225
    %s240 = sphi 0, %s226
    %s246 = sphi 0, %s248
    %s249 = sphi 0, %s246
    %s250 = sphi 0, %s249
    %s266 = sphi 0, %s250
  $region4: #{skconv_pallas.1} parent=0 // loop_header_branch
    %19 = sbr.rel (%p17) target = $region8
  $region5: #{skconv_pallas.1} parent=0 // loop_body
    %s21 = ssub.s32 %s16, 1
    %s22 = ssub.s32 %s16, 2
    %s23 = sadd.s32 %s16, 1
    %s24 = ssub.s32 %s16, %s23
    %p25 = scmp.eq.s32.totalorder %s24, 0
    %s27 = sadd.s32 %s26, 1
    %s28 = scalar_select %p25, %s26, %s27
    %p31 = pneg %p25
    %p32 = scmp.eq.s32.totalorder %s16, 1
    %p33 = por %p31, %p32
    %p34 = scmp.ne.s32.totalorder %s26, %s29
    %p35 = scmp.eq.s32.totalorder %s16, 0
    %p36 = por %p34, %p35
    %p37 = scmp.ne.s32.totalorder %s26, %s29
    %p38 = scmp.eq.s32.totalorder %s21, 1
    %p39 = por %p37, %p38
    %p40 = scmp.ne.s32.totalorder %s29, %s30
    %p41 = scmp.eq.s32.totalorder %s21, 0
    %p42 = por %p40, %p41
    %p43 = scmp.ne.s32.totalorder %s29, %s30
    %p44 = scmp.eq.s32.totalorder %s22, 1
    %p45 = por %p43, %p44
    %p47 = scmp.ne.s32.totalorder %s30, %s46
    %p48 = scmp.eq.s32.totalorder %s22, 0
    %p49 = por %p47, %p48
    %s50 = ssub.s32 %s16, %s23
    %p51 = scmp.eq.s32.totalorder %s50, 0
    %s53 = sadd.s32 %s52, 1
    %s54 = scalar_select %p51, %s52, %s53
    %p57 = pneg %p51
    %p58 = scmp.eq.s32.totalorder %s16, 1
    %p59 = por %p57, %p58
    %p60 = scmp.ne.s32.totalorder %s52, %s55
    %p61 = scmp.eq.s32.totalorder %s16, 0
    %p62 = por %p60, %p61
    %p63 = scmp.ne.s32.totalorder %s52, %s55
    %p64 = scmp.eq.s32.totalorder %s21, 1
    %p65 = por %p63, %p64
    %p66 = scmp.ne.s32.totalorder %s55, %s56
    %p67 = scmp.eq.s32.totalorder %s21, 0
    %p68 = por %p66, %p67
    %p69 = scmp.ne.s32.totalorder %s55, %s56
    %p70 = scmp.eq.s32.totalorder %s22, 1
    %p71 = por %p69, %p70
    %p73 = scmp.ne.s32.totalorder %s56, %s72
    %p74 = scmp.eq.s32.totalorder %s22, 0
    %p75 = por %p73, %p74
    %s77 = sadd.s32 %s76, 1
    %p80 = scmp.eq.s32.totalorder %s16, 1
    %p81 = scmp.ne.s32.totalorder %s76, %s78
    %p82 = scmp.eq.s32.totalorder %s16, 0
    %p83 = por %p81, %p82
    %p84 = scmp.ne.s32.totalorder %s76, %s78
    %p85 = scmp.eq.s32.totalorder %s21, 1
    %p86 = por %p84, %p85
    %p87 = scmp.ne.s32.totalorder %s78, %s79
    %p88 = scmp.eq.s32.totalorder %s21, 0
    %p89 = por %p87, %p88
    %p90 = scmp.ne.s32.totalorder %s78, %s79
    %p91 = scmp.eq.s32.totalorder %s22, 1
    %p92 = por %p90, %p91
    %p94 = scmp.ne.s32.totalorder %s79, %s93
    %p95 = scmp.eq.s32.totalorder %s22, 0
    %p96 = por %p94, %p95
    %s98 = sadd.s32 %s97, 1
    %p101 = scmp.eq.s32.totalorder %s16, 1
    %p102 = scmp.ne.s32.totalorder %s97, %s99
    %p103 = scmp.eq.s32.totalorder %s16, 0
    %p104 = por %p102, %p103
    %p105 = scmp.ne.s32.totalorder %s97, %s99
    %p106 = scmp.eq.s32.totalorder %s21, 1
    %p107 = por %p105, %p106
    %p108 = scmp.ne.s32.totalorder %s99, %s100
    %p109 = scmp.eq.s32.totalorder %s21, 0
    %p110 = por %p108, %p109
    %p111 = scmp.ne.s32.totalorder %s99, %s100
    %p112 = scmp.eq.s32.totalorder %s22, 1
    %p113 = por %p111, %p112
    %p115 = scmp.ne.s32.totalorder %s100, %s114
    %p116 = scmp.eq.s32.totalorder %s22, 0
    %p117 = por %p115, %p116
    %s119 = sadd.s32 %s118, 1
    %p122 = scmp.eq.s32.totalorder %s16, 1
    %p123 = scmp.ne.s32.totalorder %s118, %s120
    %p124 = scmp.eq.s32.totalorder %s16, 0
    %p125 = por %p123, %p124
    %p126 = scmp.ne.s32.totalorder %s118, %s120
    %p127 = scmp.eq.s32.totalorder %s21, 1
    %p128 = por %p126, %p127
    %p129 = scmp.ne.s32.totalorder %s120, %s121
    %p130 = scmp.eq.s32.totalorder %s21, 0
    %p131 = por %p129, %p130
    %p132 = scmp.ne.s32.totalorder %s120, %s121
    %p133 = scmp.eq.s32.totalorder %s22, 1
    %p134 = por %p132, %p133
    %p136 = scmp.ne.s32.totalorder %s121, %s135
    %p137 = scmp.eq.s32.totalorder %s22, 0
    %p138 = por %p136, %p137
    %s140 = sadd.s32 %s139, 1
    %p143 = scmp.eq.s32.totalorder %s16, 1
    %p144 = scmp.ne.s32.totalorder %s139, %s141
    %p145 = scmp.eq.s32.totalorder %s16, 0
    %p146 = por %p144, %p145
    %p147 = scmp.ne.s32.totalorder %s139, %s141
    %p148 = scmp.eq.s32.totalorder %s21, 1
    %p149 = por %p147, %p148
    %p150 = scmp.ne.s32.totalorder %s141, %s142
    %p151 = scmp.eq.s32.totalorder %s21, 0
    %p152 = por %p150, %p151
    %p153 = scmp.ne.s32.totalorder %s141, %s142
    %p154 = scmp.eq.s32.totalorder %s22, 1
    %p155 = por %p153, %p154
    %p157 = scmp.ne.s32.totalorder %s142, %s156
    %p158 = scmp.eq.s32.totalorder %s22, 0
    %p159 = por %p157, %p158
    %s161 = sadd.s32 %s160, 1
    %p164 = scmp.eq.s32.totalorder %s16, 1
    %p165 = scmp.ne.s32.totalorder %s160, %s162
    %p166 = scmp.eq.s32.totalorder %s16, 0
    %p167 = por %p165, %p166
    %p168 = scmp.ne.s32.totalorder %s160, %s162
    %p169 = scmp.eq.s32.totalorder %s21, 1
    %p170 = por %p168, %p169
    %p171 = scmp.ne.s32.totalorder %s162, %s163
    %p172 = scmp.eq.s32.totalorder %s21, 0
    %p173 = por %p171, %p172
    %p174 = scmp.ne.s32.totalorder %s162, %s163
    %p175 = scmp.eq.s32.totalorder %s22, 1
    %p176 = por %p174, %p175
    %p178 = scmp.ne.s32.totalorder %s163, %s177
    %p179 = scmp.eq.s32.totalorder %s22, 0
    %p180 = por %p178, %p179
    %s182 = sadd.s32 %s181, 1
    %p185 = scmp.eq.s32.totalorder %s16, 1
    %p186 = scmp.ne.s32.totalorder %s181, %s183
    %p187 = scmp.eq.s32.totalorder %s16, 0
    %p188 = por %p186, %p187
    %p189 = scmp.ne.s32.totalorder %s181, %s183
    %p190 = scmp.eq.s32.totalorder %s21, 1
    %p191 = por %p189, %p190
    %p192 = scmp.ne.s32.totalorder %s183, %s184
    %p193 = scmp.eq.s32.totalorder %s21, 0
    %p194 = por %p192, %p193
    %p195 = scmp.ne.s32.totalorder %s183, %s184
    %p196 = scmp.eq.s32.totalorder %s22, 1
    %p197 = por %p195, %p196
    %p199 = scmp.ne.s32.totalorder %s184, %s198
    %p200 = scmp.eq.s32.totalorder %s22, 0
    %p201 = por %p199, %p200
    %s203 = sadd.s32 %s202, 1
    %p206 = scmp.eq.s32.totalorder %s16, 1
    %p207 = scmp.ne.s32.totalorder %s202, %s204
    %p208 = scmp.eq.s32.totalorder %s16, 0
    %p209 = por %p207, %p208
    %p210 = scmp.ne.s32.totalorder %s202, %s204
    %p211 = scmp.eq.s32.totalorder %s21, 1
    %p212 = por %p210, %p211
    %p213 = scmp.ne.s32.totalorder %s204, %s205
    %p214 = scmp.eq.s32.totalorder %s21, 0
    %p215 = por %p213, %p214
    %p216 = scmp.ne.s32.totalorder %s204, %s205
    %p217 = scmp.eq.s32.totalorder %s22, 1
    %p218 = por %p216, %p217
    %p220 = scmp.ne.s32.totalorder %s205, %s219
    %p221 = scmp.eq.s32.totalorder %s22, 0
    %p222 = por %p220, %p221
    %s224 = sadd.s32 %s223, 1
    %p227 = scmp.eq.s32.totalorder %s16, 1
    %p228 = scmp.ne.s32.totalorder %s223, %s225
    %p229 = scmp.eq.s32.totalorder %s16, 0
    %p230 = por %p228, %p229
    %p231 = scmp.ne.s32.totalorder %s223, %s225
    %p232 = scmp.eq.s32.totalorder %s21, 1
    %p233 = por %p231, %p232
    %p234 = scmp.ne.s32.totalorder %s225, %s226
    %p235 = scmp.eq.s32.totalorder %s21, 0
    %p236 = por %p234, %p235
    %p237 = scmp.ne.s32.totalorder %s225, %s226
    %p238 = scmp.eq.s32.totalorder %s22, 1
    %p239 = por %p237, %p238
    %p241 = scmp.ne.s32.totalorder %s226, %s240
    %p242 = scmp.eq.s32.totalorder %s22, 0
    %p243 = por %p241, %p242
    %s244 = ssub.s32 %s16, %s23
    %p245 = scmp.eq.s32.totalorder %s244, 0
    %s247 = sadd.s32 %s246, 1
    %s248 = scalar_select %p245, %s246, %s247
    %p251 = pneg %p245
    %p252 = scmp.eq.s32.totalorder %s16, 1
    %p253 = por %p251, %p252
    %p254 = scmp.ne.s32.totalorder %s246, %s249
    %p255 = scmp.eq.s32.totalorder %s16, 0
    %p256 = por %p254, %p255
    %p257 = scmp.ne.s32.totalorder %s246, %s249
    %p258 = scmp.eq.s32.totalorder %s21, 1
    %p259 = por %p257, %p258
    %p260 = scmp.ne.s32.totalorder %s249, %s250
    %p261 = scmp.eq.s32.totalorder %s21, 0
    %p262 = por %p260, %p261
    %p263 = scmp.ne.s32.totalorder %s249, %s250
    %p264 = scmp.eq.s32.totalorder %s22, 1
    %p265 = por %p263, %p264
    %p267 = scmp.ne.s32.totalorder %s250, %s266
    %p268 = scmp.eq.s32.totalorder %s22, 0
    %p269 = por %p267, %p268
    %p270 = scmp.le.s32.totalorder 1, %s16
    %p271 = scmp.lt.s32.totalorder %s16, 3
    %p272 = pnand %p270, %p271
    %p273 = pneg %p272
    // Predicated region
    $region9: #{skconv_pallas.1} parent=5 // pred_check
      _
    $region10: #{skconv_pallas.1} parent=5 // pred_check_branch
      %275 = sbr.rel (%p272) target = $region12
    $region11: #{skconv_pallas.1} parent=5 // pred_region
      %s276 = ssub.s32 %s16, 1
      // Predicated region
      $region13: #{skconv_pallas.1} parent=11 // pred_check
        %p277 = pneg %p89
      $region14: #{skconv_pallas.1} parent=11 // pred_check_branch
        %279 = sbr.rel (%p277) target = $region16
      $region15: #{skconv_pallas.1} parent=11 // pred_region
        _
      $region16: #{skconv_pallas.1} parent=11 // pred_fallthru
        _
      // Predicated region
      $region17: #{skconv_pallas.1} parent=11 // pred_check
        %p280 = pneg %p110
      $region18: #{skconv_pallas.1} parent=11 // pred_check_branch
        %282 = sbr.rel (%p280) target = $region20
      $region19: #{skconv_pallas.1} parent=11 // pred_region
        _
      $region20: #{skconv_pallas.1} parent=11 // pred_fallthru
        _
      // Predicated region
      $region21: #{skconv_pallas.1} parent=11 // pred_check
        %p283 = pneg %p131
      $region22: #{skconv_pallas.1} parent=11 // pred_check_branch
        %285 = sbr.rel (%p283) target = $region24
      $region23: #{skconv_pallas.1} parent=11 // pred_region
        _
      $region24: #{skconv_pallas.1} parent=11 // pred_fallthru
        _
      // Predicated region
      $region25: #{skconv_pallas.1} parent=11 // pred_check
        %p286 = pneg %p152
      $region26: #{skconv_pallas.1} parent=11 // pred_check_branch
        %288 = sbr.rel (%p286) target = $region28
      $region27: #{skconv_pallas.1} parent=11 // pred_region
        _
      $region28: #{skconv_pallas.1} parent=11 // pred_fallthru
        _
      // Predicated region
      $region29: #{skconv_pallas.1} parent=11 // pred_check
        %p289 = pneg %p173
      $region30: #{skconv_pallas.1} parent=11 // pred_check_branch
        %291 = sbr.rel (%p289) target = $region32
      $region31: #{skconv_pallas.1} parent=11 // pred_region
        _
      $region32: #{skconv_pallas.1} parent=11 // pred_fallthru
        _
      // Predicated region
      $region33: #{skconv_pallas.1} parent=11 // pred_check
        %p292 = pneg %p194
      $region34: #{skconv_pallas.1} parent=11 // pred_check_branch
        %294 = sbr.rel (%p292) target = $region36
      $region35: #{skconv_pallas.1} parent=11 // pred_region
        _
      $region36: #{skconv_pallas.1} parent=11 // pred_fallthru
        _
      // Predicated region
      $region37: #{skconv_pallas.1} parent=11 // pred_check
        %p295 = pneg %p215
      $region38: #{skconv_pallas.1} parent=11 // pred_check_branch
        %297 = sbr.rel (%p295) target = $region40
      $region39: #{skconv_pallas.1} parent=11 // pred_region
        _
      $region40: #{skconv_pallas.1} parent=11 // pred_fallthru
        _
      // Predicated region
      $region41: #{skconv_pallas.1} parent=11 // pred_check
        %p298 = pneg %p236
      $region42: #{skconv_pallas.1} parent=11 // pred_check_branch
        %300 = sbr.rel (%p298) target = $region44
      $region43: #{skconv_pallas.1} parent=11 // pred_region
        _
      $region44: #{skconv_pallas.1} parent=11 // pred_fallthru
        _
    $region12: #{skconv_pallas.1} parent=5 // pred_fallthru
      _
    %p301 = scmp.lt.s32.totalorder %s16, 2
    // Predicated region
    $region45: #{skconv_pallas.1} parent=5 // pred_check
      %p302 = pneg %p301
    $region46: #{skconv_pallas.1} parent=5 // pred_check_branch
      %304 = sbr.rel (%p302) target = $region48
    $region47: #{skconv_pallas.1} parent=5 // pred_region
      // Predicated region
      $region49: #{skconv_pallas.1} parent=47 // pred_check
        %p305 = pneg %p36
      $region50: #{skconv_pallas.1} parent=47 // pred_check_branch
        %307 = sbr.rel (%p305) target = $region52
      $region51: #{skconv_pallas.1} parent=47 // pred_region
        %p308 = scmp.lt.s32.totalorder %s16, 1
        %s309 = scalar_select %p308, %s16, 1
        %s310 = smul.addr %s309, 144
        %s311 = smul.addr %s310, 4
        %s312 = scalar_lea.vmem %s0, %s311
      $region52: #{skconv_pallas.1} parent=47 // pred_fallthru
        _
      // Predicated region
      $region53: #{skconv_pallas.1} parent=47 // pred_check
        %p313 = pneg %p62
      $region54: #{skconv_pallas.1} parent=47 // pred_check_branch
        %315 = sbr.rel (%p313) target = $region56
      $region55: #{skconv_pallas.1} parent=47 // pred_region
        %p316 = scmp.lt.s32.totalorder %s16, 1
        %s317 = scalar_select %p316, %s16, 1
        %s318 = smul.addr %s317, 400
        %s319 = smul.addr %s318, 4
        %s320 = scalar_lea.vmem %s1, %s319
      $region56: #{skconv_pallas.1} parent=47 // pred_fallthru
        _
    $region48: #{skconv_pallas.1} parent=5 // pred_fallthru
      _
    %p321 = scmp.le.s32.totalorder 1, %s16
    %p322 = scmp.lt.s32.totalorder %s16, 3
    %p323 = pnand %p321, %p322
    %p324 = pneg %p323
    // Predicated region
    $region57: #{skconv_pallas.1} parent=5 // pred_check
      _
    $region58: #{skconv_pallas.1} parent=5 // pred_check_branch
      %326 = sbr.rel (%p323) target = $region60
    $region59: #{skconv_pallas.1} parent=5 // pred_region
      %s327 = ssub.s32 %s16, 1
      %p328 = scmp.lt.s32.totalorder %s21, 1
      %s329 = scalar_select %p328, %s21, 1
      %s330 = smul.addr %s329, 144
      %s331 = smul.addr %s330, 4
      %s332 = scalar_lea.vmem %s0, %s331
      %p333 = pneg %p42
      %p334 = pneg %p39
      %p335 = scmp.lt.s32.totalorder %s21, 1
      %s336 = scalar_select %p335, %s21, 1
      %s337 = smul.addr %s336, 400
      %s338 = smul.addr %s337, 4
      %s339 = scalar_lea.vmem %s1, %s338
      %p340 = pneg %p68
      %p341 = pneg %p65
      %p342 = pneg %p89
      %p343 = pneg %p86
      %p344 = pneg %p110
      %p345 = pneg %p107
      %p346 = pneg %p131
      %p347 = pneg %p128
      %p348 = pneg %p152
      %p349 = pneg %p149
      %p350 = pneg %p173
      %p351 = pneg %p170
      %p352 = pneg %p194
      %p353 = pneg %p191
      %p354 = pneg %p215
      %p355 = pneg %p212
      %p356 = pneg %p236
      %p357 = pneg %p233
      %p358 = pneg %p262
      %p359 = pneg %p259
      %p360 = scmp.lt.s32.totalorder %s21, 1
      %s361 = scalar_select %p360, %s21, 1
      %s362 = smul.addr %s361, 16
      %s363 = smul.addr %s362, 8
      %s364 = scalar_lea.vmem %s10, %s363
      %p365 = scmp.lt.s32.totalorder %s21, 1
      %s366 = scalar_select %p365, %s21, 1
      %s367 = smul.addr %s366, 144
      %s368 = smul.addr %s367, 4
      %s369 = scalar_lea.vmem %s0, %s368
      %p370 = scmp.lt.s32.totalorder %s21, 1
      %s371 = scalar_select %p370, %s21, 1
      %s372 = smul.addr %s371, 400
      %s373 = smul.addr %s372, 4
      %s374 = scalar_lea.vmem %s1, %s373
      %p375 = scmp.lt.s32.totalorder %s21, 1
      %s376 = scalar_select %p375, %s21, 1
      %s377 = smul.addr %s376, 16
      %s378 = smul.addr %s377, 8
      %s379 = scalar_lea.vmem %s10, %s378
      %v381 = vld [vmem:[%s2] sm:$0xff]
      %v382 = vld [vmem:[%s2 + $0x8] sm:$0xff]
      %v383 = vld [vmem:[%s2 + $0x10] sm:$0xf]
      %v384 = vld [vmem:[%s2 + $0x14] sm:$0xff]
      %v385 = vld [vmem:[%s2 + $0x1c] sm:$0xff]
      %v386 = vld [vmem:[%s2 + $0x24] sm:$0xf]
      %v387 = vld [vmem:[%s2 + $0x28] sm:$0xff]
      %v388 = vld [vmem:[%s2 + $0x30] sm:$0xff]
      %v389 = vld [vmem:[%s2 + $0x38] sm:$0xf]
      %v390 = vld [vmem:[%s2 + $0x3c] sm:$0xff]
      %v391 = vld [vmem:[%s2 + $0x44] sm:$0xff]
      %v392 = vld [vmem:[%s2 + $0x4c] sm:$0xf]
      %v393 = vld [vmem:[%s2 + $0x50] sm:$0xff]
      %v394 = vld [vmem:[%s2 + $0x58] sm:$0xff]
      %v395 = vld [vmem:[%s2 + $0x60] sm:$0xf]
      %v396 = vld [vmem:[%s2 + $0x64] sm:$0xff]
      %v397 = vld [vmem:[%s2 + $0x6c] sm:$0xff]
      %v398 = vld [vmem:[%s2 + $0x74] sm:$0xf]
      %v399 = vld [vmem:[%s2 + $0x78] sm:$0xff]
      %v400 = vld [vmem:[%s2 + $0x80] sm:$0xff]
      %v401 = vld [vmem:[%s2 + $0x88] sm:$0xf]
      %v402 = vld [vmem:[%s2 + $0x8c] sm:$0xff]
      %v403 = vld [vmem:[%s2 + $0x94] sm:$0xff]
      %v404 = vld [vmem:[%s2 + $0x9c] sm:$0xf]
      %v405 = vld [vmem:[%s369] sm:$0xff]
      %v406 = vld [vmem:[%s369 + $0x8] sm:$0xff]
      %v407 = vld [vmem:[%s369 + $0x10] sm:$0xff]
      %v408 = vld [vmem:[%s369 + $0x18] sm:$0xff]
      %v409 = vld [vmem:[%s369 + $0x20] sm:$0xff]
      %v410 = vld [vmem:[%s369 + $0x28] sm:$0xff]
      %v411 = vld [vmem:[%s369 + $0x30] sm:$0xff]
      %v412 = vld [vmem:[%s369 + $0x38] sm:$0xff]
      %v413 = vld [vmem:[%s369 + $0x40] sm:$0xff]
      %v414 = vld [vmem:[%s369 + $0x48] sm:$0xff]
      %v415 = vld [vmem:[%s369 + $0x50] sm:$0xff]
      %v416 = vld [vmem:[%s369 + $0x58] sm:$0xff]
      %v417 = vld [vmem:[%s369 + $0x60] sm:$0xff]
      %v418 = vld [vmem:[%s369 + $0x68] sm:$0xff]
      %v419 = vld [vmem:[%s369 + $0x70] sm:$0xff]
      %v420 = vld [vmem:[%s369 + $0x78] sm:$0xff]
      %v421 = vld [vmem:[%s369 + $0x80] sm:$0xff]
      %v422 = vld [vmem:[%s369 + $0x88] sm:$0xff]
      %v423 = vld [vmem:[%s369 + $0x90] sm:$0xff]
      %v424 = vld [vmem:[%s369 + $0x98] sm:$0xff]
      %v425 = vld [vmem:[%s369 + $0xa0] sm:$0xff]
      %v426 = vld [vmem:[%s369 + $0xa8] sm:$0xff]
      %v427 = vld [vmem:[%s369 + $0xb0] sm:$0xff]
      %v428 = vld [vmem:[%s369 + $0xb8] sm:$0xff]
      %v429 = vld [vmem:[%s369 + $0xc0] sm:$0xff]
      %v430 = vld [vmem:[%s369 + $0xc8] sm:$0xff]
      %v431 = vld [vmem:[%s369 + $0xd0] sm:$0xff]
      %v432 = vld [vmem:[%s369 + $0xd8] sm:$0xff]
      %v433 = vld [vmem:[%s369 + $0xe0] sm:$0xff]
      %v434 = vld [vmem:[%s369 + $0xe8] sm:$0xff]
      %v435 = vld [vmem:[%s369 + $0xf0] sm:$0xff]
      %v436 = vld [vmem:[%s369 + $0xf8] sm:$0xff]
      %v437 = vld [vmem:[%s369 + $0x100] sm:$0xff]
      %v438 = vld [vmem:[%s369 + $0x108] sm:$0xff]
      %v439 = vld [vmem:[%s369 + $0x110] sm:$0xff]
      %v440 = vld [vmem:[%s369 + $0x118] sm:$0xff]
      %v441 = vld [vmem:[%s369 + $0x120] sm:$0xff]
      %v442 = vld [vmem:[%s369 + $0x128] sm:$0xff]
      %v443 = vld [vmem:[%s369 + $0x130] sm:$0xff]
      %v444 = vld [vmem:[%s369 + $0x138] sm:$0xff]
      %v445 = vld [vmem:[%s369 + $0x140] sm:$0xff]
      %v446 = vld [vmem:[%s369 + $0x148] sm:$0xff]
      %v447 = vld [vmem:[%s369 + $0x150] sm:$0xff]
      %v448 = vld [vmem:[%s369 + $0x158] sm:$0xff]
      %v449 = vld [vmem:[%s369 + $0x160] sm:$0xff]
      %v450 = vld [vmem:[%s369 + $0x168] sm:$0xff]
      %v451 = vld [vmem:[%s369 + $0x170] sm:$0xff]
      %v452 = vld [vmem:[%s369 + $0x178] sm:$0xff]
      %v453 = vld [vmem:[%s369 + $0x180] sm:$0xff]
      %v454 = vld [vmem:[%s369 + $0x188] sm:$0xff]
      %v455 = vld [vmem:[%s369 + $0x190] sm:$0xff]
      %v456 = vld [vmem:[%s369 + $0x198] sm:$0xff]
      %v457 = vld [vmem:[%s369 + $0x1a0] sm:$0xff]
      %v458 = vld [vmem:[%s369 + $0x1a8] sm:$0xff]
      %v459 = vld [vmem:[%s369 + $0x1b0] sm:$0xff]
      %v460 = vld [vmem:[%s369 + $0x1b8] sm:$0xff]
      %v461 = vld [vmem:[%s369 + $0x1c0] sm:$0xff]
      %v462 = vld [vmem:[%s369 + $0x1c8] sm:$0xff]
      %v463 = vld [vmem:[%s369 + $0x1d0] sm:$0xff]
      %v464 = vld [vmem:[%s369 + $0x1d8] sm:$0xff]
      %v465 = vld [vmem:[%s369 + $0x1e0] sm:$0xff]
      %v466 = vld [vmem:[%s369 + $0x1e8] sm:$0xff]
      %v467 = vld [vmem:[%s369 + $0x1f0] sm:$0xff]
      %v468 = vld [vmem:[%s369 + $0x1f8] sm:$0xff]
      %v469 = vld [vmem:[%s369 + $0x200] sm:$0xff]
      %v470 = vld [vmem:[%s369 + $0x208] sm:$0xff]
      %v471 = vld [vmem:[%s369 + $0x210] sm:$0xff]
      %v472 = vld [vmem:[%s369 + $0x218] sm:$0xff]
      %v473 = vld [vmem:[%s369 + $0x220] sm:$0xff]
      %v474 = vld [vmem:[%s369 + $0x228] sm:$0xff]
      %v475 = vld [vmem:[%s369 + $0x230] sm:$0xff]
      %v476 = vld [vmem:[%s369 + $0x238] sm:$0xff]
      %v501 = vunpack.c.l.b16 %v381
      %v502 = vunpack.c.h.b16 %v381
      %v503 = vunpack.c.l.b16 %v382
      %v504 = vunpack.c.h.b16 %v382
      %v505 = vunpack.c.l.b16 %v383
      %v506 = vunpack.c.l.b16 %v384
      %v507 = vunpack.c.h.b16 %v384
      %v508 = vunpack.c.l.b16 %v385
      %v509 = vunpack.c.h.b16 %v385
      %v510 = vunpack.c.l.b16 %v386
      %v511 = vunpack.c.l.b16 %v387
      %v512 = vunpack.c.h.b16 %v387
      %v513 = vunpack.c.l.b16 %v388
      %v514 = vunpack.c.h.b16 %v388
      %v515 = vunpack.c.l.b16 %v389
      %v516 = vunpack.c.l.b16 %v390
      %v517 = vunpack.c.h.b16 %v390
      %v518 = vunpack.c.l.b16 %v391
      %v519 = vunpack.c.h.b16 %v391
      %v520 = vunpack.c.l.b16 %v392
      %v521 = vunpack.c.l.b16 %v393
      %v522 = vunpack.c.h.b16 %v393
      %v523 = vunpack.c.l.b16 %v394
      %v524 = vunpack.c.h.b16 %v394
      %v525 = vunpack.c.l.b16 %v395
      %v526 = vunpack.c.l.b16 %v396
      %v527 = vunpack.c.h.b16 %v396
      %v528 = vunpack.c.l.b16 %v397
      %v529 = vunpack.c.h.b16 %v397
      %v530 = vunpack.c.l.b16 %v398
      %v531 = vunpack.c.l.b16 %v399
      %v532 = vunpack.c.h.b16 %v399
      %v533 = vunpack.c.l.b16 %v400
      %v534 = vunpack.c.h.b16 %v400
      %v535 = vunpack.c.l.b16 %v401
      %v536 = vunpack.c.l.b16 %v402
      %v537 = vunpack.c.h.b16 %v402
      %v538 = vunpack.c.l.b16 %v403
      %v539 = vunpack.c.h.b16 %v403
      %v540 = vunpack.c.l.b16 %v404
      %v541 = vpack.c.b16 %v506, %v501
      %v542 = vpack.c.b16 %v507, %v502
      %v543 = vpack.c.b16 %v508, %v503
      %v544 = vpack.c.b16 %v509, %v504
      %v545 = vpack.c.b16 %v510, %v505
      %v546 = vpack.c.b16 %v516, %v511
      %v547 = vpack.c.b16 %v517, %v512
      %v548 = vpack.c.b16 %v518, %v513
      %v549 = vpack.c.b16 %v519, %v514
      %v550 = vpack.c.b16 %v520, %v515
      %v551 = vpack.c.b16 %v526, %v521
      %v552 = vpack.c.b16 %v527, %v522
      %v553 = vpack.c.b16 %v528, %v523
      %v554 = vpack.c.b16 %v529, %v524
      %v555 = vpack.c.b16 %v530, %v525
      %v556 = vpack.c.b16 %v536, %v531
      %v557 = vpack.c.b16 %v537, %v532
      %v558 = vpack.c.b16 %v538, %v533
      %v559 = vpack.c.b16 %v539, %v534
      %v560 = vpack.c.b16 %v540, %v535
      %v649 = vunpack.c.l.b16 %v405
      %v650 = vunpack.c.h.b16 %v405
      %v651 = vunpack.c.l.b16 %v406
      %v652 = vunpack.c.h.b16 %v406
      %v653 = vunpack.c.l.b16 %v407
      %v654 = vunpack.c.h.b16 %v407
      %v655 = vunpack.c.l.b16 %v408
      %v656 = vunpack.c.h.b16 %v408
      %v657 = vunpack.c.l.b16 %v409
      %v658 = vunpack.c.h.b16 %v409
      %v659 = vunpack.c.l.b16 %v410
      %v660 = vunpack.c.h.b16 %v410
      %v661 = vunpack.c.l.b16 %v411
      %v662 = vunpack.c.h.b16 %v411
      %v663 = vunpack.c.l.b16 %v412
      %v664 = vunpack.c.h.b16 %v412
      %v665 = vunpack.c.l.b16 %v413
      %v666 = vunpack.c.h.b16 %v413
      %v667 = vunpack.c.l.b16 %v414
      %v668 = vunpack.c.h.b16 %v414
      %v669 = vunpack.c.l.b16 %v415
      %v670 = vunpack.c.h.b16 %v415
      %v671 = vunpack.c.l.b16 %v416
      %v672 = vunpack.c.h.b16 %v416
      %v673 = vunpack.c.l.b16 %v417
      %v674 = vunpack.c.h.b16 %v417
      %v675 = vunpack.c.l.b16 %v418
      %v676 = vunpack.c.h.b16 %v418
      %v677 = vunpack.c.l.b16 %v419
      %v678 = vunpack.c.h.b16 %v419
      %v679 = vunpack.c.l.b16 %v420
      %v680 = vunpack.c.h.b16 %v420
      %v681 = vunpack.c.l.b16 %v421
      %v682 = vunpack.c.h.b16 %v421
      %v683 = vunpack.c.l.b16 %v422
      %v684 = vunpack.c.h.b16 %v422
      %v685 = vunpack.c.l.b16 %v423
      %v686 = vunpack.c.h.b16 %v423
      %v687 = vunpack.c.l.b16 %v424
      %v688 = vunpack.c.h.b16 %v424
      %v689 = vunpack.c.l.b16 %v425
      %v690 = vunpack.c.h.b16 %v425
      %v691 = vunpack.c.l.b16 %v426
      %v692 = vunpack.c.h.b16 %v426
      %v693 = vunpack.c.l.b16 %v427
      %v694 = vunpack.c.h.b16 %v427
      %v695 = vunpack.c.l.b16 %v428
      %v696 = vunpack.c.h.b16 %v428
      %v697 = vunpack.c.l.b16 %v429
      %v698 = vunpack.c.h.b16 %v429
      %v699 = vunpack.c.l.b16 %v430
      %v700 = vunpack.c.h.b16 %v430
      %v701 = vunpack.c.l.b16 %v431
      %v702 = vunpack.c.h.b16 %v431
      %v703 = vunpack.c.l.b16 %v432
      %v704 = vunpack.c.h.b16 %v432
      %v705 = vunpack.c.l.b16 %v433
      %v706 = vunpack.c.h.b16 %v433
      %v707 = vunpack.c.l.b16 %v434
      %v708 = vunpack.c.h.b16 %v434
      %v709 = vunpack.c.l.b16 %v435
      %v710 = vunpack.c.h.b16 %v435
      %v711 = vunpack.c.l.b16 %v436
      %v712 = vunpack.c.h.b16 %v436
      %v713 = vunpack.c.l.b16 %v437
      %v714 = vunpack.c.h.b16 %v437
      %v715 = vunpack.c.l.b16 %v438
      %v716 = vunpack.c.h.b16 %v438
      %v717 = vunpack.c.l.b16 %v439
      %v718 = vunpack.c.h.b16 %v439
      %v719 = vunpack.c.l.b16 %v440
      %v720 = vunpack.c.h.b16 %v440
      %v721 = vunpack.c.l.b16 %v441
      %v722 = vunpack.c.h.b16 %v441
      %v723 = vunpack.c.l.b16 %v442
      %v724 = vunpack.c.h.b16 %v442
      %v725 = vunpack.c.l.b16 %v443
      %v726 = vunpack.c.h.b16 %v443
      %v727 = vunpack.c.l.b16 %v444
      %v728 = vunpack.c.h.b16 %v444
      %v729 = vunpack.c.l.b16 %v445
      %v730 = vunpack.c.h.b16 %v445
      %v731 = vunpack.c.l.b16 %v446
      %v732 = vunpack.c.h.b16 %v446
      %v733 = vunpack.c.l.b16 %v447
      %v734 = vunpack.c.h.b16 %v447
      %v735 = vunpack.c.l.b16 %v448
      %v736 = vunpack.c.h.b16 %v448
      %v737 = vunpack.c.l.b16 %v449
      %v738 = vunpack.c.h.b16 %v449
      %v739 = vunpack.c.l.b16 %v450
      %v740 = vunpack.c.h.b16 %v450
      %v741 = vunpack.c.l.b16 %v451
      %v742 = vunpack.c.h.b16 %v451
      %v743 = vunpack.c.l.b16 %v452
      %v744 = vunpack.c.h.b16 %v452
      %v745 = vunpack.c.l.b16 %v453
      %v746 = vunpack.c.h.b16 %v453
      %v747 = vunpack.c.l.b16 %v454
      %v748 = vunpack.c.h.b16 %v454
      %v749 = vunpack.c.l.b16 %v455
      %v750 = vunpack.c.h.b16 %v455
      %v751 = vunpack.c.l.b16 %v456
      %v752 = vunpack.c.h.b16 %v456
      %v753 = vunpack.c.l.b16 %v457
      %v754 = vunpack.c.h.b16 %v457
      %v755 = vunpack.c.l.b16 %v458
      %v756 = vunpack.c.h.b16 %v458
      %v757 = vunpack.c.l.b16 %v459
      %v758 = vunpack.c.h.b16 %v459
      %v759 = vunpack.c.l.b16 %v460
      %v760 = vunpack.c.h.b16 %v460
      %v761 = vunpack.c.l.b16 %v461
      %v762 = vunpack.c.h.b16 %v461
      %v763 = vunpack.c.l.b16 %v462
      %v764 = vunpack.c.h.b16 %v462
      %v765 = vunpack.c.l.b16 %v463
      %v766 = vunpack.c.h.b16 %v463
      %v767 = vunpack.c.l.b16 %v464
      %v768 = vunpack.c.h.b16 %v464
      %v769 = vunpack.c.l.b16 %v465
      %v770 = vunpack.c.h.b16 %v465
      %v771 = vunpack.c.l.b16 %v466
      %v772 = vunpack.c.h.b16 %v466
      %v773 = vunpack.c.l.b16 %v467
      %v774 = vunpack.c.h.b16 %v467
      %v775 = vunpack.c.l.b16 %v468
      %v776 = vunpack.c.h.b16 %v468
      %v777 = vunpack.c.l.b16 %v469
      %v778 = vunpack.c.h.b16 %v469
      %v779 = vunpack.c.l.b16 %v470
      %v780 = vunpack.c.h.b16 %v470
      %v781 = vunpack.c.l.b16 %v471
      %v782 = vunpack.c.h.b16 %v471
      %v783 = vunpack.c.l.b16 %v472
      %v784 = vunpack.c.h.b16 %v472
      %v785 = vunpack.c.l.b16 %v473
      %v786 = vunpack.c.h.b16 %v473
      %v787 = vunpack.c.l.b16 %v474
      %v788 = vunpack.c.h.b16 %v474
      %v789 = vunpack.c.l.b16 %v475
      %v790 = vunpack.c.h.b16 %v475
      %v791 = vunpack.c.l.b16 %v476
      %v792 = vunpack.c.h.b16 %v476
      %v793 = vpack.c.b16 %v651, %v649
      %v794 = vpack.c.b16 %v652, %v650
      %v795 = vpack.c.b16 %v655, %v653
      %v796 = vpack.c.b16 %v656, %v654
      %v797 = vpack.c.b16 %v659, %v657
      %v798 = vpack.c.b16 %v660, %v658
      %v799 = vpack.c.b16 %v663, %v661
      %v800 = vpack.c.b16 %v664, %v662
      %v801 = vpack.c.b16 %v667, %v665
      %v802 = vpack.c.b16 %v668, %v666
      %v803 = vpack.c.b16 %v671, %v669
      %v804 = vpack.c.b16 %v672, %v670
      %v805 = vpack.c.b16 %v675, %v673
      %v806 = vpack.c.b16 %v676, %v674
      %v807 = vpack.c.b16 %v679, %v677
      %v808 = vpack.c.b16 %v680, %v678
      %v809 = vpack.c.b16 %v683, %v681
      %v810 = vpack.c.b16 %v684, %v682
      %v811 = vpack.c.b16 %v687, %v685
      %v812 = vpack.c.b16 %v688, %v686
      %v813 = vpack.c.b16 %v691, %v689
      %v814 = vpack.c.b16 %v692, %v690
      %v815 = vpack.c.b16 %v695, %v693
      %v816 = vpack.c.b16 %v696, %v694
      %v817 = vpack.c.b16 %v699, %v697
      %v818 = vpack.c.b16 %v700, %v698
      %v819 = vpack.c.b16 %v703, %v701
      %v820 = vpack.c.b16 %v704, %v702
      %v821 = vpack.c.b16 %v707, %v705
      %v822 = vpack.c.b16 %v708, %v706
      %v823 = vpack.c.b16 %v711, %v709
      %v824 = vpack.c.b16 %v712, %v710
      %v825 = vpack.c.b16 %v715, %v713
      %v826 = vpack.c.b16 %v716, %v714
      %v827 = vpack.c.b16 %v719, %v717
      %v828 = vpack.c.b16 %v720, %v718
      %v829 = vpack.c.b16 %v723, %v721
      %v830 = vpack.c.b16 %v724, %v722
      %v831 = vpack.c.b16 %v727, %v725
      %v832 = vpack.c.b16 %v728, %v726
      %v833 = vpack.c.b16 %v731, %v729
      %v834 = vpack.c.b16 %v732, %v730
      %v835 = vpack.c.b16 %v735, %v733
      %v836 = vpack.c.b16 %v736, %v734
      %v837 = vpack.c.b16 %v739, %v737
      %v838 = vpack.c.b16 %v740, %v738
      %v839 = vpack.c.b16 %v743, %v741
      %v840 = vpack.c.b16 %v744, %v742
      %v841 = vpack.c.b16 %v747, %v745
      %v842 = vpack.c.b16 %v748, %v746
      %v843 = vpack.c.b16 %v751, %v749
      %v844 = vpack.c.b16 %v752, %v750
      %v845 = vpack.c.b16 %v755, %v753
      %v846 = vpack.c.b16 %v756, %v754
      %v847 = vpack.c.b16 %v759, %v757
      %v848 = vpack.c.b16 %v760, %v758
      %v849 = vpack.c.b16 %v763, %v761
      %v850 = vpack.c.b16 %v764, %v762
      %v851 = vpack.c.b16 %v767, %v765
      %v852 = vpack.c.b16 %v768, %v766
      %v853 = vpack.c.b16 %v771, %v769
      %v854 = vpack.c.b16 %v772, %v770
      %v855 = vpack.c.b16 %v775, %v773
      %v856 = vpack.c.b16 %v776, %v774
      %v857 = vpack.c.b16 %v779, %v777
      %v858 = vpack.c.b16 %v780, %v778
      %v859 = vpack.c.b16 %v783, %v781
      %v860 = vpack.c.b16 %v784, %v782
      %v861 = vpack.c.b16 %v787, %v785
      %v862 = vpack.c.b16 %v788, %v786
      %v863 = vpack.c.b16 %v791, %v789
      %v864 = vpack.c.b16 %v792, %v790
      %vm937 = vcmask 523264
      %v939 = vsel %vm937, %v545, 0
      %v942 = vsel %vm937, %v550, 0
      %v945 = vsel %vm937, %v555, 0
      %v948 = vsel %vm937, %v560, 0
      %950 = vmatpush.bf16.msra.mxu0 %v807
      %951 = vmatpush.bf16.msra.mxu0 %v805
      %952 = vmatpush.bf16.msra.mxu0 %v803
      %953 = vmatpush.bf16.msra.mxu0 %v801
      %954 = vmatpush.bf16.msra.mxu0 %v799
      %955 = vmatpush.bf16.msra.mxu0 %v797
      %956 = vmatpush.bf16.msra.mxu0 %v795
      %957 = vmatpush.bf16.msra.mxu0 %v793
      %958 = vmatmul.bf16.gmra.mxu0 %v541
      %v959 = vpop.f32.mrf.mxu0
      %v960 = vadd.f32 0.0, %v959
      %v961 = vpop.f32.mrf.mxu0
      %v962 = vadd.f32 0.0, %v961
      %963 = vmatmul.bf16.gmra.mxu0 %v546
      %v964 = vpop.f32.mrf.mxu0
      %v965 = vadd.f32 0.0, %v964
      %v966 = vpop.f32.mrf.mxu0
      %v967 = vadd.f32 0.0, %v966
      %968 = vmatmul.bf16.gmra.mxu0 %v551
      %v969 = vpop.f32.mrf.mxu0
      %v970 = vadd.f32 0.0, %v969
      %v971 = vpop.f32.mrf.mxu0
      %v972 = vadd.f32 0.0, %v971
      %973 = vmatmul.bf16.gmra.mxu0 %v556
      %v974 = vpop.f32.mrf.mxu0
      %v975 = vadd.f32 0.0, %v974
      %v976 = vpop.f32.mrf.mxu0
      %v977 = vadd.f32 0.0, %v976
      %978 = vdwg.mxu0
      %979 = vmatpush.bf16.msra.mxu0 %v823
      %980 = vmatpush.bf16.msra.mxu0 %v821
      %981 = vmatpush.bf16.msra.mxu0 %v819
      %982 = vmatpush.bf16.msra.mxu0 %v817
      %983 = vmatpush.bf16.msra.mxu0 %v815
      %984 = vmatpush.bf16.msra.mxu0 %v813
      %985 = vmatpush.bf16.msra.mxu0 %v811
      %986 = vmatpush.bf16.msra.mxu0 %v809
      %987 = vmatmul.bf16.gmra.mxu0 %v542
      %v988 = vpop.f32.mrf.mxu0
      %v989 = vadd.f32 %v960, %v988
      %v990 = vpop.f32.mrf.mxu0
      %v991 = vadd.f32 %v962, %v990
      %992 = vmatmul.bf16.gmra.mxu0 %v547
      %v993 = vpop.f32.mrf.mxu0
      %v994 = vadd.f32 %v965, %v993
      %v995 = vpop.f32.mrf.mxu0
      %v996 = vadd.f32 %v967, %v995
      %997 = vmatmul.bf16.gmra.mxu0 %v552
      %v998 = vpop.f32.mrf.mxu0
      %v999 = vadd.f32 %v970, %v998
      %v1000 = vpop.f32.mrf.mxu0
      %v1001 = vadd.f32 %v972, %v1000
      %1002 = vmatmul.bf16.gmra.mxu0 %v557
      %v1003 = vpop.f32.mrf.mxu0
      %v1004 = vadd.f32 %v975, %v1003
      %v1005 = vpop.f32.mrf.mxu0
      %v1006 = vadd.f32 %v977, %v1005
      %1007 = vdwg.mxu0
      %1008 = vmatpush.bf16.msra.mxu0 %v839
      %1009 = vmatpush.bf16.msra.mxu0 %v837
      %1010 = vmatpush.bf16.msra.mxu0 %v835
      %1011 = vmatpush.bf16.msra.mxu0 %v833
      %1012 = vmatpush.bf16.msra.mxu0 %v831
      %1013 = vmatpush.bf16.msra.mxu0 %v829
      %1014 = vmatpush.bf16.msra.mxu0 %v827
      %1015 = vmatpush.bf16.msra.mxu0 %v825
      %1016 = vmatmul.bf16.gmra.mxu0 %v543
      %v1017 = vpop.f32.mrf.mxu0
      %v1018 = vadd.f32 %v989, %v1017
      %v1019 = vpop.f32.mrf.mxu0
      %v1020 = vadd.f32 %v991, %v1019
      %1021 = vmatmul.bf16.gmra.mxu0 %v548
      %v1022 = vpop.f32.mrf.mxu0
      %v1023 = vadd.f32 %v994, %v1022
      %v1024 = vpop.f32.mrf.mxu0
      %v1025 = vadd.f32 %v996, %v1024
      %1026 = vmatmul.bf16.gmra.mxu0 %v553
      %v1027 = vpop.f32.mrf.mxu0
      %v1028 = vadd.f32 %v999, %v1027
      %v1029 = vpop.f32.mrf.mxu0
      %v1030 = vadd.f32 %v1001, %v1029
      %1031 = vmatmul.bf16.gmra.mxu0 %v558
      %v1032 = vpop.f32.mrf.mxu0
      %v1033 = vadd.f32 %v1004, %v1032
      %v1034 = vpop.f32.mrf.mxu0
      %v1035 = vadd.f32 %v1006, %v1034
      %1036 = vdwg.mxu0
      %1037 = vmatpush.bf16.msra.mxu0 %v855
      %1038 = vmatpush.bf16.msra.mxu0 %v853
      %1039 = vmatpush.bf16.msra.mxu0 %v851
      %1040 = vmatpush.bf16.msra.mxu0 %v849
      %1041 = vmatpush.bf16.msra.mxu0 %v847
      %1042 = vmatpush.bf16.msra.mxu0 %v845
      %1043 = vmatpush.bf16.msra.mxu0 %v843
      %1044 = vmatpush.bf16.msra.mxu0 %v841
      %1045 = vmatmul.bf16.gmra.mxu0 %v544
      %v1046 = vpop.f32.mrf.mxu0
      %v1047 = vadd.f32 %v1018, %v1046
      %v1048 = vpop.f32.mrf.mxu0
      %v1049 = vadd.f32 %v1020, %v1048
      %1050 = vmatmul.bf16.gmra.mxu0 %v549
      %v1051 = vpop.f32.mrf.mxu0
      %v1052 = vadd.f32 %v1023, %v1051
      %v1053 = vpop.f32.mrf.mxu0
      %v1054 = vadd.f32 %v1025, %v1053
      %1055 = vmatmul.bf16.gmra.mxu0 %v554
      %v1056 = vpop.f32.mrf.mxu0
      %v1057 = vadd.f32 %v1028, %v1056
      %v1058 = vpop.f32.mrf.mxu0
      %v1059 = vadd.f32 %v1030, %v1058
      %1060 = vmatmul.bf16.gmra.mxu0 %v559
      %v1061 = vpop.f32.mrf.mxu0
      %v1062 = vadd.f32 %v1033, %v1061
      %v1063 = vpop.f32.mrf.mxu0
      %v1064 = vadd.f32 %v1035, %v1063
      %1065 = vdwg.mxu0
      %1066 = vmatpush.bf16.msra.mxu0 0
      %1067 = vmatpush.bf16.msra.mxu0 0
      %1068 = vmatpush.bf16.msra.mxu0 0
      %1069 = vmatpush.bf16.msra.mxu0 0
      %1070 = vmatpush.bf16.msra.mxu0 %v863
      %1071 = vmatpush.bf16.msra.mxu0 %v861
      %1072 = vmatpush.bf16.msra.mxu0 %v859
      %1073 = vmatpush.bf16.msra.mxu0 %v857
      %1074 = vmatmul.bf16.gmra.mxu0 %v939
      %v1075 = vpop.f32.mrf.mxu0
      %v1076 = vadd.f32 %v1047, %v1075
      %v1077 = vpop.f32.mrf.mxu0
      %v1078 = vadd.f32 %v1049, %v1077
      %1079 = vmatmul.bf16.gmra.mxu0 %v942
      %v1080 = vpop.f32.mrf.mxu0
      %v1081 = vadd.f32 %v1052, %v1080
      %v1082 = vpop.f32.mrf.mxu0
      %v1083 = vadd.f32 %v1054, %v1082
      %1084 = vmatmul.bf16.gmra.mxu0 %v945
      %v1085 = vpop.f32.mrf.mxu0
      %v1086 = vadd.f32 %v1057, %v1085
      %v1087 = vpop.f32.mrf.mxu0
      %v1088 = vadd.f32 %v1059, %v1087
      %1089 = vmatmul.bf16.gmra.mxu0 %v948
      %v1090 = vpop.f32.mrf.mxu0
      %v1091 = vadd.f32 %v1062, %v1090
      %v1092 = vpop.f32.mrf.mxu0
      %v1093 = vadd.f32 %v1064, %v1092
      %1094 = vdwg.mxu0
      %1095 = vmatpush.bf16.msra.mxu0 %v808
      %1096 = vmatpush.bf16.msra.mxu0 %v806
      %1097 = vmatpush.bf16.msra.mxu0 %v804
      %1098 = vmatpush.bf16.msra.mxu0 %v802
      %1099 = vmatpush.bf16.msra.mxu0 %v800
      %1100 = vmatpush.bf16.msra.mxu0 %v798
      %1101 = vmatpush.bf16.msra.mxu0 %v796
      %1102 = vmatpush.bf16.msra.mxu0 %v794
      %1103 = vmatmul.bf16.gmra.mxu0 %v541
      %v1104 = vpop.f32.mrf.mxu0
      %v1105 = vadd.f32 0.0, %v1104
      %v1106 = vpop.f32.mrf.mxu0
      %v1107 = vadd.f32 0.0, %v1106
      %1108 = vmatmul.bf16.gmra.mxu0 %v546
      %v1109 = vpop.f32.mrf.mxu0
      %v1110 = vadd.f32 0.0, %v1109
      %v1111 = vpop.f32.mrf.mxu0
      %v1112 = vadd.f32 0.0, %v1111
      %1113 = vmatmul.bf16.gmra.mxu0 %v551
      %v1114 = vpop.f32.mrf.mxu0
      %v1115 = vadd.f32 0.0, %v1114
      %v1116 = vpop.f32.mrf.mxu0
      %v1117 = vadd.f32 0.0, %v1116
      %1118 = vmatmul.bf16.gmra.mxu0 %v556
      %v1119 = vpop.f32.mrf.mxu0
      %v1120 = vadd.f32 0.0, %v1119
      %v1121 = vpop.f32.mrf.mxu0
      %v1122 = vadd.f32 0.0, %v1121
      %1123 = vdwg.mxu0
      %1124 = vmatpush.bf16.msra.mxu0 %v824
      %1125 = vmatpush.bf16.msra.mxu0 %v822
      %1126 = vmatpush.bf16.msra.mxu0 %v820
      %1127 = vmatpush.bf16.msra.mxu0 %v818
      %1128 = vmatpush.bf16.msra.mxu0 %v816
      %1129 = vmatpush.bf16.msra.mxu0 %v814
      %1130 = vmatpush.bf16.msra.mxu0 %v812
      %1131 = vmatpush.bf16.msra.mxu0 %v810
      %1132 = vmatmul.bf16.gmra.mxu0 %v542
      %v1133 = vpop.f32.mrf.mxu0
      %v1134 = vadd.f32 %v1105, %v1133
      %v1135 = vpop.f32.mrf.mxu0
      %v1136 = vadd.f32 %v1107, %v1135
      %1137 = vmatmul.bf16.gmra.mxu0 %v547
      %v1138 = vpop.f32.mrf.mxu0
      %v1139 = vadd.f32 %v1110, %v1138
      %v1140 = vpop.f32.mrf.mxu0
      %v1141 = vadd.f32 %v1112, %v1140
      %1142 = vmatmul.bf16.gmra.mxu0 %v552
      %v1143 = vpop.f32.mrf.mxu0
      %v1144 = vadd.f32 %v1115, %v1143
      %v1145 = vpop.f32.mrf.mxu0
      %v1146 = vadd.f32 %v1117, %v1145
      %1147 = vmatmul.bf16.gmra.mxu0 %v557
      %v1148 = vpop.f32.mrf.mxu0
      %v1149 = vadd.f32 %v1120, %v1148
      %v1150 = vpop.f32.mrf.mxu0
      %v1151 = vadd.f32 %v1122, %v1150
      %1152 = vdwg.mxu0
      %1153 = vmatpush.bf16.msra.mxu0 %v840
      %1154 = vmatpush.bf16.msra.mxu0 %v838
      %1155 = vmatpush.bf16.msra.mxu0 %v836
      %1156 = vmatpush.bf16.msra.mxu0 %v834
      %1157 = vmatpush.bf16.msra.mxu0 %v832
      %1158 = vmatpush.bf16.msra.mxu0 %v830
      %1159 = vmatpush.bf16.msra.mxu0 %v828
      %1160 = vmatpush.bf16.msra.mxu0 %v826
      %1161 = vmatmul.bf16.gmra.mxu0 %v543
      %v1162 = vpop.f32.mrf.mxu0
      %v1163 = vadd.f32 %v1134, %v1162
      %v1164 = vpop.f32.mrf.mxu0
      %v1165 = vadd.f32 %v1136, %v1164
      %1166 = vmatmul.bf16.gmra.mxu0 %v548
      %v1167 = vpop.f32.mrf.mxu0
      %v1168 = vadd.f32 %v1139, %v1167
      %v1169 = vpop.f32.mrf.mxu0
      %v1170 = vadd.f32 %v1141, %v1169
      %1171 = vmatmul.bf16.gmra.mxu0 %v553
      %v1172 = vpop.f32.mrf.mxu0
      %v1173 = vadd.f32 %v1144, %v1172
      %v1174 = vpop.f32.mrf.mxu0
      %v1175 = vadd.f32 %v1146, %v1174
      %1176 = vmatmul.bf16.gmra.mxu0 %v558
      %v1177 = vpop.f32.mrf.mxu0
      %v1178 = vadd.f32 %v1149, %v1177
      %v1179 = vpop.f32.mrf.mxu0
      %v1180 = vadd.f32 %v1151, %v1179
      %1181 = vdwg.mxu0
      %1182 = vmatpush.bf16.msra.mxu0 %v856
      %1183 = vmatpush.bf16.msra.mxu0 %v854
      %1184 = vmatpush.bf16.msra.mxu0 %v852
      %1185 = vmatpush.bf16.msra.mxu0 %v850
      %1186 = vmatpush.bf16.msra.mxu0 %v848
      %1187 = vmatpush.bf16.msra.mxu0 %v846
      %1188 = vmatpush.bf16.msra.mxu0 %v844
      %1189 = vmatpush.bf16.msra.mxu0 %v842
      %1190 = vmatmul.bf16.gmra.mxu0 %v544
      %v1191 = vpop.f32.mrf.mxu0
      %v1192 = vadd.f32 %v1163, %v1191
      %v1193 = vpop.f32.mrf.mxu0
      %v1194 = vadd.f32 %v1165, %v1193
      %1195 = vmatmul.bf16.gmra.mxu0 %v549
      %v1196 = vpop.f32.mrf.mxu0
      %v1197 = vadd.f32 %v1168, %v1196
      %v1198 = vpop.f32.mrf.mxu0
      %v1199 = vadd.f32 %v1170, %v1198
      %1200 = vmatmul.bf16.gmra.mxu0 %v554
      %v1201 = vpop.f32.mrf.mxu0
      %v1202 = vadd.f32 %v1173, %v1201
      %v1203 = vpop.f32.mrf.mxu0
      %v1204 = vadd.f32 %v1175, %v1203
      %1205 = vmatmul.bf16.gmra.mxu0 %v559
      %v1206 = vpop.f32.mrf.mxu0
      %v1207 = vadd.f32 %v1178, %v1206
      %v1208 = vpop.f32.mrf.mxu0
      %v1209 = vadd.f32 %v1180, %v1208
      %1210 = vdwg.mxu0
      %1211 = vmatpush.bf16.msra.mxu0 0
      %1212 = vmatpush.bf16.msra.mxu0 0
      %1213 = vmatpush.bf16.msra.mxu0 0
      %1214 = vmatpush.bf16.msra.mxu0 0
      %1215 = vmatpush.bf16.msra.mxu0 %v864
      %1216 = vmatpush.bf16.msra.mxu0 %v862
      %1217 = vmatpush.bf16.msra.mxu0 %v860
      %1218 = vmatpush.bf16.msra.mxu0 %v858
      %1219 = vmatmul.bf16.gmra.mxu0 %v939
      %v1220 = vpop.f32.mrf.mxu0
      %v1221 = vadd.f32 %v1192, %v1220
      %v1222 = vpop.f32.mrf.mxu0
      %v1223 = vadd.f32 %v1194, %v1222
      %1224 = vmatmul.bf16.gmra.mxu0 %v942
      %v1225 = vpop.f32.mrf.mxu0
      %v1226 = vadd.f32 %v1197, %v1225
      %v1227 = vpop.f32.mrf.mxu0
      %v1228 = vadd.f32 %v1199, %v1227
      %1229 = vmatmul.bf16.gmra.mxu0 %v945
      %v1230 = vpop.f32.mrf.mxu0
      %v1231 = vadd.f32 %v1202, %v1230
      %v1232 = vpop.f32.mrf.mxu0
      %v1233 = vadd.f32 %v1204, %v1232
      %1234 = vmatmul.bf16.gmra.mxu0 %v948
      %v1235 = vpop.f32.mrf.mxu0
      %v1236 = vadd.f32 %v1207, %v1235
      %v1237 = vpop.f32.mrf.mxu0
      %v1238 = vadd.f32 %v1209, %v1237
      %1239 = vdwg.mxu0
      %v1240 = vld [vmem:[%s4] sm:$0xff]
      %v1241 = vld [vmem:[%s4 + $0x8] sm:$0xff]
      %v1242 = vld [vmem:[%s4 + $0x10] sm:$0xff]
      %v1243 = vld [vmem:[%s4 + $0x18] sm:$0xff]
      %v1244 = vld [vmem:[%s4 + $0x20] sm:$0xff]
      %v1245 = vld [vmem:[%s4 + $0x28] sm:$0xff]
      %v1246 = vld [vmem:[%s4 + $0x30] sm:$0xff]
      %v1247 = vld [vmem:[%s4 + $0x38] sm:$0xff]
      %1249 = vset.pattern.permute.xlu0 0
      %1250 = vperm.xlu0 %1249, %v1240
      %v1251 = vpop.permute.xlu0 %1250
      %1254 = vset.pattern.permute.xlu0 0
      %1255 = vperm.xlu0 %1254, %v1241
      %v1256 = vpop.permute.xlu0 %1255
      %1259 = vset.pattern.permute.xlu0 0
      %1260 = vperm.xlu0 %1259, %v1242
      %v1261 = vpop.permute.xlu0 %1260
      %1264 = vset.pattern.permute.xlu0 0
      %1265 = vperm.xlu0 %1264, %v1243
      %v1266 = vpop.permute.xlu0 %1265
      %1269 = vset.pattern.permute.xlu0 0
      %1270 = vperm.xlu0 %1269, %v1244
      %v1271 = vpop.permute.xlu0 %1270
      %1274 = vset.pattern.permute.xlu0 0
      %1275 = vperm.xlu0 %1274, %v1245
      %v1276 = vpop.permute.xlu0 %1275
      %1279 = vset.pattern.permute.xlu0 0
      %1280 = vperm.xlu0 %1279, %v1246
      %v1281 = vpop.permute.xlu0 %1280
      %1284 = vset.pattern.permute.xlu0 0
      %1285 = vperm.xlu0 %1284, %v1247
      %v1286 = vpop.permute.xlu0 %1285
      %v1288 = vmul.f32 %v1076, %v1251
      %v1289 = vmul.f32 %v1221, %v1251
      %v1290 = vmul.f32 %v1078, %v1256
      %v1291 = vmul.f32 %v1223, %v1256
      %v1292 = vmul.f32 %v1081, %v1261
      %v1293 = vmul.f32 %v1226, %v1261
      %v1294 = vmul.f32 %v1083, %v1266
      %v1295 = vmul.f32 %v1228, %v1266
      %v1296 = vmul.f32 %v1086, %v1271
      %v1297 = vmul.f32 %v1231, %v1271
      %v1298 = vmul.f32 %v1088, %v1276
      %v1299 = vmul.f32 %v1233, %v1276
      %v1300 = vmul.f32 %v1091, %v1281
      %v1301 = vmul.f32 %v1236, %v1281
      %v1302 = vmul.f32 %v1093, %v1286
      %v1303 = vmul.f32 %v1238, %v1286
      %v1304 = vld [vmem:[%s5] sm:$0xff]
      %v1305 = vld [vmem:[%s5 + $0x8] sm:$0xff]
      %v1306 = vld [vmem:[%s5 + $0x10] sm:$0xff]
      %v1307 = vld [vmem:[%s5 + $0x18] sm:$0xff]
      %v1308 = vld [vmem:[%s5 + $0x20] sm:$0xff]
      %v1309 = vld [vmem:[%s5 + $0x28] sm:$0xff]
      %v1310 = vld [vmem:[%s5 + $0x30] sm:$0xff]
      %v1311 = vld [vmem:[%s5 + $0x38] sm:$0xff]
      %1313 = vset.pattern.permute.xlu0 0
      %1314 = vperm.xlu0 %1313, %v1304
      %v1315 = vpop.permute.xlu0 %1314
      %1318 = vset.pattern.permute.xlu0 0
      %1319 = vperm.xlu0 %1318, %v1305
      %v1320 = vpop.permute.xlu0 %1319
      %1323 = vset.pattern.permute.xlu0 0
      %1324 = vperm.xlu0 %1323, %v1306
      %v1325 = vpop.permute.xlu0 %1324
      %1328 = vset.pattern.permute.xlu0 0
      %1329 = vperm.xlu0 %1328, %v1307
      %v1330 = vpop.permute.xlu0 %1329
      %1333 = vset.pattern.permute.xlu0 0
      %1334 = vperm.xlu0 %1333, %v1308
      %v1335 = vpop.permute.xlu0 %1334
      %1338 = vset.pattern.permute.xlu0 0
      %1339 = vperm.xlu0 %1338, %v1309
      %v1340 = vpop.permute.xlu0 %1339
      %1343 = vset.pattern.permute.xlu0 0
      %1344 = vperm.xlu0 %1343, %v1310
      %v1345 = vpop.permute.xlu0 %1344
      %1348 = vset.pattern.permute.xlu0 0
      %1349 = vperm.xlu0 %1348, %v1311
      %v1350 = vpop.permute.xlu0 %1349
      %v1352 = vadd.f32 %v1288, %v1315
      %v1353 = vadd.f32 %v1289, %v1315
      %v1354 = vadd.f32 %v1290, %v1320
      %v1355 = vadd.f32 %v1291, %v1320
      %v1356 = vadd.f32 %v1292, %v1325
      %v1357 = vadd.f32 %v1293, %v1325
      %v1358 = vadd.f32 %v1294, %v1330
      %v1359 = vadd.f32 %v1295, %v1330
      %v1360 = vadd.f32 %v1296, %v1335
      %v1361 = vadd.f32 %v1297, %v1335
      %v1362 = vadd.f32 %v1298, %v1340
      %v1363 = vadd.f32 %v1299, %v1340
      %v1364 = vadd.f32 %v1300, %v1345
      %v1365 = vadd.f32 %v1301, %v1345
      %v1366 = vadd.f32 %v1302, %v1350
      %v1367 = vadd.f32 %v1303, %v1350
      %v1368 = vmax.f32 %v1352, 0.0
      %v1369 = vmax.f32 %v1353, 0.0
      %v1370 = vmax.f32 %v1354, 0.0
      %v1371 = vmax.f32 %v1355, 0.0
      %v1372 = vmax.f32 %v1356, 0.0
      %v1373 = vmax.f32 %v1357, 0.0
      %v1374 = vmax.f32 %v1358, 0.0
      %v1375 = vmax.f32 %v1359, 0.0
      %v1376 = vmax.f32 %v1360, 0.0
      %v1377 = vmax.f32 %v1361, 0.0
      %v1378 = vmax.f32 %v1362, 0.0
      %v1379 = vmax.f32 %v1363, 0.0
      %v1380 = vmax.f32 %v1364, 0.0
      %v1381 = vmax.f32 %v1365, 0.0
      %v1382 = vmax.f32 %v1366, 0.0
      %v1383 = vmax.f32 %v1367, 0.0
      %1384 = vst [vmem:[#allocation2] sm:$0xff] %v1368
      %1385 = vst [vmem:[#allocation2 + $0x8] sm:$0xff] %v1369
      %1386 = vst [vmem:[#allocation2 + $0x10] sm:$0xff] %v1370
      %1387 = vst [vmem:[#allocation2 + $0x18] sm:$0xff] %v1371
      %1388 = vst [vmem:[#allocation2 + $0x20] sm:$0xff] %v1372
      %1389 = vst [vmem:[#allocation2 + $0x28] sm:$0xff] %v1373
      %1390 = vst [vmem:[#allocation2 + $0x30] sm:$0xff] %v1374
      %1391 = vst [vmem:[#allocation2 + $0x38] sm:$0xff] %v1375
      %1392 = vst [vmem:[#allocation2 + $0x40] sm:$0xff] %v1376
      %1393 = vst [vmem:[#allocation2 + $0x48] sm:$0xff] %v1377
      %1394 = vst [vmem:[#allocation2 + $0x50] sm:$0xff] %v1378
      %1395 = vst [vmem:[#allocation2 + $0x58] sm:$0xff] %v1379
      %1396 = vst [vmem:[#allocation2 + $0x60] sm:$0xff] %v1380
      %1397 = vst [vmem:[#allocation2 + $0x68] sm:$0xff] %v1381
      %1398 = vst [vmem:[#allocation2 + $0x70] sm:$0xff] %v1382
      %1399 = vst [vmem:[#allocation2 + $0x78] sm:$0xff] %v1383
      %v1400 = vadd.f32 %v1368, %v1369
      %1401 = vadd.xlane.f32.xlu0 %v1400
      %v1402 = vpop.xlane.xlu0 %1401
      %v1403 = vadd.f32 %v1370, %v1371
      %1404 = vadd.xlane.f32.xlu0 %v1403
      %v1405 = vpop.xlane.xlu0 %1404
      %v1406 = vadd.f32 %v1372, %v1373
      %1407 = vadd.xlane.f32.xlu0 %v1406
      %v1408 = vpop.xlane.xlu0 %1407
      %v1409 = vadd.f32 %v1374, %v1375
      %1410 = vadd.xlane.f32.xlu0 %v1409
      %v1411 = vpop.xlane.xlu0 %1410
      %v1412 = vadd.f32 %v1376, %v1377
      %1413 = vadd.xlane.f32.xlu0 %v1412
      %v1414 = vpop.xlane.xlu0 %1413
      %v1415 = vadd.f32 %v1378, %v1379
      %1416 = vadd.xlane.f32.xlu0 %v1415
      %v1417 = vpop.xlane.xlu0 %1416
      %v1418 = vadd.f32 %v1380, %v1381
      %1419 = vadd.xlane.f32.xlu0 %v1418
      %v1420 = vpop.xlane.xlu0 %1419
      %v1421 = vadd.f32 %v1382, %v1383
      %1422 = vadd.xlane.f32.xlu0 %v1421
      %v1423 = vpop.xlane.xlu0 %1422
      %v1424 = vrcp.pop 256.0
      %v1425 = vmul.f32 256.0, %v1424
      %v1426 = vsub.f32 1.0, %v1425
      %v1427 = vmul.f32 %v1424, %v1426
      %v1428 = vadd.f32 %v1424, %v1427
      %vm1429 = vweird.f32 %v1424
      %v1430 = vsel %vm1429, %v1424, %v1428
      %v1431 = vmul.f32 %v1402, %v1430
      %v1432 = vmul.f32 %v1405, %v1430
      %v1433 = vmul.f32 %v1408, %v1430
      %v1434 = vmul.f32 %v1411, %v1430
      %v1435 = vmul.f32 %v1414, %v1430
      %v1436 = vmul.f32 %v1417, %v1430
      %v1437 = vmul.f32 %v1420, %v1430
      %v1438 = vmul.f32 %v1423, %v1430
      %v1439 = vld [vmem:[%s3] sm:$0xff]
      %v1440 = vld [vmem:[%s3 + $0x8] sm:$0xff]
      %v1441 = vld [vmem:[%s3 + $0x10] sm:$0xff]
      %v1442 = vld [vmem:[%s3 + $0x18] sm:$0xff]
      %v1443 = vld [vmem:[%s3 + $0x20] sm:$0xff]
      %v1444 = vld [vmem:[%s3 + $0x28] sm:$0xff]
      %v1445 = vld [vmem:[%s3 + $0x30] sm:$0xf]
      %v1446 = vld [vmem:[%s3 + $0x34] sm:$0xff]
      %v1447 = vld [vmem:[%s3 + $0x3c] sm:$0xff]
      %v1448 = vld [vmem:[%s3 + $0x44] sm:$0xff]
      %v1449 = vld [vmem:[%s3 + $0x4c] sm:$0xff]
      %v1450 = vld [vmem:[%s3 + $0x54] sm:$0xff]
      %v1451 = vld [vmem:[%s3 + $0x5c] sm:$0xff]
      %v1452 = vld [vmem:[%s3 + $0x64] sm:$0xf]
      %v1453 = vld [vmem:[%s3 + $0x68] sm:$0xff]
      %v1454 = vld [vmem:[%s3 + $0x70] sm:$0xff]
      %v1455 = vld [vmem:[%s3 + $0x78] sm:$0xff]
      %v1456 = vld [vmem:[%s3 + $0x80] sm:$0xff]
      %v1457 = vld [vmem:[%s3 + $0x88] sm:$0xff]
      %v1458 = vld [vmem:[%s3 + $0x90] sm:$0xff]
      %v1459 = vld [vmem:[%s3 + $0x98] sm:$0xf]
      %v1460 = vld [vmem:[%s3 + $0x9c] sm:$0xff]
      %v1461 = vld [vmem:[%s3 + $0xa4] sm:$0xff]
      %v1462 = vld [vmem:[%s3 + $0xac] sm:$0xff]
      %v1463 = vld [vmem:[%s3 + $0xb4] sm:$0xff]
      %v1464 = vld [vmem:[%s3 + $0xbc] sm:$0xff]
      %v1465 = vld [vmem:[%s3 + $0xc4] sm:$0xff]
      %v1466 = vld [vmem:[%s3 + $0xcc] sm:$0xf]
      %v1467 = vld [vmem:[%s3 + $0xd0] sm:$0xff]
      %v1468 = vld [vmem:[%s3 + $0xd8] sm:$0xff]
      %v1469 = vld [vmem:[%s3 + $0xe0] sm:$0xff]
      %v1470 = vld [vmem:[%s3 + $0xe8] sm:$0xff]
      %v1471 = vld [vmem:[%s3 + $0xf0] sm:$0xff]
      %v1472 = vld [vmem:[%s3 + $0xf8] sm:$0xff]
      %v1473 = vld [vmem:[%s3 + $0x100] sm:$0xf]
      %v1474 = vld [vmem:[%s3 + $0x104] sm:$0xff]
      %v1475 = vld [vmem:[%s3 + $0x10c] sm:$0xff]
      %v1476 = vld [vmem:[%s3 + $0x114] sm:$0xff]
      %v1477 = vld [vmem:[%s3 + $0x11c] sm:$0xff]
      %v1478 = vld [vmem:[%s3 + $0x124] sm:$0xff]
      %v1479 = vld [vmem:[%s3 + $0x12c] sm:$0xff]
      %v1480 = vld [vmem:[%s3 + $0x134] sm:$0xf]
      %v1481 = vld [vmem:[%s3 + $0x138] sm:$0xff]
      %v1482 = vld [vmem:[%s3 + $0x140] sm:$0xff]
      %v1483 = vld [vmem:[%s3 + $0x148] sm:$0xff]
      %v1484 = vld [vmem:[%s3 + $0x150] sm:$0xff]
      %v1485 = vld [vmem:[%s3 + $0x158] sm:$0xff]
      %v1486 = vld [vmem:[%s3 + $0x160] sm:$0xff]
      %v1487 = vld [vmem:[%s3 + $0x168] sm:$0xf]
      %v1488 = vld [vmem:[%s3 + $0x16c] sm:$0xff]
      %v1489 = vld [vmem:[%s3 + $0x174] sm:$0xff]
      %v1490 = vld [vmem:[%s3 + $0x17c] sm:$0xff]
      %v1491 = vld [vmem:[%s3 + $0x184] sm:$0xff]
      %v1492 = vld [vmem:[%s3 + $0x18c] sm:$0xff]
      %v1493 = vld [vmem:[%s3 + $0x194] sm:$0xff]
      %v1494 = vld [vmem:[%s3 + $0x19c] sm:$0xf]
      %v1495 = vld [vmem:[%s374] sm:$0xff]
      %v1496 = vld [vmem:[%s374 + $0x8] sm:$0xff]
      %v1497 = vld [vmem:[%s374 + $0x10] sm:$0xff]
      %v1498 = vld [vmem:[%s374 + $0x18] sm:$0xff]
      %v1499 = vld [vmem:[%s374 + $0x20] sm:$0xff]
      %v1500 = vld [vmem:[%s374 + $0x28] sm:$0xff]
      %v1501 = vld [vmem:[%s374 + $0x30] sm:$0xff]
      %v1502 = vld [vmem:[%s374 + $0x38] sm:$0xff]
      %v1503 = vld [vmem:[%s374 + $0x40] sm:$0xff]
      %v1504 = vld [vmem:[%s374 + $0x48] sm:$0xff]
      %v1505 = vld [vmem:[%s374 + $0x50] sm:$0xff]
      %v1506 = vld [vmem:[%s374 + $0x58] sm:$0xff]
      %v1507 = vld [vmem:[%s374 + $0x60] sm:$0xff]
      %v1508 = vld [vmem:[%s374 + $0x68] sm:$0xff]
      %v1509 = vld [vmem:[%s374 + $0x70] sm:$0xff]
      %v1510 = vld [vmem:[%s374 + $0x78] sm:$0xff]
      %v1511 = vld [vmem:[%s374 + $0x80] sm:$0xff]
      %v1512 = vld [vmem:[%s374 + $0x88] sm:$0xff]
      %v1513 = vld [vmem:[%s374 + $0x90] sm:$0xff]
      %v1514 = vld [vmem:[%s374 + $0x98] sm:$0xff]
      %v1515 = vld [vmem:[%s374 + $0xa0] sm:$0xff]
      %v1516 = vld [vmem:[%s374 + $0xa8] sm:$0xff]
      %v1517 = vld [vmem:[%s374 + $0xb0] sm:$0xff]
      %v1518 = vld [vmem:[%s374 + $0xb8] sm:$0xff]
      %v1519 = vld [vmem:[%s374 + $0xc0] sm:$0xff]
      %v1520 = vld [vmem:[%s374 + $0xc8] sm:$0xff]
      %v1521 = vld [vmem:[%s374 + $0xd0] sm:$0xff]
      %v1522 = vld [vmem:[%s374 + $0xd8] sm:$0xff]
      %v1523 = vld [vmem:[%s374 + $0xe0] sm:$0xff]
      %v1524 = vld [vmem:[%s374 + $0xe8] sm:$0xff]
      %v1525 = vld [vmem:[%s374 + $0xf0] sm:$0xff]
      %v1526 = vld [vmem:[%s374 + $0xf8] sm:$0xff]
      %v1527 = vld [vmem:[%s374 + $0x100] sm:$0xff]
      %v1528 = vld [vmem:[%s374 + $0x108] sm:$0xff]
      %v1529 = vld [vmem:[%s374 + $0x110] sm:$0xff]
      %v1530 = vld [vmem:[%s374 + $0x118] sm:$0xff]
      %v1531 = vld [vmem:[%s374 + $0x120] sm:$0xff]
      %v1532 = vld [vmem:[%s374 + $0x128] sm:$0xff]
      %v1533 = vld [vmem:[%s374 + $0x130] sm:$0xff]
      %v1534 = vld [vmem:[%s374 + $0x138] sm:$0xff]
      %v1535 = vld [vmem:[%s374 + $0x140] sm:$0xff]
      %v1536 = vld [vmem:[%s374 + $0x148] sm:$0xff]
      %v1537 = vld [vmem:[%s374 + $0x150] sm:$0xff]
      %v1538 = vld [vmem:[%s374 + $0x158] sm:$0xff]
      %v1539 = vld [vmem:[%s374 + $0x160] sm:$0xff]
      %v1540 = vld [vmem:[%s374 + $0x168] sm:$0xff]
      %v1541 = vld [vmem:[%s374 + $0x170] sm:$0xff]
      %v1542 = vld [vmem:[%s374 + $0x178] sm:$0xff]
      %v1543 = vld [vmem:[%s374 + $0x180] sm:$0xff]
      %v1544 = vld [vmem:[%s374 + $0x188] sm:$0xff]
      %v1545 = vld [vmem:[%s374 + $0x190] sm:$0xff]
      %v1546 = vld [vmem:[%s374 + $0x198] sm:$0xff]
      %v1547 = vld [vmem:[%s374 + $0x1a0] sm:$0xff]
      %v1548 = vld [vmem:[%s374 + $0x1a8] sm:$0xff]
      %v1549 = vld [vmem:[%s374 + $0x1b0] sm:$0xff]
      %v1550 = vld [vmem:[%s374 + $0x1b8] sm:$0xff]
      %v1551 = vld [vmem:[%s374 + $0x1c0] sm:$0xff]
      %v1552 = vld [vmem:[%s374 + $0x1c8] sm:$0xff]
      %v1553 = vld [vmem:[%s374 + $0x1d0] sm:$0xff]
      %v1554 = vld [vmem:[%s374 + $0x1d8] sm:$0xff]
      %v1555 = vld [vmem:[%s374 + $0x1e0] sm:$0xff]
      %v1556 = vld [vmem:[%s374 + $0x1e8] sm:$0xff]
      %v1557 = vld [vmem:[%s374 + $0x1f0] sm:$0xff]
      %v1558 = vld [vmem:[%s374 + $0x1f8] sm:$0xff]
      %v1559 = vld [vmem:[%s374 + $0x200] sm:$0xff]
      %v1560 = vld [vmem:[%s374 + $0x208] sm:$0xff]
      %v1561 = vld [vmem:[%s374 + $0x210] sm:$0xff]
      %v1562 = vld [vmem:[%s374 + $0x218] sm:$0xff]
      %v1563 = vld [vmem:[%s374 + $0x220] sm:$0xff]
      %v1564 = vld [vmem:[%s374 + $0x228] sm:$0xff]
      %v1565 = vld [vmem:[%s374 + $0x230] sm:$0xff]
      %v1566 = vld [vmem:[%s374 + $0x238] sm:$0xff]
      %v1567 = vld [vmem:[%s374 + $0x240] sm:$0xff]
      %v1568 = vld [vmem:[%s374 + $0x248] sm:$0xff]
      %v1569 = vld [vmem:[%s374 + $0x250] sm:$0xff]
      %v1570 = vld [vmem:[%s374 + $0x258] sm:$0xff]
      %v1571 = vld [vmem:[%s374 + $0x260] sm:$0xff]
      %v1572 = vld [vmem:[%s374 + $0x268] sm:$0xff]
      %v1573 = vld [vmem:[%s374 + $0x270] sm:$0xff]
      %v1574 = vld [vmem:[%s374 + $0x278] sm:$0xff]
      %v1575 = vld [vmem:[%s374 + $0x280] sm:$0xff]
      %v1576 = vld [vmem:[%s374 + $0x288] sm:$0xff]
      %v1577 = vld [vmem:[%s374 + $0x290] sm:$0xff]
      %v1578 = vld [vmem:[%s374 + $0x298] sm:$0xff]
      %v1579 = vld [vmem:[%s374 + $0x2a0] sm:$0xff]
      %v1580 = vld [vmem:[%s374 + $0x2a8] sm:$0xff]
      %v1581 = vld [vmem:[%s374 + $0x2b0] sm:$0xff]
      %v1582 = vld [vmem:[%s374 + $0x2b8] sm:$0xff]
      %v1583 = vld [vmem:[%s374 + $0x2c0] sm:$0xff]
      %v1584 = vld [vmem:[%s374 + $0x2c8] sm:$0xff]
      %v1585 = vld [vmem:[%s374 + $0x2d0] sm:$0xff]
      %v1586 = vld [vmem:[%s374 + $0x2d8] sm:$0xff]
      %v1587 = vld [vmem:[%s374 + $0x2e0] sm:$0xff]
      %v1588 = vld [vmem:[%s374 + $0x2e8] sm:$0xff]
      %v1589 = vld [vmem:[%s374 + $0x2f0] sm:$0xff]
      %v1590 = vld [vmem:[%s374 + $0x2f8] sm:$0xff]
      %v1591 = vld [vmem:[%s374 + $0x300] sm:$0xff]
      %v1592 = vld [vmem:[%s374 + $0x308] sm:$0xff]
      %v1593 = vld [vmem:[%s374 + $0x310] sm:$0xff]
      %v1594 = vld [vmem:[%s374 + $0x318] sm:$0xff]
      %v1595 = vld [vmem:[%s374 + $0x320] sm:$0xff]
      %v1596 = vld [vmem:[%s374 + $0x328] sm:$0xff]
      %v1597 = vld [vmem:[%s374 + $0x330] sm:$0xff]
      %v1598 = vld [vmem:[%s374 + $0x338] sm:$0xff]
      %v1599 = vld [vmem:[%s374 + $0x340] sm:$0xff]
      %v1600 = vld [vmem:[%s374 + $0x348] sm:$0xff]
      %v1601 = vld [vmem:[%s374 + $0x350] sm:$0xff]
      %v1602 = vld [vmem:[%s374 + $0x358] sm:$0xff]
      %v1603 = vld [vmem:[%s374 + $0x360] sm:$0xff]
      %v1604 = vld [vmem:[%s374 + $0x368] sm:$0xff]
      %v1605 = vld [vmem:[%s374 + $0x370] sm:$0xff]
      %v1606 = vld [vmem:[%s374 + $0x378] sm:$0xff]
      %v1607 = vld [vmem:[%s374 + $0x380] sm:$0xff]
      %v1608 = vld [vmem:[%s374 + $0x388] sm:$0xff]
      %v1609 = vld [vmem:[%s374 + $0x390] sm:$0xff]
      %v1610 = vld [vmem:[%s374 + $0x398] sm:$0xff]
      %v1611 = vld [vmem:[%s374 + $0x3a0] sm:$0xff]
      %v1612 = vld [vmem:[%s374 + $0x3a8] sm:$0xff]
      %v1613 = vld [vmem:[%s374 + $0x3b0] sm:$0xff]
      %v1614 = vld [vmem:[%s374 + $0x3b8] sm:$0xff]
      %v1615 = vld [vmem:[%s374 + $0x3c0] sm:$0xff]
      %v1616 = vld [vmem:[%s374 + $0x3c8] sm:$0xff]
      %v1617 = vld [vmem:[%s374 + $0x3d0] sm:$0xff]
      %v1618 = vld [vmem:[%s374 + $0x3d8] sm:$0xff]
      %v1619 = vld [vmem:[%s374 + $0x3e0] sm:$0xff]
      %v1620 = vld [vmem:[%s374 + $0x3e8] sm:$0xff]
      %v1621 = vld [vmem:[%s374 + $0x3f0] sm:$0xff]
      %v1622 = vld [vmem:[%s374 + $0x3f8] sm:$0xff]
      %v1623 = vld [vmem:[%s374 + $0x400] sm:$0xff]
      %v1624 = vld [vmem:[%s374 + $0x408] sm:$0xff]
      %v1625 = vld [vmem:[%s374 + $0x410] sm:$0xff]
      %v1626 = vld [vmem:[%s374 + $0x418] sm:$0xff]
      %v1627 = vld [vmem:[%s374 + $0x420] sm:$0xff]
      %v1628 = vld [vmem:[%s374 + $0x428] sm:$0xff]
      %v1629 = vld [vmem:[%s374 + $0x430] sm:$0xff]
      %v1630 = vld [vmem:[%s374 + $0x438] sm:$0xff]
      %v1631 = vld [vmem:[%s374 + $0x440] sm:$0xff]
      %v1632 = vld [vmem:[%s374 + $0x448] sm:$0xff]
      %v1633 = vld [vmem:[%s374 + $0x450] sm:$0xff]
      %v1634 = vld [vmem:[%s374 + $0x458] sm:$0xff]
      %v1635 = vld [vmem:[%s374 + $0x460] sm:$0xff]
      %v1636 = vld [vmem:[%s374 + $0x468] sm:$0xff]
      %v1637 = vld [vmem:[%s374 + $0x470] sm:$0xff]
      %v1638 = vld [vmem:[%s374 + $0x478] sm:$0xff]
      %v1639 = vld [vmem:[%s374 + $0x480] sm:$0xff]
      %v1640 = vld [vmem:[%s374 + $0x488] sm:$0xff]
      %v1641 = vld [vmem:[%s374 + $0x490] sm:$0xff]
      %v1642 = vld [vmem:[%s374 + $0x498] sm:$0xff]
      %v1643 = vld [vmem:[%s374 + $0x4a0] sm:$0xff]
      %v1644 = vld [vmem:[%s374 + $0x4a8] sm:$0xff]
      %v1645 = vld [vmem:[%s374 + $0x4b0] sm:$0xff]
      %v1646 = vld [vmem:[%s374 + $0x4b8] sm:$0xff]
      %v1647 = vld [vmem:[%s374 + $0x4c0] sm:$0xff]
      %v1648 = vld [vmem:[%s374 + $0x4c8] sm:$0xff]
      %v1649 = vld [vmem:[%s374 + $0x4d0] sm:$0xff]
      %v1650 = vld [vmem:[%s374 + $0x4d8] sm:$0xff]
      %v1651 = vld [vmem:[%s374 + $0x4e0] sm:$0xff]
      %v1652 = vld [vmem:[%s374 + $0x4e8] sm:$0xff]
      %v1653 = vld [vmem:[%s374 + $0x4f0] sm:$0xff]
      %v1654 = vld [vmem:[%s374 + $0x4f8] sm:$0xff]
      %v1655 = vld [vmem:[%s374 + $0x500] sm:$0xff]
      %v1656 = vld [vmem:[%s374 + $0x508] sm:$0xff]
      %v1657 = vld [vmem:[%s374 + $0x510] sm:$0xff]
      %v1658 = vld [vmem:[%s374 + $0x518] sm:$0xff]
      %v1659 = vld [vmem:[%s374 + $0x520] sm:$0xff]
      %v1660 = vld [vmem:[%s374 + $0x528] sm:$0xff]
      %v1661 = vld [vmem:[%s374 + $0x530] sm:$0xff]
      %v1662 = vld [vmem:[%s374 + $0x538] sm:$0xff]
      %v1663 = vld [vmem:[%s374 + $0x540] sm:$0xff]
      %v1664 = vld [vmem:[%s374 + $0x548] sm:$0xff]
      %v1665 = vld [vmem:[%s374 + $0x550] sm:$0xff]
      %v1666 = vld [vmem:[%s374 + $0x558] sm:$0xff]
      %v1667 = vld [vmem:[%s374 + $0x560] sm:$0xff]
      %v1668 = vld [vmem:[%s374 + $0x568] sm:$0xff]
      %v1669 = vld [vmem:[%s374 + $0x570] sm:$0xff]
      %v1670 = vld [vmem:[%s374 + $0x578] sm:$0xff]
      %v1671 = vld [vmem:[%s374 + $0x580] sm:$0xff]
      %v1672 = vld [vmem:[%s374 + $0x588] sm:$0xff]
      %v1673 = vld [vmem:[%s374 + $0x590] sm:$0xff]
      %v1674 = vld [vmem:[%s374 + $0x598] sm:$0xff]
      %v1675 = vld [vmem:[%s374 + $0x5a0] sm:$0xff]
      %v1676 = vld [vmem:[%s374 + $0x5a8] sm:$0xff]
      %v1677 = vld [vmem:[%s374 + $0x5b0] sm:$0xff]
      %v1678 = vld [vmem:[%s374 + $0x5b8] sm:$0xff]
      %v1679 = vld [vmem:[%s374 + $0x5c0] sm:$0xff]
      %v1680 = vld [vmem:[%s374 + $0x5c8] sm:$0xff]
      %v1681 = vld [vmem:[%s374 + $0x5d0] sm:$0xff]
      %v1682 = vld [vmem:[%s374 + $0x5d8] sm:$0xff]
      %v1683 = vld [vmem:[%s374 + $0x5e0] sm:$0xff]
      %v1684 = vld [vmem:[%s374 + $0x5e8] sm:$0xff]
      %v1685 = vld [vmem:[%s374 + $0x5f0] sm:$0xff]
      %v1686 = vld [vmem:[%s374 + $0x5f8] sm:$0xff]
      %v1687 = vld [vmem:[%s374 + $0x600] sm:$0xff]
      %v1688 = vld [vmem:[%s374 + $0x608] sm:$0xff]
      %v1689 = vld [vmem:[%s374 + $0x610] sm:$0xff]
      %v1690 = vld [vmem:[%s374 + $0x618] sm:$0xff]
      %v1691 = vld [vmem:[%s374 + $0x620] sm:$0xff]
      %v1692 = vld [vmem:[%s374 + $0x628] sm:$0xff]
      %v1693 = vld [vmem:[%s374 + $0x630] sm:$0xff]
      %v1694 = vld [vmem:[%s374 + $0x638] sm:$0xff]
      %v1751 = vunpack.c.l.b16 %v1439
      %v1752 = vunpack.c.h.b16 %v1439
      %v1753 = vunpack.c.l.b16 %v1440
      %v1754 = vunpack.c.h.b16 %v1440
      %v1755 = vunpack.c.l.b16 %v1441
      %v1756 = vunpack.c.h.b16 %v1441
      %v1757 = vunpack.c.l.b16 %v1442
      %v1758 = vunpack.c.h.b16 %v1442
      %v1759 = vunpack.c.l.b16 %v1443
      %v1760 = vunpack.c.h.b16 %v1443
      %v1761 = vunpack.c.l.b16 %v1444
      %v1762 = vunpack.c.h.b16 %v1444
      %v1763 = vunpack.c.l.b16 %v1445
      %v1764 = vunpack.c.l.b16 %v1446
      %v1765 = vunpack.c.h.b16 %v1446
      %v1766 = vunpack.c.l.b16 %v1447
      %v1767 = vunpack.c.h.b16 %v1447
      %v1768 = vunpack.c.l.b16 %v1448
      %v1769 = vunpack.c.h.b16 %v1448
      %v1770 = vunpack.c.l.b16 %v1449
      %v1771 = vunpack.c.h.b16 %v1449
      %v1772 = vunpack.c.l.b16 %v1450
      %v1773 = vunpack.c.h.b16 %v1450
      %v1774 = vunpack.c.l.b16 %v1451
      %v1775 = vunpack.c.h.b16 %v1451
      %v1776 = vunpack.c.l.b16 %v1452
      %v1777 = vunpack.c.l.b16 %v1453
      %v1778 = vunpack.c.h.b16 %v1453
      %v1779 = vunpack.c.l.b16 %v1454
      %v1780 = vunpack.c.h.b16 %v1454
      %v1781 = vunpack.c.l.b16 %v1455
      %v1782 = vunpack.c.h.b16 %v1455
      %v1783 = vunpack.c.l.b16 %v1456
      %v1784 = vunpack.c.h.b16 %v1456
      %v1785 = vunpack.c.l.b16 %v1457
      %v1786 = vunpack.c.h.b16 %v1457
      %v1787 = vunpack.c.l.b16 %v1458
      %v1788 = vunpack.c.h.b16 %v1458
      %v1789 = vunpack.c.l.b16 %v1459
      %v1790 = vunpack.c.l.b16 %v1460
      %v1791 = vunpack.c.h.b16 %v1460
      %v1792 = vunpack.c.l.b16 %v1461
      %v1793 = vunpack.c.h.b16 %v1461
      %v1794 = vunpack.c.l.b16 %v1462
      %v1795 = vunpack.c.h.b16 %v1462
      %v1796 = vunpack.c.l.b16 %v1463
      %v1797 = vunpack.c.h.b16 %v1463
      %v1798 = vunpack.c.l.b16 %v1464
      %v1799 = vunpack.c.h.b16 %v1464
      %v1800 = vunpack.c.l.b16 %v1465
      %v1801 = vunpack.c.h.b16 %v1465
      %v1802 = vunpack.c.l.b16 %v1466
      %v1803 = vunpack.c.l.b16 %v1467
      %v1804 = vunpack.c.h.b16 %v1467
      %v1805 = vunpack.c.l.b16 %v1468
      %v1806 = vunpack.c.h.b16 %v1468
      %v1807 = vunpack.c.l.b16 %v1469
      %v1808 = vunpack.c.h.b16 %v1469
      %v1809 = vunpack.c.l.b16 %v1470
      %v1810 = vunpack.c.h.b16 %v1470
      %v1811 = vunpack.c.l.b16 %v1471
      %v1812 = vunpack.c.h.b16 %v1471
      %v1813 = vunpack.c.l.b16 %v1472
      %v1814 = vunpack.c.h.b16 %v1472
      %v1815 = vunpack.c.l.b16 %v1473
      %v1816 = vunpack.c.l.b16 %v1474
      %v1817 = vunpack.c.h.b16 %v1474
      %v1818 = vunpack.c.l.b16 %v1475
      %v1819 = vunpack.c.h.b16 %v1475
      %v1820 = vunpack.c.l.b16 %v1476
      %v1821 = vunpack.c.h.b16 %v1476
      %v1822 = vunpack.c.l.b16 %v1477
      %v1823 = vunpack.c.h.b16 %v1477
      %v1824 = vunpack.c.l.b16 %v1478
      %v1825 = vunpack.c.h.b16 %v1478
      %v1826 = vunpack.c.l.b16 %v1479
      %v1827 = vunpack.c.h.b16 %v1479
      %v1828 = vunpack.c.l.b16 %v1480
      %v1829 = vunpack.c.l.b16 %v1481
      %v1830 = vunpack.c.h.b16 %v1481
      %v1831 = vunpack.c.l.b16 %v1482
      %v1832 = vunpack.c.h.b16 %v1482
      %v1833 = vunpack.c.l.b16 %v1483
      %v1834 = vunpack.c.h.b16 %v1483
      %v1835 = vunpack.c.l.b16 %v1484
      %v1836 = vunpack.c.h.b16 %v1484
      %v1837 = vunpack.c.l.b16 %v1485
      %v1838 = vunpack.c.h.b16 %v1485
      %v1839 = vunpack.c.l.b16 %v1486
      %v1840 = vunpack.c.h.b16 %v1486
      %v1841 = vunpack.c.l.b16 %v1487
      %v1842 = vunpack.c.l.b16 %v1488
      %v1843 = vunpack.c.h.b16 %v1488
      %v1844 = vunpack.c.l.b16 %v1489
      %v1845 = vunpack.c.h.b16 %v1489
      %v1846 = vunpack.c.l.b16 %v1490
      %v1847 = vunpack.c.h.b16 %v1490
      %v1848 = vunpack.c.l.b16 %v1491
      %v1849 = vunpack.c.h.b16 %v1491
      %v1850 = vunpack.c.l.b16 %v1492
      %v1851 = vunpack.c.h.b16 %v1492
      %v1852 = vunpack.c.l.b16 %v1493
      %v1853 = vunpack.c.h.b16 %v1493
      %v1854 = vunpack.c.l.b16 %v1494
      %v1855 = vpack.c.b16 %v1764, %v1751
      %v1856 = vpack.c.b16 %v1765, %v1752
      %v1857 = vpack.c.b16 %v1766, %v1753
      %v1858 = vpack.c.b16 %v1767, %v1754
      %v1859 = vpack.c.b16 %v1768, %v1755
      %v1860 = vpack.c.b16 %v1769, %v1756
      %v1861 = vpack.c.b16 %v1770, %v1757
      %v1862 = vpack.c.b16 %v1771, %v1758
      %v1863 = vpack.c.b16 %v1772, %v1759
      %v1864 = vpack.c.b16 %v1773, %v1760
      %v1865 = vpack.c.b16 %v1774, %v1761
      %v1866 = vpack.c.b16 %v1775, %v1762
      %v1867 = vpack.c.b16 %v1776, %v1763
      %v1868 = vpack.c.b16 %v1790, %v1777
      %v1869 = vpack.c.b16 %v1791, %v1778
      %v1870 = vpack.c.b16 %v1792, %v1779
      %v1871 = vpack.c.b16 %v1793, %v1780
      %v1872 = vpack.c.b16 %v1794, %v1781
      %v1873 = vpack.c.b16 %v1795, %v1782
      %v1874 = vpack.c.b16 %v1796, %v1783
      %v1875 = vpack.c.b16 %v1797, %v1784
      %v1876 = vpack.c.b16 %v1798, %v1785
      %v1877 = vpack.c.b16 %v1799, %v1786
      %v1878 = vpack.c.b16 %v1800, %v1787
      %v1879 = vpack.c.b16 %v1801, %v1788
      %v1880 = vpack.c.b16 %v1802, %v1789
      %v1881 = vpack.c.b16 %v1816, %v1803
      %v1882 = vpack.c.b16 %v1817, %v1804
      %v1883 = vpack.c.b16 %v1818, %v1805
      %v1884 = vpack.c.b16 %v1819, %v1806
      %v1885 = vpack.c.b16 %v1820, %v1807
      %v1886 = vpack.c.b16 %v1821, %v1808
      %v1887 = vpack.c.b16 %v1822, %v1809
      %v1888 = vpack.c.b16 %v1823, %v1810
      %v1889 = vpack.c.b16 %v1824, %v1811
      %v1890 = vpack.c.b16 %v1825, %v1812
      %v1891 = vpack.c.b16 %v1826, %v1813
      %v1892 = vpack.c.b16 %v1827, %v1814
      %v1893 = vpack.c.b16 %v1828, %v1815
      %v1894 = vpack.c.b16 %v1842, %v1829
      %v1895 = vpack.c.b16 %v1843, %v1830
      %v1896 = vpack.c.b16 %v1844, %v1831
      %v1897 = vpack.c.b16 %v1845, %v1832
      %v1898 = vpack.c.b16 %v1846, %v1833
      %v1899 = vpack.c.b16 %v1847, %v1834
      %v1900 = vpack.c.b16 %v1848, %v1835
      %v1901 = vpack.c.b16 %v1849, %v1836
      %v1902 = vpack.c.b16 %v1850, %v1837
      %v1903 = vpack.c.b16 %v1851, %v1838
      %v1904 = vpack.c.b16 %v1852, %v1839
      %v1905 = vpack.c.b16 %v1853, %v1840
      %v1906 = vpack.c.b16 %v1854, %v1841
      %v2155 = vunpack.c.l.b16 %v1495
      %v2156 = vunpack.c.h.b16 %v1495
      %v2157 = vunpack.c.l.b16 %v1496
      %v2158 = vunpack.c.h.b16 %v1496
      %v2159 = vunpack.c.l.b16 %v1497
      %v2160 = vunpack.c.h.b16 %v1497
      %v2161 = vunpack.c.l.b16 %v1498
      %v2162 = vunpack.c.h.b16 %v1498
      %v2163 = vunpack.c.l.b16 %v1499
      %v2164 = vunpack.c.h.b16 %v1499
      %v2165 = vunpack.c.l.b16 %v1500
      %v2166 = vunpack.c.h.b16 %v1500
      %v2167 = vunpack.c.l.b16 %v1501
      %v2168 = vunpack.c.h.b16 %v1501
      %v2169 = vunpack.c.l.b16 %v1502
      %v2170 = vunpack.c.h.b16 %v1502
      %v2171 = vunpack.c.l.b16 %v1503
      %v2172 = vunpack.c.h.b16 %v1503
      %v2173 = vunpack.c.l.b16 %v1504
      %v2174 = vunpack.c.h.b16 %v1504
      %v2175 = vunpack.c.l.b16 %v1505
      %v2176 = vunpack.c.h.b16 %v1505
      %v2177 = vunpack.c.l.b16 %v1506
      %v2178 = vunpack.c.h.b16 %v1506
      %v2179 = vunpack.c.l.b16 %v1507
      %v2180 = vunpack.c.h.b16 %v1507
      %v2181 = vunpack.c.l.b16 %v1508
      %v2182 = vunpack.c.h.b16 %v1508
      %v2183 = vunpack.c.l.b16 %v1509
      %v2184 = vunpack.c.h.b16 %v1509
      %v2185 = vunpack.c.l.b16 %v1510
      %v2186 = vunpack.c.h.b16 %v1510
      %v2187 = vunpack.c.l.b16 %v1511
      %v2188 = vunpack.c.h.b16 %v1511
      %v2189 = vunpack.c.l.b16 %v1512
      %v2190 = vunpack.c.h.b16 %v1512
      %v2191 = vunpack.c.l.b16 %v1513
      %v2192 = vunpack.c.h.b16 %v1513
      %v2193 = vunpack.c.l.b16 %v1514
      %v2194 = vunpack.c.h.b16 %v1514
      %v2195 = vunpack.c.l.b16 %v1515
      %v2196 = vunpack.c.h.b16 %v1515
      %v2197 = vunpack.c.l.b16 %v1516
      %v2198 = vunpack.c.h.b16 %v1516
      %v2199 = vunpack.c.l.b16 %v1517
      %v2200 = vunpack.c.h.b16 %v1517
      %v2201 = vunpack.c.l.b16 %v1518
      %v2202 = vunpack.c.h.b16 %v1518
      %v2203 = vunpack.c.l.b16 %v1519
      %v2204 = vunpack.c.h.b16 %v1519
      %v2205 = vunpack.c.l.b16 %v1520
      %v2206 = vunpack.c.h.b16 %v1520
      %v2207 = vunpack.c.l.b16 %v1521
      %v2208 = vunpack.c.h.b16 %v1521
      %v2209 = vunpack.c.l.b16 %v1522
      %v2210 = vunpack.c.h.b16 %v1522
      %v2211 = vunpack.c.l.b16 %v1523
      %v2212 = vunpack.c.h.b16 %v1523
      %v2213 = vunpack.c.l.b16 %v1524
      %v2214 = vunpack.c.h.b16 %v1524
      %v2215 = vunpack.c.l.b16 %v1525
      %v2216 = vunpack.c.h.b16 %v1525
      %v2217 = vunpack.c.l.b16 %v1526
      %v2218 = vunpack.c.h.b16 %v1526
      %v2219 = vunpack.c.l.b16 %v1527
      %v2220 = vunpack.c.h.b16 %v1527
      %v2221 = vunpack.c.l.b16 %v1528
      %v2222 = vunpack.c.h.b16 %v1528
      %v2223 = vunpack.c.l.b16 %v1529
      %v2224 = vunpack.c.h.b16 %v1529
      %v2225 = vunpack.c.l.b16 %v1530
      %v2226 = vunpack.c.h.b16 %v1530
      %v2227 = vunpack.c.l.b16 %v1531
      %v2228 = vunpack.c.h.b16 %v1531
      %v2229 = vunpack.c.l.b16 %v1532
      %v2230 = vunpack.c.h.b16 %v1532
      %v2231 = vunpack.c.l.b16 %v1533
      %v2232 = vunpack.c.h.b16 %v1533
      %v2233 = vunpack.c.l.b16 %v1534
      %v2234 = vunpack.c.h.b16 %v1534
      %v2235 = vunpack.c.l.b16 %v1535
      %v2236 = vunpack.c.h.b16 %v1535
      %v2237 = vunpack.c.l.b16 %v1536
      %v2238 = vunpack.c.h.b16 %v1536
      %v2239 = vunpack.c.l.b16 %v1537
      %v2240 = vunpack.c.h.b16 %v1537
      %v2241 = vunpack.c.l.b16 %v1538
      %v2242 = vunpack.c.h.b16 %v1538
      %v2243 = vunpack.c.l.b16 %v1539
      %v2244 = vunpack.c.h.b16 %v1539
      %v2245 = vunpack.c.l.b16 %v1540
      %v2246 = vunpack.c.h.b16 %v1540
      %v2247 = vunpack.c.l.b16 %v1541
      %v2248 = vunpack.c.h.b16 %v1541
      %v2249 = vunpack.c.l.b16 %v1542
      %v2250 = vunpack.c.h.b16 %v1542
      %v2251 = vunpack.c.l.b16 %v1543
      %v2252 = vunpack.c.h.b16 %v1543
      %v2253 = vunpack.c.l.b16 %v1544
      %v2254 = vunpack.c.h.b16 %v1544
      %v2255 = vunpack.c.l.b16 %v1545
      %v2256 = vunpack.c.h.b16 %v1545
      %v2257 = vunpack.c.l.b16 %v1546
      %v2258 = vunpack.c.h.b16 %v1546
      %v2259 = vunpack.c.l.b16 %v1547
      %v2260 = vunpack.c.h.b16 %v1547
      %v2261 = vunpack.c.l.b16 %v1548
      %v2262 = vunpack.c.h.b16 %v1548
      %v2263 = vunpack.c.l.b16 %v1549
      %v2264 = vunpack.c.h.b16 %v1549
      %v2265 = vunpack.c.l.b16 %v1550
      %v2266 = vunpack.c.h.b16 %v1550
      %v2267 = vunpack.c.l.b16 %v1551
      %v2268 = vunpack.c.h.b16 %v1551
      %v2269 = vunpack.c.l.b16 %v1552
      %v2270 = vunpack.c.h.b16 %v1552
      %v2271 = vunpack.c.l.b16 %v1553
      %v2272 = vunpack.c.h.b16 %v1553
      %v2273 = vunpack.c.l.b16 %v1554
      %v2274 = vunpack.c.h.b16 %v1554
      %v2275 = vunpack.c.l.b16 %v1555
      %v2276 = vunpack.c.h.b16 %v1555
      %v2277 = vunpack.c.l.b16 %v1556
      %v2278 = vunpack.c.h.b16 %v1556
      %v2279 = vunpack.c.l.b16 %v1557
      %v2280 = vunpack.c.h.b16 %v1557
      %v2281 = vunpack.c.l.b16 %v1558
      %v2282 = vunpack.c.h.b16 %v1558
      %v2283 = vunpack.c.l.b16 %v1559
      %v2284 = vunpack.c.h.b16 %v1559
      %v2285 = vunpack.c.l.b16 %v1560
      %v2286 = vunpack.c.h.b16 %v1560
      %v2287 = vunpack.c.l.b16 %v1561
      %v2288 = vunpack.c.h.b16 %v1561
      %v2289 = vunpack.c.l.b16 %v1562
      %v2290 = vunpack.c.h.b16 %v1562
      %v2291 = vunpack.c.l.b16 %v1563
      %v2292 = vunpack.c.h.b16 %v1563
      %v2293 = vunpack.c.l.b16 %v1564
      %v2294 = vunpack.c.h.b16 %v1564
      %v2295 = vunpack.c.l.b16 %v1565
      %v2296 = vunpack.c.h.b16 %v1565
      %v2297 = vunpack.c.l.b16 %v1566
      %v2298 = vunpack.c.h.b16 %v1566
      %v2299 = vunpack.c.l.b16 %v1567
      %v2300 = vunpack.c.h.b16 %v1567
      %v2301 = vunpack.c.l.b16 %v1568
      %v2302 = vunpack.c.h.b16 %v1568
      %v2303 = vunpack.c.l.b16 %v1569
      %v2304 = vunpack.c.h.b16 %v1569
      %v2305 = vunpack.c.l.b16 %v1570
      %v2306 = vunpack.c.h.b16 %v1570
      %v2307 = vunpack.c.l.b16 %v1571
      %v2308 = vunpack.c.h.b16 %v1571
      %v2309 = vunpack.c.l.b16 %v1572
      %v2310 = vunpack.c.h.b16 %v1572
      %v2311 = vunpack.c.l.b16 %v1573
      %v2312 = vunpack.c.h.b16 %v1573
      %v2313 = vunpack.c.l.b16 %v1574
      %v2314 = vunpack.c.h.b16 %v1574
      %v2315 = vunpack.c.l.b16 %v1575
      %v2316 = vunpack.c.h.b16 %v1575
      %v2317 = vunpack.c.l.b16 %v1576
      %v2318 = vunpack.c.h.b16 %v1576
      %v2319 = vunpack.c.l.b16 %v1577
      %v2320 = vunpack.c.h.b16 %v1577
      %v2321 = vunpack.c.l.b16 %v1578
      %v2322 = vunpack.c.h.b16 %v1578
      %v2323 = vunpack.c.l.b16 %v1579
      %v2324 = vunpack.c.h.b16 %v1579
      %v2325 = vunpack.c.l.b16 %v1580
      %v2326 = vunpack.c.h.b16 %v1580
      %v2327 = vunpack.c.l.b16 %v1581
      %v2328 = vunpack.c.h.b16 %v1581
      %v2329 = vunpack.c.l.b16 %v1582
      %v2330 = vunpack.c.h.b16 %v1582
      %v2331 = vunpack.c.l.b16 %v1583
      %v2332 = vunpack.c.h.b16 %v1583
      %v2333 = vunpack.c.l.b16 %v1584
      %v2334 = vunpack.c.h.b16 %v1584
      %v2335 = vunpack.c.l.b16 %v1585
      %v2336 = vunpack.c.h.b16 %v1585
      %v2337 = vunpack.c.l.b16 %v1586
      %v2338 = vunpack.c.h.b16 %v1586
      %v2339 = vunpack.c.l.b16 %v1587
      %v2340 = vunpack.c.h.b16 %v1587
      %v2341 = vunpack.c.l.b16 %v1588
      %v2342 = vunpack.c.h.b16 %v1588
      %v2343 = vunpack.c.l.b16 %v1589
      %v2344 = vunpack.c.h.b16 %v1589
      %v2345 = vunpack.c.l.b16 %v1590
      %v2346 = vunpack.c.h.b16 %v1590
      %v2347 = vunpack.c.l.b16 %v1591
      %v2348 = vunpack.c.h.b16 %v1591
      %v2349 = vunpack.c.l.b16 %v1592
      %v2350 = vunpack.c.h.b16 %v1592
      %v2351 = vunpack.c.l.b16 %v1593
      %v2352 = vunpack.c.h.b16 %v1593
      %v2353 = vunpack.c.l.b16 %v1594
      %v2354 = vunpack.c.h.b16 %v1594
      %v2355 = vunpack.c.l.b16 %v1595
      %v2356 = vunpack.c.h.b16 %v1595
      %v2357 = vunpack.c.l.b16 %v1596
      %v2358 = vunpack.c.h.b16 %v1596
      %v2359 = vunpack.c.l.b16 %v1597
      %v2360 = vunpack.c.h.b16 %v1597
      %v2361 = vunpack.c.l.b16 %v1598
      %v2362 = vunpack.c.h.b16 %v1598
      %v2363 = vunpack.c.l.b16 %v1599
      %v2364 = vunpack.c.h.b16 %v1599
      %v2365 = vunpack.c.l.b16 %v1600
      %v2366 = vunpack.c.h.b16 %v1600
      %v2367 = vunpack.c.l.b16 %v1601
      %v2368 = vunpack.c.h.b16 %v1601
      %v2369 = vunpack.c.l.b16 %v1602
      %v2370 = vunpack.c.h.b16 %v1602
      %v2371 = vunpack.c.l.b16 %v1603
      %v2372 = vunpack.c.h.b16 %v1603
      %v2373 = vunpack.c.l.b16 %v1604
      %v2374 = vunpack.c.h.b16 %v1604
      %v2375 = vunpack.c.l.b16 %v1605
      %v2376 = vunpack.c.h.b16 %v1605
      %v2377 = vunpack.c.l.b16 %v1606
      %v2378 = vunpack.c.h.b16 %v1606
      %v2379 = vunpack.c.l.b16 %v1607
      %v2380 = vunpack.c.h.b16 %v1607
      %v2381 = vunpack.c.l.b16 %v1608
      %v2382 = vunpack.c.h.b16 %v1608
      %v2383 = vunpack.c.l.b16 %v1609
      %v2384 = vunpack.c.h.b16 %v1609
      %v2385 = vunpack.c.l.b16 %v1610
      %v2386 = vunpack.c.h.b16 %v1610
      %v2387 = vunpack.c.l.b16 %v1611
      %v2388 = vunpack.c.h.b16 %v1611
      %v2389 = vunpack.c.l.b16 %v1612
      %v2390 = vunpack.c.h.b16 %v1612
      %v2391 = vunpack.c.l.b16 %v1613
      %v2392 = vunpack.c.h.b16 %v1613
      %v2393 = vunpack.c.l.b16 %v1614
      %v2394 = vunpack.c.h.b16 %v1614
      %v2395 = vunpack.c.l.b16 %v1615
      %v2396 = vunpack.c.h.b16 %v1615
      %v2397 = vunpack.c.l.b16 %v1616
      %v2398 = vunpack.c.h.b16 %v1616
      %v2399 = vunpack.c.l.b16 %v1617
      %v2400 = vunpack.c.h.b16 %v1617
      %v2401 = vunpack.c.l.b16 %v1618
      %v2402 = vunpack.c.h.b16 %v1618
      %v2403 = vunpack.c.l.b16 %v1619
      %v2404 = vunpack.c.h.b16 %v1619
      %v2405 = vunpack.c.l.b16 %v1620
      %v2406 = vunpack.c.h.b16 %v1620
      %v2407 = vunpack.c.l.b16 %v1621
      %v2408 = vunpack.c.h.b16 %v1621
      %v2409 = vunpack.c.l.b16 %v1622
      %v2410 = vunpack.c.h.b16 %v1622
      %v2411 = vunpack.c.l.b16 %v1623
      %v2412 = vunpack.c.h.b16 %v1623
      %v2413 = vunpack.c.l.b16 %v1624
      %v2414 = vunpack.c.h.b16 %v1624
      %v2415 = vunpack.c.l.b16 %v1625
      %v2416 = vunpack.c.h.b16 %v1625
      %v2417 = vunpack.c.l.b16 %v1626
      %v2418 = vunpack.c.h.b16 %v1626
      %v2419 = vunpack.c.l.b16 %v1627
      %v2420 = vunpack.c.h.b16 %v1627
      %v2421 = vunpack.c.l.b16 %v1628
      %v2422 = vunpack.c.h.b16 %v1628
      %v2423 = vunpack.c.l.b16 %v1629
      %v2424 = vunpack.c.h.b16 %v1629
      %v2425 = vunpack.c.l.b16 %v1630
      %v2426 = vunpack.c.h.b16 %v1630
      %v2427 = vunpack.c.l.b16 %v1631
      %v2428 = vunpack.c.h.b16 %v1631
      %v2429 = vunpack.c.l.b16 %v1632
      %v2430 = vunpack.c.h.b16 %v1632
      %v2431 = vunpack.c.l.b16 %v1633
      %v2432 = vunpack.c.h.b16 %v1633
      %v2433 = vunpack.c.l.b16 %v1634
      %v2434 = vunpack.c.h.b16 %v1634
      %v2435 = vunpack.c.l.b16 %v1635
      %v2436 = vunpack.c.h.b16 %v1635
      %v2437 = vunpack.c.l.b16 %v1636
      %v2438 = vunpack.c.h.b16 %v1636
      %v2439 = vunpack.c.l.b16 %v1637
      %v2440 = vunpack.c.h.b16 %v1637
      %v2441 = vunpack.c.l.b16 %v1638
      %v2442 = vunpack.c.h.b16 %v1638
      %v2443 = vunpack.c.l.b16 %v1639
      %v2444 = vunpack.c.h.b16 %v1639
      %v2445 = vunpack.c.l.b16 %v1640
      %v2446 = vunpack.c.h.b16 %v1640
      %v2447 = vunpack.c.l.b16 %v1641
      %v2448 = vunpack.c.h.b16 %v1641
      %v2449 = vunpack.c.l.b16 %v1642
      %v2450 = vunpack.c.h.b16 %v1642
      %v2451 = vunpack.c.l.b16 %v1643
      %v2452 = vunpack.c.h.b16 %v1643
      %v2453 = vunpack.c.l.b16 %v1644
      %v2454 = vunpack.c.h.b16 %v1644
      %v2455 = vunpack.c.l.b16 %v1645
      %v2456 = vunpack.c.h.b16 %v1645
      %v2457 = vunpack.c.l.b16 %v1646
      %v2458 = vunpack.c.h.b16 %v1646
      %v2459 = vunpack.c.l.b16 %v1647
      %v2460 = vunpack.c.h.b16 %v1647
      %v2461 = vunpack.c.l.b16 %v1648
      %v2462 = vunpack.c.h.b16 %v1648
      %v2463 = vunpack.c.l.b16 %v1649
      %v2464 = vunpack.c.h.b16 %v1649
      %v2465 = vunpack.c.l.b16 %v1650
      %v2466 = vunpack.c.h.b16 %v1650
      %v2467 = vunpack.c.l.b16 %v1651
      %v2468 = vunpack.c.h.b16 %v1651
      %v2469 = vunpack.c.l.b16 %v1652
      %v2470 = vunpack.c.h.b16 %v1652
      %v2471 = vunpack.c.l.b16 %v1653
      %v2472 = vunpack.c.h.b16 %v1653
      %v2473 = vunpack.c.l.b16 %v1654
      %v2474 = vunpack.c.h.b16 %v1654
      %v2475 = vunpack.c.l.b16 %v1655
      %v2476 = vunpack.c.h.b16 %v1655
      %v2477 = vunpack.c.l.b16 %v1656
      %v2478 = vunpack.c.h.b16 %v1656
      %v2479 = vunpack.c.l.b16 %v1657
      %v2480 = vunpack.c.h.b16 %v1657
      %v2481 = vunpack.c.l.b16 %v1658
      %v2482 = vunpack.c.h.b16 %v1658
      %v2483 = vunpack.c.l.b16 %v1659
      %v2484 = vunpack.c.h.b16 %v1659
      %v2485 = vunpack.c.l.b16 %v1660
      %v2486 = vunpack.c.h.b16 %v1660
      %v2487 = vunpack.c.l.b16 %v1661
      %v2488 = vunpack.c.h.b16 %v1661
      %v2489 = vunpack.c.l.b16 %v1662
      %v2490 = vunpack.c.h.b16 %v1662
      %v2491 = vunpack.c.l.b16 %v1663
      %v2492 = vunpack.c.h.b16 %v1663
      %v2493 = vunpack.c.l.b16 %v1664
      %v2494 = vunpack.c.h.b16 %v1664
      %v2495 = vunpack.c.l.b16 %v1665
      %v2496 = vunpack.c.h.b16 %v1665
      %v2497 = vunpack.c.l.b16 %v1666
      %v2498 = vunpack.c.h.b16 %v1666
      %v2499 = vunpack.c.l.b16 %v1667
      %v2500 = vunpack.c.h.b16 %v1667
      %v2501 = vunpack.c.l.b16 %v1668
      %v2502 = vunpack.c.h.b16 %v1668
      %v2503 = vunpack.c.l.b16 %v1669
      %v2504 = vunpack.c.h.b16 %v1669
      %v2505 = vunpack.c.l.b16 %v1670
      %v2506 = vunpack.c.h.b16 %v1670
      %v2507 = vunpack.c.l.b16 %v1671
      %v2508 = vunpack.c.h.b16 %v1671
      %v2509 = vunpack.c.l.b16 %v1672
      %v2510 = vunpack.c.h.b16 %v1672
      %v2511 = vunpack.c.l.b16 %v1673
      %v2512 = vunpack.c.h.b16 %v1673
      %v2513 = vunpack.c.l.b16 %v1674
      %v2514 = vunpack.c.h.b16 %v1674
      %v2515 = vunpack.c.l.b16 %v1675
      %v2516 = vunpack.c.h.b16 %v1675
      %v2517 = vunpack.c.l.b16 %v1676
      %v2518 = vunpack.c.h.b16 %v1676
      %v2519 = vunpack.c.l.b16 %v1677
      %v2520 = vunpack.c.h.b16 %v1677
      %v2521 = vunpack.c.l.b16 %v1678
      %v2522 = vunpack.c.h.b16 %v1678
      %v2523 = vunpack.c.l.b16 %v1679
      %v2524 = vunpack.c.h.b16 %v1679
      %v2525 = vunpack.c.l.b16 %v1680
      %v2526 = vunpack.c.h.b16 %v1680
      %v2527 = vunpack.c.l.b16 %v1681
      %v2528 = vunpack.c.h.b16 %v1681
      %v2529 = vunpack.c.l.b16 %v1682
      %v2530 = vunpack.c.h.b16 %v1682
      %v2531 = vunpack.c.l.b16 %v1683
      %v2532 = vunpack.c.h.b16 %v1683
      %v2533 = vunpack.c.l.b16 %v1684
      %v2534 = vunpack.c.h.b16 %v1684
      %v2535 = vunpack.c.l.b16 %v1685
      %v2536 = vunpack.c.h.b16 %v1685
      %v2537 = vunpack.c.l.b16 %v1686
      %v2538 = vunpack.c.h.b16 %v1686
      %v2539 = vunpack.c.l.b16 %v1687
      %v2540 = vunpack.c.h.b16 %v1687
      %v2541 = vunpack.c.l.b16 %v1688
      %v2542 = vunpack.c.h.b16 %v1688
      %v2543 = vunpack.c.l.b16 %v1689
      %v2544 = vunpack.c.h.b16 %v1689
      %v2545 = vunpack.c.l.b16 %v1690
      %v2546 = vunpack.c.h.b16 %v1690
      %v2547 = vunpack.c.l.b16 %v1691
      %v2548 = vunpack.c.h.b16 %v1691
      %v2549 = vunpack.c.l.b16 %v1692
      %v2550 = vunpack.c.h.b16 %v1692
      %v2551 = vunpack.c.l.b16 %v1693
      %v2552 = vunpack.c.h.b16 %v1693
      %v2553 = vunpack.c.l.b16 %v1694
      %v2554 = vunpack.c.h.b16 %v1694
      %v2555 = vpack.c.b16 %v2157, %v2155
      %v2556 = vpack.c.b16 %v2158, %v2156
      %v2557 = vpack.c.b16 %v2161, %v2159
      %v2558 = vpack.c.b16 %v2162, %v2160
      %v2559 = vpack.c.b16 %v2165, %v2163
      %v2560 = vpack.c.b16 %v2166, %v2164
      %v2561 = vpack.c.b16 %v2169, %v2167
      %v2562 = vpack.c.b16 %v2170, %v2168
      %v2563 = vpack.c.b16 %v2173, %v2171
      %v2564 = vpack.c.b16 %v2174, %v2172
      %v2565 = vpack.c.b16 %v2177, %v2175
      %v2566 = vpack.c.b16 %v2178, %v2176
      %v2567 = vpack.c.b16 %v2181, %v2179
      %v2568 = vpack.c.b16 %v2182, %v2180
      %v2569 = vpack.c.b16 %v2185, %v2183
      %v2570 = vpack.c.b16 %v2186, %v2184
      %v2571 = vpack.c.b16 %v2189, %v2187
      %v2572 = vpack.c.b16 %v2190, %v2188
      %v2573 = vpack.c.b16 %v2193, %v2191
      %v2574 = vpack.c.b16 %v2194, %v2192
      %v2575 = vpack.c.b16 %v2197, %v2195
      %v2576 = vpack.c.b16 %v2198, %v2196
      %v2577 = vpack.c.b16 %v2201, %v2199
      %v2578 = vpack.c.b16 %v2202, %v2200
      %v2579 = vpack.c.b16 %v2205, %v2203
      %v2580 = vpack.c.b16 %v2206, %v2204
      %v2581 = vpack.c.b16 %v2209, %v2207
      %v2582 = vpack.c.b16 %v2210, %v2208
      %v2583 = vpack.c.b16 %v2213, %v2211
      %v2584 = vpack.c.b16 %v2214, %v2212
      %v2585 = vpack.c.b16 %v2217, %v2215
      %v2586 = vpack.c.b16 %v2218, %v2216
      %v2587 = vpack.c.b16 %v2221, %v2219
      %v2588 = vpack.c.b16 %v2222, %v2220
      %v2589 = vpack.c.b16 %v2225, %v2223
      %v2590 = vpack.c.b16 %v2226, %v2224
      %v2591 = vpack.c.b16 %v2229, %v2227
      %v2592 = vpack.c.b16 %v2230, %v2228
      %v2593 = vpack.c.b16 %v2233, %v2231
      %v2594 = vpack.c.b16 %v2234, %v2232
      %v2595 = vpack.c.b16 %v2237, %v2235
      %v2596 = vpack.c.b16 %v2238, %v2236
      %v2597 = vpack.c.b16 %v2241, %v2239
      %v2598 = vpack.c.b16 %v2242, %v2240
      %v2599 = vpack.c.b16 %v2245, %v2243
      %v2600 = vpack.c.b16 %v2246, %v2244
      %v2601 = vpack.c.b16 %v2249, %v2247
      %v2602 = vpack.c.b16 %v2250, %v2248
      %v2603 = vpack.c.b16 %v2253, %v2251
      %v2604 = vpack.c.b16 %v2254, %v2252
      %v2605 = vpack.c.b16 %v2257, %v2255
      %v2606 = vpack.c.b16 %v2258, %v2256
      %v2607 = vpack.c.b16 %v2261, %v2259
      %v2608 = vpack.c.b16 %v2262, %v2260
      %v2609 = vpack.c.b16 %v2265, %v2263
      %v2610 = vpack.c.b16 %v2266, %v2264
      %v2611 = vpack.c.b16 %v2269, %v2267
      %v2612 = vpack.c.b16 %v2270, %v2268
      %v2613 = vpack.c.b16 %v2273, %v2271
      %v2614 = vpack.c.b16 %v2274, %v2272
      %v2615 = vpack.c.b16 %v2277, %v2275
      %v2616 = vpack.c.b16 %v2278, %v2276
      %v2617 = vpack.c.b16 %v2281, %v2279
      %v2618 = vpack.c.b16 %v2282, %v2280
      %v2619 = vpack.c.b16 %v2285, %v2283
      %v2620 = vpack.c.b16 %v2286, %v2284
      %v2621 = vpack.c.b16 %v2289, %v2287
      %v2622 = vpack.c.b16 %v2290, %v2288
      %v2623 = vpack.c.b16 %v2293, %v2291
      %v2624 = vpack.c.b16 %v2294, %v2292
      %v2625 = vpack.c.b16 %v2297, %v2295
      %v2626 = vpack.c.b16 %v2298, %v2296
      %v2627 = vpack.c.b16 %v2301, %v2299
      %v2628 = vpack.c.b16 %v2302, %v2300
      %v2629 = vpack.c.b16 %v2305, %v2303
      %v2630 = vpack.c.b16 %v2306, %v2304
      %v2631 = vpack.c.b16 %v2309, %v2307
      %v2632 = vpack.c.b16 %v2310, %v2308
      %v2633 = vpack.c.b16 %v2313, %v2311
      %v2634 = vpack.c.b16 %v2314, %v2312
      %v2635 = vpack.c.b16 %v2317, %v2315
      %v2636 = vpack.c.b16 %v2318, %v2316
      %v2637 = vpack.c.b16 %v2321, %v2319
      %v2638 = vpack.c.b16 %v2322, %v2320
      %v2639 = vpack.c.b16 %v2325, %v2323
      %v2640 = vpack.c.b16 %v2326, %v2324
      %v2641 = vpack.c.b16 %v2329, %v2327
      %v2642 = vpack.c.b16 %v2330, %v2328
      %v2643 = vpack.c.b16 %v2333, %v2331
      %v2644 = vpack.c.b16 %v2334, %v2332
      %v2645 = vpack.c.b16 %v2337, %v2335
      %v2646 = vpack.c.b16 %v2338, %v2336
      %v2647 = vpack.c.b16 %v2341, %v2339
      %v2648 = vpack.c.b16 %v2342, %v2340
      %v2649 = vpack.c.b16 %v2345, %v2343
      %v2650 = vpack.c.b16 %v2346, %v2344
      %v2651 = vpack.c.b16 %v2349, %v2347
      %v2652 = vpack.c.b16 %v2350, %v2348
      %v2653 = vpack.c.b16 %v2353, %v2351
      %v2654 = vpack.c.b16 %v2354, %v2352
      %v2655 = vpack.c.b16 %v2357, %v2355
      %v2656 = vpack.c.b16 %v2358, %v2356
      %v2657 = vpack.c.b16 %v2361, %v2359
      %v2658 = vpack.c.b16 %v2362, %v2360
      %v2659 = vpack.c.b16 %v2365, %v2363
      %v2660 = vpack.c.b16 %v2366, %v2364
      %v2661 = vpack.c.b16 %v2369, %v2367
      %v2662 = vpack.c.b16 %v2370, %v2368
      %v2663 = vpack.c.b16 %v2373, %v2371
      %v2664 = vpack.c.b16 %v2374, %v2372
      %v2665 = vpack.c.b16 %v2377, %v2375
      %v2666 = vpack.c.b16 %v2378, %v2376
      %v2667 = vpack.c.b16 %v2381, %v2379
      %v2668 = vpack.c.b16 %v2382, %v2380
      %v2669 = vpack.c.b16 %v2385, %v2383
      %v2670 = vpack.c.b16 %v2386, %v2384
      %v2671 = vpack.c.b16 %v2389, %v2387
      %v2672 = vpack.c.b16 %v2390, %v2388
      %v2673 = vpack.c.b16 %v2393, %v2391
      %v2674 = vpack.c.b16 %v2394, %v2392
      %v2675 = vpack.c.b16 %v2397, %v2395
      %v2676 = vpack.c.b16 %v2398, %v2396
      %v2677 = vpack.c.b16 %v2401, %v2399
      %v2678 = vpack.c.b16 %v2402, %v2400
      %v2679 = vpack.c.b16 %v2405, %v2403
      %v2680 = vpack.c.b16 %v2406, %v2404
      %v2681 = vpack.c.b16 %v2409, %v2407
      %v2682 = vpack.c.b16 %v2410, %v2408
      %v2683 = vpack.c.b16 %v2413, %v2411
      %v2684 = vpack.c.b16 %v2414, %v2412
      %v2685 = vpack.c.b16 %v2417, %v2415
      %v2686 = vpack.c.b16 %v2418, %v2416
      %v2687 = vpack.c.b16 %v2421, %v2419
      %v2688 = vpack.c.b16 %v2422, %v2420
      %v2689 = vpack.c.b16 %v2425, %v2423
      %v2690 = vpack.c.b16 %v2426, %v2424
      %v2691 = vpack.c.b16 %v2429, %v2427
      %v2692 = vpack.c.b16 %v2430, %v2428
      %v2693 = vpack.c.b16 %v2433, %v2431
      %v2694 = vpack.c.b16 %v2434, %v2432
      %v2695 = vpack.c.b16 %v2437, %v2435
      %v2696 = vpack.c.b16 %v2438, %v2436
      %v2697 = vpack.c.b16 %v2441, %v2439
      %v2698 = vpack.c.b16 %v2442, %v2440
      %v2699 = vpack.c.b16 %v2445, %v2443
      %v2700 = vpack.c.b16 %v2446, %v2444
      %v2701 = vpack.c.b16 %v2449, %v2447
      %v2702 = vpack.c.b16 %v2450, %v2448
      %v2703 = vpack.c.b16 %v2453, %v2451
      %v2704 = vpack.c.b16 %v2454, %v2452
      %v2705 = vpack.c.b16 %v2457, %v2455
      %v2706 = vpack.c.b16 %v2458, %v2456
      %v2707 = vpack.c.b16 %v2461, %v2459
      %v2708 = vpack.c.b16 %v2462, %v2460
      %v2709 = vpack.c.b16 %v2465, %v2463
      %v2710 = vpack.c.b16 %v2466, %v2464
      %v2711 = vpack.c.b16 %v2469, %v2467
      %v2712 = vpack.c.b16 %v2470, %v2468
      %v2713 = vpack.c.b16 %v2473, %v2471
      %v2714 = vpack.c.b16 %v2474, %v2472
      %v2715 = vpack.c.b16 %v2477, %v2475
      %v2716 = vpack.c.b16 %v2478, %v2476
      %v2717 = vpack.c.b16 %v2481, %v2479
      %v2718 = vpack.c.b16 %v2482, %v2480
      %v2719 = vpack.c.b16 %v2485, %v2483
      %v2720 = vpack.c.b16 %v2486, %v2484
      %v2721 = vpack.c.b16 %v2489, %v2487
      %v2722 = vpack.c.b16 %v2490, %v2488
      %v2723 = vpack.c.b16 %v2493, %v2491
      %v2724 = vpack.c.b16 %v2494, %v2492
      %v2725 = vpack.c.b16 %v2497, %v2495
      %v2726 = vpack.c.b16 %v2498, %v2496
      %v2727 = vpack.c.b16 %v2501, %v2499
      %v2728 = vpack.c.b16 %v2502, %v2500
      %v2729 = vpack.c.b16 %v2505, %v2503
      %v2730 = vpack.c.b16 %v2506, %v2504
      %v2731 = vpack.c.b16 %v2509, %v2507
      %v2732 = vpack.c.b16 %v2510, %v2508
      %v2733 = vpack.c.b16 %v2513, %v2511
      %v2734 = vpack.c.b16 %v2514, %v2512
      %v2735 = vpack.c.b16 %v2517, %v2515
      %v2736 = vpack.c.b16 %v2518, %v2516
      %v2737 = vpack.c.b16 %v2521, %v2519
      %v2738 = vpack.c.b16 %v2522, %v2520
      %v2739 = vpack.c.b16 %v2525, %v2523
      %v2740 = vpack.c.b16 %v2526, %v2524
      %v2741 = vpack.c.b16 %v2529, %v2527
      %v2742 = vpack.c.b16 %v2530, %v2528
      %v2743 = vpack.c.b16 %v2533, %v2531
      %v2744 = vpack.c.b16 %v2534, %v2532
      %v2745 = vpack.c.b16 %v2537, %v2535
      %v2746 = vpack.c.b16 %v2538, %v2536
      %v2747 = vpack.c.b16 %v2541, %v2539
      %v2748 = vpack.c.b16 %v2542, %v2540
      %v2749 = vpack.c.b16 %v2545, %v2543
      %v2750 = vpack.c.b16 %v2546, %v2544
      %v2751 = vpack.c.b16 %v2549, %v2547
      %v2752 = vpack.c.b16 %v2550, %v2548
      %v2753 = vpack.c.b16 %v2553, %v2551
      %v2754 = vpack.c.b16 %v2554, %v2552
      %v2956 = vsel %vm937, %v1867, 0
      %v2959 = vsel %vm937, %v1880, 0
      %v2962 = vsel %vm937, %v1893, 0
      %v2965 = vsel %vm937, %v1906, 0
      %2967 = vmatpush.bf16.msra.mxu0 %v2569
      %2968 = vmatpush.bf16.msra.mxu0 %v2567
      %2969 = vmatpush.bf16.msra.mxu0 %v2565
      %2970 = vmatpush.bf16.msra.mxu0 %v2563
      %2971 = vmatpush.bf16.msra.mxu0 %v2561
      %2972 = vmatpush.bf16.msra.mxu0 %v2559
      %2973 = vmatpush.bf16.msra.mxu0 %v2557
      %2974 = vmatpush.bf16.msra.mxu0 %v2555
      %2975 = vmatmul.bf16.gmra.mxu0 %v1855
      %v2976 = vpop.f32.mrf.mxu0
      %v2977 = vadd.f32 0.0, %v2976
      %v2978 = vpop.f32.mrf.mxu0
      %v2979 = vadd.f32 0.0, %v2978
      %2980 = vmatmul.bf16.gmra.mxu0 %v1868
      %v2981 = vpop.f32.mrf.mxu0
      %v2982 = vadd.f32 0.0, %v2981
      %v2983 = vpop.f32.mrf.mxu0
      %v2984 = vadd.f32 0.0, %v2983
      %2985 = vmatmul.bf16.gmra.mxu0 %v1881
      %v2986 = vpop.f32.mrf.mxu0
      %v2987 = vadd.f32 0.0, %v2986
      %v2988 = vpop.f32.mrf.mxu0
      %v2989 = vadd.f32 0.0, %v2988
      %2990 = vmatmul.bf16.gmra.mxu0 %v1894
      %v2991 = vpop.f32.mrf.mxu0
      %v2992 = vadd.f32 0.0, %v2991
      %v2993 = vpop.f32.mrf.mxu0
      %v2994 = vadd.f32 0.0, %v2993
      %2995 = vdwg.mxu0
      %2996 = vmatpush.bf16.msra.mxu0 %v2585
      %2997 = vmatpush.bf16.msra.mxu0 %v2583
      %2998 = vmatpush.bf16.msra.mxu0 %v2581
      %2999 = vmatpush.bf16.msra.mxu0 %v2579
      %3000 = vmatpush.bf16.msra.mxu0 %v2577
      %3001 = vmatpush.bf16.msra.mxu0 %v2575
      %3002 = vmatpush.bf16.msra.mxu0 %v2573
      %3003 = vmatpush.bf16.msra.mxu0 %v2571
      %3004 = vmatmul.bf16.gmra.mxu0 %v1856
      %v3005 = vpop.f32.mrf.mxu0
      %v3006 = vadd.f32 %v2977, %v3005
      %v3007 = vpop.f32.mrf.mxu0
      %v3008 = vadd.f32 %v2979, %v3007
      %3009 = vmatmul.bf16.gmra.mxu0 %v1869
      %v3010 = vpop.f32.mrf.mxu0
      %v3011 = vadd.f32 %v2982, %v3010
      %v3012 = vpop.f32.mrf.mxu0
      %v3013 = vadd.f32 %v2984, %v3012
      %3014 = vmatmul.bf16.gmra.mxu0 %v1882
      %v3015 = vpop.f32.mrf.mxu0
      %v3016 = vadd.f32 %v2987, %v3015
      %v3017 = vpop.f32.mrf.mxu0
      %v3018 = vadd.f32 %v2989, %v3017
      %3019 = vmatmul.bf16.gmra.mxu0 %v1895
      %v3020 = vpop.f32.mrf.mxu0
      %v3021 = vadd.f32 %v2992, %v3020
      %v3022 = vpop.f32.mrf.mxu0
      %v3023 = vadd.f32 %v2994, %v3022
      %3024 = vdwg.mxu0
      %3025 = vmatpush.bf16.msra.mxu0 %v2601
      %3026 = vmatpush.bf16.msra.mxu0 %v2599
      %3027 = vmatpush.bf16.msra.mxu0 %v2597
      %3028 = vmatpush.bf16.msra.mxu0 %v2595
      %3029 = vmatpush.bf16.msra.mxu0 %v2593
      %3030 = vmatpush.bf16.msra.mxu0 %v2591
      %3031 = vmatpush.bf16.msra.mxu0 %v2589
      %3032 = vmatpush.bf16.msra.mxu0 %v2587
      %3033 = vmatmul.bf16.gmra.mxu0 %v1857
      %v3034 = vpop.f32.mrf.mxu0
      %v3035 = vadd.f32 %v3006, %v3034
      %v3036 = vpop.f32.mrf.mxu0
      %v3037 = vadd.f32 %v3008, %v3036
      %3038 = vmatmul.bf16.gmra.mxu0 %v1870
      %v3039 = vpop.f32.mrf.mxu0
      %v3040 = vadd.f32 %v3011, %v3039
      %v3041 = vpop.f32.mrf.mxu0
      %v3042 = vadd.f32 %v3013, %v3041
      %3043 = vmatmul.bf16.gmra.mxu0 %v1883
      %v3044 = vpop.f32.mrf.mxu0
      %v3045 = vadd.f32 %v3016, %v3044
      %v3046 = vpop.f32.mrf.mxu0
      %v3047 = vadd.f32 %v3018, %v3046
      %3048 = vmatmul.bf16.gmra.mxu0 %v1896
      %v3049 = vpop.f32.mrf.mxu0
      %v3050 = vadd.f32 %v3021, %v3049
      %v3051 = vpop.f32.mrf.mxu0
      %v3052 = vadd.f32 %v3023, %v3051
      %3053 = vdwg.mxu0
      %3054 = vmatpush.bf16.msra.mxu0 %v2617
      %3055 = vmatpush.bf16.msra.mxu0 %v2615
      %3056 = vmatpush.bf16.msra.mxu0 %v2613
      %3057 = vmatpush.bf16.msra.mxu0 %v2611
      %3058 = vmatpush.bf16.msra.mxu0 %v2609
      %3059 = vmatpush.bf16.msra.mxu0 %v2607
      %3060 = vmatpush.bf16.msra.mxu0 %v2605
      %3061 = vmatpush.bf16.msra.mxu0 %v2603
      %3062 = vmatmul.bf16.gmra.mxu0 %v1858
      %v3063 = vpop.f32.mrf.mxu0
      %v3064 = vadd.f32 %v3035, %v3063
      %v3065 = vpop.f32.mrf.mxu0
      %v3066 = vadd.f32 %v3037, %v3065
      %3067 = vmatmul.bf16.gmra.mxu0 %v1871
      %v3068 = vpop.f32.mrf.mxu0
      %v3069 = vadd.f32 %v3040, %v3068
      %v3070 = vpop.f32.mrf.mxu0
      %v3071 = vadd.f32 %v3042, %v3070
      %3072 = vmatmul.bf16.gmra.mxu0 %v1884
      %v3073 = vpop.f32.mrf.mxu0
      %v3074 = vadd.f32 %v3045, %v3073
      %v3075 = vpop.f32.mrf.mxu0
      %v3076 = vadd.f32 %v3047, %v3075
      %3077 = vmatmul.bf16.gmra.mxu0 %v1897
      %v3078 = vpop.f32.mrf.mxu0
      %v3079 = vadd.f32 %v3050, %v3078
      %v3080 = vpop.f32.mrf.mxu0
      %v3081 = vadd.f32 %v3052, %v3080
      %3082 = vdwg.mxu0
      %3083 = vmatpush.bf16.msra.mxu0 %v2633
      %3084 = vmatpush.bf16.msra.mxu0 %v2631
      %3085 = vmatpush.bf16.msra.mxu0 %v2629
      %3086 = vmatpush.bf16.msra.mxu0 %v2627
      %3087 = vmatpush.bf16.msra.mxu0 %v2625
      %3088 = vmatpush.bf16.msra.mxu0 %v2623
      %3089 = vmatpush.bf16.msra.mxu0 %v2621
      %3090 = vmatpush.bf16.msra.mxu0 %v2619
      %3091 = vmatmul.bf16.gmra.mxu0 %v1859
      %v3092 = vpop.f32.mrf.mxu0
      %v3093 = vadd.f32 %v3064, %v3092
      %v3094 = vpop.f32.mrf.mxu0
      %v3095 = vadd.f32 %v3066, %v3094
      %3096 = vmatmul.bf16.gmra.mxu0 %v1872
      %v3097 = vpop.f32.mrf.mxu0
      %v3098 = vadd.f32 %v3069, %v3097
      %v3099 = vpop.f32.mrf.mxu0
      %v3100 = vadd.f32 %v3071, %v3099
      %3101 = vmatmul.bf16.gmra.mxu0 %v1885
      %v3102 = vpop.f32.mrf.mxu0
      %v3103 = vadd.f32 %v3074, %v3102
      %v3104 = vpop.f32.mrf.mxu0
      %v3105 = vadd.f32 %v3076, %v3104
      %3106 = vmatmul.bf16.gmra.mxu0 %v1898
      %v3107 = vpop.f32.mrf.mxu0
      %v3108 = vadd.f32 %v3079, %v3107
      %v3109 = vpop.f32.mrf.mxu0
      %v3110 = vadd.f32 %v3081, %v3109
      %3111 = vdwg.mxu0
      %3112 = vmatpush.bf16.msra.mxu0 %v2649
      %3113 = vmatpush.bf16.msra.mxu0 %v2647
      %3114 = vmatpush.bf16.msra.mxu0 %v2645
      %3115 = vmatpush.bf16.msra.mxu0 %v2643
      %3116 = vmatpush.bf16.msra.mxu0 %v2641
      %3117 = vmatpush.bf16.msra.mxu0 %v2639
      %3118 = vmatpush.bf16.msra.mxu0 %v2637
      %3119 = vmatpush.bf16.msra.mxu0 %v2635
      %3120 = vmatmul.bf16.gmra.mxu0 %v1860
      %v3121 = vpop.f32.mrf.mxu0
      %v3122 = vadd.f32 %v3093, %v3121
      %v3123 = vpop.f32.mrf.mxu0
      %v3124 = vadd.f32 %v3095, %v3123
      %3125 = vmatmul.bf16.gmra.mxu0 %v1873
      %v3126 = vpop.f32.mrf.mxu0
      %v3127 = vadd.f32 %v3098, %v3126
      %v3128 = vpop.f32.mrf.mxu0
      %v3129 = vadd.f32 %v3100, %v3128
      %3130 = vmatmul.bf16.gmra.mxu0 %v1886
      %v3131 = vpop.f32.mrf.mxu0
      %v3132 = vadd.f32 %v3103, %v3131
      %v3133 = vpop.f32.mrf.mxu0
      %v3134 = vadd.f32 %v3105, %v3133
      %3135 = vmatmul.bf16.gmra.mxu0 %v1899
      %v3136 = vpop.f32.mrf.mxu0
      %v3137 = vadd.f32 %v3108, %v3136
      %v3138 = vpop.f32.mrf.mxu0
      %v3139 = vadd.f32 %v3110, %v3138
      %3140 = vdwg.mxu0
      %3141 = vmatpush.bf16.msra.mxu0 %v2665
      %3142 = vmatpush.bf16.msra.mxu0 %v2663
      %3143 = vmatpush.bf16.msra.mxu0 %v2661
      %3144 = vmatpush.bf16.msra.mxu0 %v2659
      %3145 = vmatpush.bf16.msra.mxu0 %v2657
      %3146 = vmatpush.bf16.msra.mxu0 %v2655
      %3147 = vmatpush.bf16.msra.mxu0 %v2653
      %3148 = vmatpush.bf16.msra.mxu0 %v2651
      %3149 = vmatmul.bf16.gmra.mxu0 %v1861
      %v3150 = vpop.f32.mrf.mxu0
      %v3151 = vadd.f32 %v3122, %v3150
      %v3152 = vpop.f32.mrf.mxu0
      %v3153 = vadd.f32 %v3124, %v3152
      %3154 = vmatmul.bf16.gmra.mxu0 %v1874
      %v3155 = vpop.f32.mrf.mxu0
      %v3156 = vadd.f32 %v3127, %v3155
      %v3157 = vpop.f32.mrf.mxu0
      %v3158 = vadd.f32 %v3129, %v3157
      %3159 = vmatmul.bf16.gmra.mxu0 %v1887
      %v3160 = vpop.f32.mrf.mxu0
      %v3161 = vadd.f32 %v3132, %v3160
      %v3162 = vpop.f32.mrf.mxu0
      %v3163 = vadd.f32 %v3134, %v3162
      %3164 = vmatmul.bf16.gmra.mxu0 %v1900
      %v3165 = vpop.f32.mrf.mxu0
      %v3166 = vadd.f32 %v3137, %v3165
      %v3167 = vpop.f32.mrf.mxu0
      %v3168 = vadd.f32 %v3139, %v3167
      %3169 = vdwg.mxu0
      %3170 = vmatpush.bf16.msra.mxu0 %v2681
      %3171 = vmatpush.bf16.msra.mxu0 %v2679
      %3172 = vmatpush.bf16.msra.mxu0 %v2677
      %3173 = vmatpush.bf16.msra.mxu0 %v2675
      %3174 = vmatpush.bf16.msra.mxu0 %v2673
      %3175 = vmatpush.bf16.msra.mxu0 %v2671
      %3176 = vmatpush.bf16.msra.mxu0 %v2669
      %3177 = vmatpush.bf16.msra.mxu0 %v2667
      %3178 = vmatmul.bf16.gmra.mxu0 %v1862
      %v3179 = vpop.f32.mrf.mxu0
      %v3180 = vadd.f32 %v3151, %v3179
      %v3181 = vpop.f32.mrf.mxu0
      %v3182 = vadd.f32 %v3153, %v3181
      %3183 = vmatmul.bf16.gmra.mxu0 %v1875
      %v3184 = vpop.f32.mrf.mxu0
      %v3185 = vadd.f32 %v3156, %v3184
      %v3186 = vpop.f32.mrf.mxu0
      %v3187 = vadd.f32 %v3158, %v3186
      %3188 = vmatmul.bf16.gmra.mxu0 %v1888
      %v3189 = vpop.f32.mrf.mxu0
      %v3190 = vadd.f32 %v3161, %v3189
      %v3191 = vpop.f32.mrf.mxu0
      %v3192 = vadd.f32 %v3163, %v3191
      %3193 = vmatmul.bf16.gmra.mxu0 %v1901
      %v3194 = vpop.f32.mrf.mxu0
      %v3195 = vadd.f32 %v3166, %v3194
      %v3196 = vpop.f32.mrf.mxu0
      %v3197 = vadd.f32 %v3168, %v3196
      %3198 = vdwg.mxu0
      %3199 = vmatpush.bf16.msra.mxu0 %v2697
      %3200 = vmatpush.bf16.msra.mxu0 %v2695
      %3201 = vmatpush.bf16.msra.mxu0 %v2693
      %3202 = vmatpush.bf16.msra.mxu0 %v2691
      %3203 = vmatpush.bf16.msra.mxu0 %v2689
      %3204 = vmatpush.bf16.msra.mxu0 %v2687
      %3205 = vmatpush.bf16.msra.mxu0 %v2685
      %3206 = vmatpush.bf16.msra.mxu0 %v2683
      %3207 = vmatmul.bf16.gmra.mxu0 %v1863
      %v3208 = vpop.f32.mrf.mxu0
      %v3209 = vadd.f32 %v3180, %v3208
      %v3210 = vpop.f32.mrf.mxu0
      %v3211 = vadd.f32 %v3182, %v3210
      %3212 = vmatmul.bf16.gmra.mxu0 %v1876
      %v3213 = vpop.f32.mrf.mxu0
      %v3214 = vadd.f32 %v3185, %v3213
      %v3215 = vpop.f32.mrf.mxu0
      %v3216 = vadd.f32 %v3187, %v3215
      %3217 = vmatmul.bf16.gmra.mxu0 %v1889
      %v3218 = vpop.f32.mrf.mxu0
      %v3219 = vadd.f32 %v3190, %v3218
      %v3220 = vpop.f32.mrf.mxu0
      %v3221 = vadd.f32 %v3192, %v3220
      %3222 = vmatmul.bf16.gmra.mxu0 %v1902
      %v3223 = vpop.f32.mrf.mxu0
      %v3224 = vadd.f32 %v3195, %v3223
      %v3225 = vpop.f32.mrf.mxu0
      %v3226 = vadd.f32 %v3197, %v3225
      %3227 = vdwg.mxu0
      %3228 = vmatpush.bf16.msra.mxu0 %v2713
      %3229 = vmatpush.bf16.msra.mxu0 %v2711
      %3230 = vmatpush.bf16.msra.mxu0 %v2709
      %3231 = vmatpush.bf16.msra.mxu0 %v2707
      %3232 = vmatpush.bf16.msra.mxu0 %v2705
      %3233 = vmatpush.bf16.msra.mxu0 %v2703
      %3234 = vmatpush.bf16.msra.mxu0 %v2701
      %3235 = vmatpush.bf16.msra.mxu0 %v2699
      %3236 = vmatmul.bf16.gmra.mxu0 %v1864
      %v3237 = vpop.f32.mrf.mxu0
      %v3238 = vadd.f32 %v3209, %v3237
      %v3239 = vpop.f32.mrf.mxu0
      %v3240 = vadd.f32 %v3211, %v3239
      %3241 = vmatmul.bf16.gmra.mxu0 %v1877
      %v3242 = vpop.f32.mrf.mxu0
      %v3243 = vadd.f32 %v3214, %v3242
      %v3244 = vpop.f32.mrf.mxu0
      %v3245 = vadd.f32 %v3216, %v3244
      %3246 = vmatmul.bf16.gmra.mxu0 %v1890
      %v3247 = vpop.f32.mrf.mxu0
      %v3248 = vadd.f32 %v3219, %v3247
      %v3249 = vpop.f32.mrf.mxu0
      %v3250 = vadd.f32 %v3221, %v3249
      %3251 = vmatmul.bf16.gmra.mxu0 %v1903
      %v3252 = vpop.f32.mrf.mxu0
      %v3253 = vadd.f32 %v3224, %v3252
      %v3254 = vpop.f32.mrf.mxu0
      %v3255 = vadd.f32 %v3226, %v3254
      %3256 = vdwg.mxu0
      %3257 = vmatpush.bf16.msra.mxu0 %v2729
      %3258 = vmatpush.bf16.msra.mxu0 %v2727
      %3259 = vmatpush.bf16.msra.mxu0 %v2725
      %3260 = vmatpush.bf16.msra.mxu0 %v2723
      %3261 = vmatpush.bf16.msra.mxu0 %v2721
      %3262 = vmatpush.bf16.msra.mxu0 %v2719
      %3263 = vmatpush.bf16.msra.mxu0 %v2717
      %3264 = vmatpush.bf16.msra.mxu0 %v2715
      %3265 = vmatmul.bf16.gmra.mxu0 %v1865
      %v3266 = vpop.f32.mrf.mxu0
      %v3267 = vadd.f32 %v3238, %v3266
      %v3268 = vpop.f32.mrf.mxu0
      %v3269 = vadd.f32 %v3240, %v3268
      %3270 = vmatmul.bf16.gmra.mxu0 %v1878
      %v3271 = vpop.f32.mrf.mxu0
      %v3272 = vadd.f32 %v3243, %v3271
      %v3273 = vpop.f32.mrf.mxu0
      %v3274 = vadd.f32 %v3245, %v3273
      %3275 = vmatmul.bf16.gmra.mxu0 %v1891
      %v3276 = vpop.f32.mrf.mxu0
      %v3277 = vadd.f32 %v3248, %v3276
      %v3278 = vpop.f32.mrf.mxu0
      %v3279 = vadd.f32 %v3250, %v3278
      %3280 = vmatmul.bf16.gmra.mxu0 %v1904
      %v3281 = vpop.f32.mrf.mxu0
      %v3282 = vadd.f32 %v3253, %v3281
      %v3283 = vpop.f32.mrf.mxu0
      %v3284 = vadd.f32 %v3255, %v3283
      %3285 = vdwg.mxu0
      %3286 = vmatpush.bf16.msra.mxu0 %v2745
      %3287 = vmatpush.bf16.msra.mxu0 %v2743
      %3288 = vmatpush.bf16.msra.mxu0 %v2741
      %3289 = vmatpush.bf16.msra.mxu0 %v2739
      %3290 = vmatpush.bf16.msra.mxu0 %v2737
      %3291 = vmatpush.bf16.msra.mxu0 %v2735
      %3292 = vmatpush.bf16.msra.mxu0 %v2733
      %3293 = vmatpush.bf16.msra.mxu0 %v2731
      %3294 = vmatmul.bf16.gmra.mxu0 %v1866
      %v3295 = vpop.f32.mrf.mxu0
      %v3296 = vadd.f32 %v3267, %v3295
      %v3297 = vpop.f32.mrf.mxu0
      %v3298 = vadd.f32 %v3269, %v3297
      %3299 = vmatmul.bf16.gmra.mxu0 %v1879
      %v3300 = vpop.f32.mrf.mxu0
      %v3301 = vadd.f32 %v3272, %v3300
      %v3302 = vpop.f32.mrf.mxu0
      %v3303 = vadd.f32 %v3274, %v3302
      %3304 = vmatmul.bf16.gmra.mxu0 %v1892
      %v3305 = vpop.f32.mrf.mxu0
      %v3306 = vadd.f32 %v3277, %v3305
      %v3307 = vpop.f32.mrf.mxu0
      %v3308 = vadd.f32 %v3279, %v3307
      %3309 = vmatmul.bf16.gmra.mxu0 %v1905
      %v3310 = vpop.f32.mrf.mxu0
      %v3311 = vadd.f32 %v3282, %v3310
      %v3312 = vpop.f32.mrf.mxu0
      %v3313 = vadd.f32 %v3284, %v3312
      %3314 = vdwg.mxu0
      %3315 = vmatpush.bf16.msra.mxu0 0
      %3316 = vmatpush.bf16.msra.mxu0 0
      %3317 = vmatpush.bf16.msra.mxu0 0
      %3318 = vmatpush.bf16.msra.mxu0 0
      %3319 = vmatpush.bf16.msra.mxu0 %v2753
      %3320 = vmatpush.bf16.msra.mxu0 %v2751
      %3321 = vmatpush.bf16.msra.mxu0 %v2749
      %3322 = vmatpush.bf16.msra.mxu0 %v2747
      %3323 = vmatmul.bf16.gmra.mxu0 %v2956
      %v3324 = vpop.f32.mrf.mxu0
      %v3325 = vadd.f32 %v3296, %v3324
      %v3326 = vpop.f32.mrf.mxu0
      %v3327 = vadd.f32 %v3298, %v3326
      %3328 = vmatmul.bf16.gmra.mxu0 %v2959
      %v3329 = vpop.f32.mrf.mxu0
      %v3330 = vadd.f32 %v3301, %v3329
      %v3331 = vpop.f32.mrf.mxu0
      %v3332 = vadd.f32 %v3303, %v3331
      %3333 = vmatmul.bf16.gmra.mxu0 %v2962
      %v3334 = vpop.f32.mrf.mxu0
      %v3335 = vadd.f32 %v3306, %v3334
      %v3336 = vpop.f32.mrf.mxu0
      %v3337 = vadd.f32 %v3308, %v3336
      %3338 = vmatmul.bf16.gmra.mxu0 %v2965
      %v3339 = vpop.f32.mrf.mxu0
      %v3340 = vadd.f32 %v3311, %v3339
      %v3341 = vpop.f32.mrf.mxu0
      %v3342 = vadd.f32 %v3313, %v3341
      %3343 = vdwg.mxu0
      %3344 = vmatpush.bf16.msra.mxu0 %v2570
      %3345 = vmatpush.bf16.msra.mxu0 %v2568
      %3346 = vmatpush.bf16.msra.mxu0 %v2566
      %3347 = vmatpush.bf16.msra.mxu0 %v2564
      %3348 = vmatpush.bf16.msra.mxu0 %v2562
      %3349 = vmatpush.bf16.msra.mxu0 %v2560
      %3350 = vmatpush.bf16.msra.mxu0 %v2558
      %3351 = vmatpush.bf16.msra.mxu0 %v2556
      %3352 = vmatmul.bf16.gmra.mxu0 %v1855
      %v3353 = vpop.f32.mrf.mxu0
      %v3354 = vadd.f32 0.0, %v3353
      %v3355 = vpop.f32.mrf.mxu0
      %v3356 = vadd.f32 0.0, %v3355
      %3357 = vmatmul.bf16.gmra.mxu0 %v1868
      %v3358 = vpop.f32.mrf.mxu0
      %v3359 = vadd.f32 0.0, %v3358
      %v3360 = vpop.f32.mrf.mxu0
      %v3361 = vadd.f32 0.0, %v3360
      %3362 = vmatmul.bf16.gmra.mxu0 %v1881
      %v3363 = vpop.f32.mrf.mxu0
      %v3364 = vadd.f32 0.0, %v3363
      %v3365 = vpop.f32.mrf.mxu0
      %v3366 = vadd.f32 0.0, %v3365
      %3367 = vmatmul.bf16.gmra.mxu0 %v1894
      %v3368 = vpop.f32.mrf.mxu0
      %v3369 = vadd.f32 0.0, %v3368
      %v3370 = vpop.f32.mrf.mxu0
      %v3371 = vadd.f32 0.0, %v3370
      %3372 = vdwg.mxu0
      %3373 = vmatpush.bf16.msra.mxu0 %v2586
      %3374 = vmatpush.bf16.msra.mxu0 %v2584
      %3375 = vmatpush.bf16.msra.mxu0 %v2582
      %3376 = vmatpush.bf16.msra.mxu0 %v2580
      %3377 = vmatpush.bf16.msra.mxu0 %v2578
      %3378 = vmatpush.bf16.msra.mxu0 %v2576
      %3379 = vmatpush.bf16.msra.mxu0 %v2574
      %3380 = vmatpush.bf16.msra.mxu0 %v2572
      %3381 = vmatmul.bf16.gmra.mxu0 %v1856
      %v3382 = vpop.f32.mrf.mxu0
      %v3383 = vadd.f32 %v3354, %v3382
      %v3384 = vpop.f32.mrf.mxu0
      %v3385 = vadd.f32 %v3356, %v3384
      %3386 = vmatmul.bf16.gmra.mxu0 %v1869
      %v3387 = vpop.f32.mrf.mxu0
      %v3388 = vadd.f32 %v3359, %v3387
      %v3389 = vpop.f32.mrf.mxu0
      %v3390 = vadd.f32 %v3361, %v3389
      %3391 = vmatmul.bf16.gmra.mxu0 %v1882
      %v3392 = vpop.f32.mrf.mxu0
      %v3393 = vadd.f32 %v3364, %v3392
      %v3394 = vpop.f32.mrf.mxu0
      %v3395 = vadd.f32 %v3366, %v3394
      %3396 = vmatmul.bf16.gmra.mxu0 %v1895
      %v3397 = vpop.f32.mrf.mxu0
      %v3398 = vadd.f32 %v3369, %v3397
      %v3399 = vpop.f32.mrf.mxu0
      %v3400 = vadd.f32 %v3371, %v3399
      %3401 = vdwg.mxu0
      %3402 = vmatpush.bf16.msra.mxu0 %v2602
      %3403 = vmatpush.bf16.msra.mxu0 %v2600
      %3404 = vmatpush.bf16.msra.mxu0 %v2598
      %3405 = vmatpush.bf16.msra.mxu0 %v2596
      %3406 = vmatpush.bf16.msra.mxu0 %v2594
      %3407 = vmatpush.bf16.msra.mxu0 %v2592
      %3408 = vmatpush.bf16.msra.mxu0 %v2590
      %3409 = vmatpush.bf16.msra.mxu0 %v2588
      %3410 = vmatmul.bf16.gmra.mxu0 %v1857
      %v3411 = vpop.f32.mrf.mxu0
      %v3412 = vadd.f32 %v3383, %v3411
      %v3413 = vpop.f32.mrf.mxu0
      %v3414 = vadd.f32 %v3385, %v3413
      %3415 = vmatmul.bf16.gmra.mxu0 %v1870
      %v3416 = vpop.f32.mrf.mxu0
      %v3417 = vadd.f32 %v3388, %v3416
      %v3418 = vpop.f32.mrf.mxu0
      %v3419 = vadd.f32 %v3390, %v3418
      %3420 = vmatmul.bf16.gmra.mxu0 %v1883
      %v3421 = vpop.f32.mrf.mxu0
      %v3422 = vadd.f32 %v3393, %v3421
      %v3423 = vpop.f32.mrf.mxu0
      %v3424 = vadd.f32 %v3395, %v3423
      %3425 = vmatmul.bf16.gmra.mxu0 %v1896
      %v3426 = vpop.f32.mrf.mxu0
      %v3427 = vadd.f32 %v3398, %v3426
      %v3428 = vpop.f32.mrf.mxu0
      %v3429 = vadd.f32 %v3400, %v3428
      %3430 = vdwg.mxu0
      %3431 = vmatpush.bf16.msra.mxu0 %v2618
      %3432 = vmatpush.bf16.msra.mxu0 %v2616
      %3433 = vmatpush.bf16.msra.mxu0 %v2614
      %3434 = vmatpush.bf16.msra.mxu0 %v2612
      %3435 = vmatpush.bf16.msra.mxu0 %v2610
      %3436 = vmatpush.bf16.msra.mxu0 %v2608
      %3437 = vmatpush.bf16.msra.mxu0 %v2606
      %3438 = vmatpush.bf16.msra.mxu0 %v2604
      %3439 = vmatmul.bf16.gmra.mxu0 %v1858
      %v3440 = vpop.f32.mrf.mxu0
      %v3441 = vadd.f32 %v3412, %v3440
      %v3442 = vpop.f32.mrf.mxu0
      %v3443 = vadd.f32 %v3414, %v3442
      %3444 = vmatmul.bf16.gmra.mxu0 %v1871
      %v3445 = vpop.f32.mrf.mxu0
      %v3446 = vadd.f32 %v3417, %v3445
      %v3447 = vpop.f32.mrf.mxu0
      %v3448 = vadd.f32 %v3419, %v3447
      %3449 = vmatmul.bf16.gmra.mxu0 %v1884
      %v3450 = vpop.f32.mrf.mxu0
      %v3451 = vadd.f32 %v3422, %v3450
      %v3452 = vpop.f32.mrf.mxu0
      %v3453 = vadd.f32 %v3424, %v3452
      %3454 = vmatmul.bf16.gmra.mxu0 %v1897
      %v3455 = vpop.f32.mrf.mxu0
      %v3456 = vadd.f32 %v3427, %v3455
      %v3457 = vpop.f32.mrf.mxu0
      %v3458 = vadd.f32 %v3429, %v3457
      %3459 = vdwg.mxu0
      %3460 = vmatpush.bf16.msra.mxu0 %v2634
      %3461 = vmatpush.bf16.msra.mxu0 %v2632
      %3462 = vmatpush.bf16.msra.mxu0 %v2630
      %3463 = vmatpush.bf16.msra.mxu0 %v2628
      %3464 = vmatpush.bf16.msra.mxu0 %v2626
      %3465 = vmatpush.bf16.msra.mxu0 %v2624
      %3466 = vmatpush.bf16.msra.mxu0 %v2622
      %3467 = vmatpush.bf16.msra.mxu0 %v2620
      %3468 = vmatmul.bf16.gmra.mxu0 %v1859
      %v3469 = vpop.f32.mrf.mxu0
      %v3470 = vadd.f32 %v3441, %v3469
      %v3471 = vpop.f32.mrf.mxu0
      %v3472 = vadd.f32 %v3443, %v3471
      %3473 = vmatmul.bf16.gmra.mxu0 %v1872
      %v3474 = vpop.f32.mrf.mxu0
      %v3475 = vadd.f32 %v3446, %v3474
      %v3476 = vpop.f32.mrf.mxu0
      %v3477 = vadd.f32 %v3448, %v3476
      %3478 = vmatmul.bf16.gmra.mxu0 %v1885
      %v3479 = vpop.f32.mrf.mxu0
      %v3480 = vadd.f32 %v3451, %v3479
      %v3481 = vpop.f32.mrf.mxu0
      %v3482 = vadd.f32 %v3453, %v3481
      %3483 = vmatmul.bf16.gmra.mxu0 %v1898
      %v3484 = vpop.f32.mrf.mxu0
      %v3485 = vadd.f32 %v3456, %v3484
      %v3486 = vpop.f32.mrf.mxu0
      %v3487 = vadd.f32 %v3458, %v3486
      %3488 = vdwg.mxu0
      %3489 = vmatpush.bf16.msra.mxu0 %v2650
      %3490 = vmatpush.bf16.msra.mxu0 %v2648
      %3491 = vmatpush.bf16.msra.mxu0 %v2646
      %3492 = vmatpush.bf16.msra.mxu0 %v2644
      %3493 = vmatpush.bf16.msra.mxu0 %v2642
      %3494 = vmatpush.bf16.msra.mxu0 %v2640
      %3495 = vmatpush.bf16.msra.mxu0 %v2638
      %3496 = vmatpush.bf16.msra.mxu0 %v2636
      %3497 = vmatmul.bf16.gmra.mxu0 %v1860
      %v3498 = vpop.f32.mrf.mxu0
      %v3499 = vadd.f32 %v3470, %v3498
      %v3500 = vpop.f32.mrf.mxu0
      %v3501 = vadd.f32 %v3472, %v3500
      %3502 = vmatmul.bf16.gmra.mxu0 %v1873
      %v3503 = vpop.f32.mrf.mxu0
      %v3504 = vadd.f32 %v3475, %v3503
      %v3505 = vpop.f32.mrf.mxu0
      %v3506 = vadd.f32 %v3477, %v3505
      %3507 = vmatmul.bf16.gmra.mxu0 %v1886
      %v3508 = vpop.f32.mrf.mxu0
      %v3509 = vadd.f32 %v3480, %v3508
      %v3510 = vpop.f32.mrf.mxu0
      %v3511 = vadd.f32 %v3482, %v3510
      %3512 = vmatmul.bf16.gmra.mxu0 %v1899
      %v3513 = vpop.f32.mrf.mxu0
      %v3514 = vadd.f32 %v3485, %v3513
      %v3515 = vpop.f32.mrf.mxu0
      %v3516 = vadd.f32 %v3487, %v3515
      %3517 = vdwg.mxu0
      %3518 = vmatpush.bf16.msra.mxu0 %v2666
      %3519 = vmatpush.bf16.msra.mxu0 %v2664
      %3520 = vmatpush.bf16.msra.mxu0 %v2662
      %3521 = vmatpush.bf16.msra.mxu0 %v2660
      %3522 = vmatpush.bf16.msra.mxu0 %v2658
      %3523 = vmatpush.bf16.msra.mxu0 %v2656
      %3524 = vmatpush.bf16.msra.mxu0 %v2654
      %3525 = vmatpush.bf16.msra.mxu0 %v2652
      %3526 = vmatmul.bf16.gmra.mxu0 %v1861
      %v3527 = vpop.f32.mrf.mxu0
      %v3528 = vadd.f32 %v3499, %v3527
      %v3529 = vpop.f32.mrf.mxu0
      %v3530 = vadd.f32 %v3501, %v3529
      %3531 = vmatmul.bf16.gmra.mxu0 %v1874
      %v3532 = vpop.f32.mrf.mxu0
      %v3533 = vadd.f32 %v3504, %v3532
      %v3534 = vpop.f32.mrf.mxu0
      %v3535 = vadd.f32 %v3506, %v3534
      %3536 = vmatmul.bf16.gmra.mxu0 %v1887
      %v3537 = vpop.f32.mrf.mxu0
      %v3538 = vadd.f32 %v3509, %v3537
      %v3539 = vpop.f32.mrf.mxu0
      %v3540 = vadd.f32 %v3511, %v3539
      %3541 = vmatmul.bf16.gmra.mxu0 %v1900
      %v3542 = vpop.f32.mrf.mxu0
      %v3543 = vadd.f32 %v3514, %v3542
      %v3544 = vpop.f32.mrf.mxu0
      %v3545 = vadd.f32 %v3516, %v3544
      %3546 = vdwg.mxu0
      %3547 = vmatpush.bf16.msra.mxu0 %v2682
      %3548 = vmatpush.bf16.msra.mxu0 %v2680
      %3549 = vmatpush.bf16.msra.mxu0 %v2678
      %3550 = vmatpush.bf16.msra.mxu0 %v2676
      %3551 = vmatpush.bf16.msra.mxu0 %v2674
      %3552 = vmatpush.bf16.msra.mxu0 %v2672
      %3553 = vmatpush.bf16.msra.mxu0 %v2670
      %3554 = vmatpush.bf16.msra.mxu0 %v2668
      %3555 = vmatmul.bf16.gmra.mxu0 %v1862
      %v3556 = vpop.f32.mrf.mxu0
      %v3557 = vadd.f32 %v3528, %v3556
      %v3558 = vpop.f32.mrf.mxu0
      %v3559 = vadd.f32 %v3530, %v3558
      %3560 = vmatmul.bf16.gmra.mxu0 %v1875
      %v3561 = vpop.f32.mrf.mxu0
      %v3562 = vadd.f32 %v3533, %v3561
      %v3563 = vpop.f32.mrf.mxu0
      %v3564 = vadd.f32 %v3535, %v3563
      %3565 = vmatmul.bf16.gmra.mxu0 %v1888
      %v3566 = vpop.f32.mrf.mxu0
      %v3567 = vadd.f32 %v3538, %v3566
      %v3568 = vpop.f32.mrf.mxu0
      %v3569 = vadd.f32 %v3540, %v3568
      %3570 = vmatmul.bf16.gmra.mxu0 %v1901
      %v3571 = vpop.f32.mrf.mxu0
      %v3572 = vadd.f32 %v3543, %v3571
      %v3573 = vpop.f32.mrf.mxu0
      %v3574 = vadd.f32 %v3545, %v3573
      %3575 = vdwg.mxu0
      %3576 = vmatpush.bf16.msra.mxu0 %v2698
      %3577 = vmatpush.bf16.msra.mxu0 %v2696
      %3578 = vmatpush.bf16.msra.mxu0 %v2694
      %3579 = vmatpush.bf16.msra.mxu0 %v2692
      %3580 = vmatpush.bf16.msra.mxu0 %v2690
      %3581 = vmatpush.bf16.msra.mxu0 %v2688
      %3582 = vmatpush.bf16.msra.mxu0 %v2686
      %3583 = vmatpush.bf16.msra.mxu0 %v2684
      %3584 = vmatmul.bf16.gmra.mxu0 %v1863
      %v3585 = vpop.f32.mrf.mxu0
      %v3586 = vadd.f32 %v3557, %v3585
      %v3587 = vpop.f32.mrf.mxu0
      %v3588 = vadd.f32 %v3559, %v3587
      %3589 = vmatmul.bf16.gmra.mxu0 %v1876
      %v3590 = vpop.f32.mrf.mxu0
      %v3591 = vadd.f32 %v3562, %v3590
      %v3592 = vpop.f32.mrf.mxu0
      %v3593 = vadd.f32 %v3564, %v3592
      %3594 = vmatmul.bf16.gmra.mxu0 %v1889
      %v3595 = vpop.f32.mrf.mxu0
      %v3596 = vadd.f32 %v3567, %v3595
      %v3597 = vpop.f32.mrf.mxu0
      %v3598 = vadd.f32 %v3569, %v3597
      %3599 = vmatmul.bf16.gmra.mxu0 %v1902
      %v3600 = vpop.f32.mrf.mxu0
      %v3601 = vadd.f32 %v3572, %v3600
      %v3602 = vpop.f32.mrf.mxu0
      %v3603 = vadd.f32 %v3574, %v3602
      %3604 = vdwg.mxu0
      %3605 = vmatpush.bf16.msra.mxu0 %v2714
      %3606 = vmatpush.bf16.msra.mxu0 %v2712
      %3607 = vmatpush.bf16.msra.mxu0 %v2710
      %3608 = vmatpush.bf16.msra.mxu0 %v2708
      %3609 = vmatpush.bf16.msra.mxu0 %v2706
      %3610 = vmatpush.bf16.msra.mxu0 %v2704
      %3611 = vmatpush.bf16.msra.mxu0 %v2702
      %3612 = vmatpush.bf16.msra.mxu0 %v2700
      %3613 = vmatmul.bf16.gmra.mxu0 %v1864
      %v3614 = vpop.f32.mrf.mxu0
      %v3615 = vadd.f32 %v3586, %v3614
      %v3616 = vpop.f32.mrf.mxu0
      %v3617 = vadd.f32 %v3588, %v3616
      %3618 = vmatmul.bf16.gmra.mxu0 %v1877
      %v3619 = vpop.f32.mrf.mxu0
      %v3620 = vadd.f32 %v3591, %v3619
      %v3621 = vpop.f32.mrf.mxu0
      %v3622 = vadd.f32 %v3593, %v3621
      %3623 = vmatmul.bf16.gmra.mxu0 %v1890
      %v3624 = vpop.f32.mrf.mxu0
      %v3625 = vadd.f32 %v3596, %v3624
      %v3626 = vpop.f32.mrf.mxu0
      %v3627 = vadd.f32 %v3598, %v3626
      %3628 = vmatmul.bf16.gmra.mxu0 %v1903
      %v3629 = vpop.f32.mrf.mxu0
      %v3630 = vadd.f32 %v3601, %v3629
      %v3631 = vpop.f32.mrf.mxu0
      %v3632 = vadd.f32 %v3603, %v3631
      %3633 = vdwg.mxu0
      %3634 = vmatpush.bf16.msra.mxu0 %v2730
      %3635 = vmatpush.bf16.msra.mxu0 %v2728
      %3636 = vmatpush.bf16.msra.mxu0 %v2726
      %3637 = vmatpush.bf16.msra.mxu0 %v2724
      %3638 = vmatpush.bf16.msra.mxu0 %v2722
      %3639 = vmatpush.bf16.msra.mxu0 %v2720
      %3640 = vmatpush.bf16.msra.mxu0 %v2718
      %3641 = vmatpush.bf16.msra.mxu0 %v2716
      %3642 = vmatmul.bf16.gmra.mxu0 %v1865
      %v3643 = vpop.f32.mrf.mxu0
      %v3644 = vadd.f32 %v3615, %v3643
      %v3645 = vpop.f32.mrf.mxu0
      %v3646 = vadd.f32 %v3617, %v3645
      %3647 = vmatmul.bf16.gmra.mxu0 %v1878
      %v3648 = vpop.f32.mrf.mxu0
      %v3649 = vadd.f32 %v3620, %v3648
      %v3650 = vpop.f32.mrf.mxu0
      %v3651 = vadd.f32 %v3622, %v3650
      %3652 = vmatmul.bf16.gmra.mxu0 %v1891
      %v3653 = vpop.f32.mrf.mxu0
      %v3654 = vadd.f32 %v3625, %v3653
      %v3655 = vpop.f32.mrf.mxu0
      %v3656 = vadd.f32 %v3627, %v3655
      %3657 = vmatmul.bf16.gmra.mxu0 %v1904
      %v3658 = vpop.f32.mrf.mxu0
      %v3659 = vadd.f32 %v3630, %v3658
      %v3660 = vpop.f32.mrf.mxu0
      %v3661 = vadd.f32 %v3632, %v3660
      %3662 = vdwg.mxu0
      %3663 = vmatpush.bf16.msra.mxu0 %v2746
      %3664 = vmatpush.bf16.msra.mxu0 %v2744
      %3665 = vmatpush.bf16.msra.mxu0 %v2742
      %3666 = vmatpush.bf16.msra.mxu0 %v2740
      %3667 = vmatpush.bf16.msra.mxu0 %v2738
      %3668 = vmatpush.bf16.msra.mxu0 %v2736
      %3669 = vmatpush.bf16.msra.mxu0 %v2734
      %3670 = vmatpush.bf16.msra.mxu0 %v2732
      %3671 = vmatmul.bf16.gmra.mxu0 %v1866
      %v3672 = vpop.f32.mrf.mxu0
      %v3673 = vadd.f32 %v3644, %v3672
      %v3674 = vpop.f32.mrf.mxu0
      %v3675 = vadd.f32 %v3646, %v3674
      %3676 = vmatmul.bf16.gmra.mxu0 %v1879
      %v3677 = vpop.f32.mrf.mxu0
      %v3678 = vadd.f32 %v3649, %v3677
      %v3679 = vpop.f32.mrf.mxu0
      %v3680 = vadd.f32 %v3651, %v3679
      %3681 = vmatmul.bf16.gmra.mxu0 %v1892
      %v3682 = vpop.f32.mrf.mxu0
      %v3683 = vadd.f32 %v3654, %v3682
      %v3684 = vpop.f32.mrf.mxu0
      %v3685 = vadd.f32 %v3656, %v3684
      %3686 = vmatmul.bf16.gmra.mxu0 %v1905
      %v3687 = vpop.f32.mrf.mxu0
      %v3688 = vadd.f32 %v3659, %v3687
      %v3689 = vpop.f32.mrf.mxu0
      %v3690 = vadd.f32 %v3661, %v3689
      %3691 = vdwg.mxu0
      %3692 = vmatpush.bf16.msra.mxu0 0
      %3693 = vmatpush.bf16.msra.mxu0 0
      %3694 = vmatpush.bf16.msra.mxu0 0
      %3695 = vmatpush.bf16.msra.mxu0 0
      %3696 = vmatpush.bf16.msra.mxu0 %v2754
      %3697 = vmatpush.bf16.msra.mxu0 %v2752
      %3698 = vmatpush.bf16.msra.mxu0 %v2750
      %3699 = vmatpush.bf16.msra.mxu0 %v2748
      %3700 = vmatmul.bf16.gmra.mxu0 %v2956
      %v3701 = vpop.f32.mrf.mxu0
      %v3702 = vadd.f32 %v3673, %v3701
      %v3703 = vpop.f32.mrf.mxu0
      %v3704 = vadd.f32 %v3675, %v3703
      %3705 = vmatmul.bf16.gmra.mxu0 %v2959
      %v3706 = vpop.f32.mrf.mxu0
      %v3707 = vadd.f32 %v3678, %v3706
      %v3708 = vpop.f32.mrf.mxu0
      %v3709 = vadd.f32 %v3680, %v3708
      %3710 = vmatmul.bf16.gmra.mxu0 %v2962
      %v3711 = vpop.f32.mrf.mxu0
      %v3712 = vadd.f32 %v3683, %v3711
      %v3713 = vpop.f32.mrf.mxu0
      %v3714 = vadd.f32 %v3685, %v3713
      %3715 = vmatmul.bf16.gmra.mxu0 %v2965
      %v3716 = vpop.f32.mrf.mxu0
      %v3717 = vadd.f32 %v3688, %v3716
      %v3718 = vpop.f32.mrf.mxu0
      %v3719 = vadd.f32 %v3690, %v3718
      %3720 = vdwg.mxu0
      %s3721 = scalar_lea.vmem %s4, 64
      %v3722 = vld [vmem:[%s3721] sm:$0xff]
      %v3723 = vld [vmem:[%s3721 + $0x8] sm:$0xff]
      %v3724 = vld [vmem:[%s3721 + $0x10] sm:$0xff]
      %v3725 = vld [vmem:[%s3721 + $0x18] sm:$0xff]
      %v3726 = vld [vmem:[%s3721 + $0x20] sm:$0xff]
      %v3727 = vld [vmem:[%s3721 + $0x28] sm:$0xff]
      %v3728 = vld [vmem:[%s3721 + $0x30] sm:$0xff]
      %v3729 = vld [vmem:[%s3721 + $0x38] sm:$0xff]
      %3731 = vset.pattern.permute.xlu0 0
      %3732 = vperm.xlu0 %3731, %v3722
      %v3733 = vpop.permute.xlu0 %3732
      %3736 = vset.pattern.permute.xlu0 0
      %3737 = vperm.xlu0 %3736, %v3723
      %v3738 = vpop.permute.xlu0 %3737
      %3741 = vset.pattern.permute.xlu0 0
      %3742 = vperm.xlu0 %3741, %v3724
      %v3743 = vpop.permute.xlu0 %3742
      %3746 = vset.pattern.permute.xlu0 0
      %3747 = vperm.xlu0 %3746, %v3725
      %v3748 = vpop.permute.xlu0 %3747
      %3751 = vset.pattern.permute.xlu0 0
      %3752 = vperm.xlu0 %3751, %v3726
      %v3753 = vpop.permute.xlu0 %3752
      %3756 = vset.pattern.permute.xlu0 0
      %3757 = vperm.xlu0 %3756, %v3727
      %v3758 = vpop.permute.xlu0 %3757
      %3761 = vset.pattern.permute.xlu0 0
      %3762 = vperm.xlu0 %3761, %v3728
      %v3763 = vpop.permute.xlu0 %3762
      %3766 = vset.pattern.permute.xlu0 0
      %3767 = vperm.xlu0 %3766, %v3729
      %v3768 = vpop.permute.xlu0 %3767
      %v3770 = vmul.f32 %v3325, %v3733
      %v3771 = vmul.f32 %v3702, %v3733
      %v3772 = vmul.f32 %v3327, %v3738
      %v3773 = vmul.f32 %v3704, %v3738
      %v3774 = vmul.f32 %v3330, %v3743
      %v3775 = vmul.f32 %v3707, %v3743
      %v3776 = vmul.f32 %v3332, %v3748
      %v3777 = vmul.f32 %v3709, %v3748
      %v3778 = vmul.f32 %v3335, %v3753
      %v3779 = vmul.f32 %v3712, %v3753
      %v3780 = vmul.f32 %v3337, %v3758
      %v3781 = vmul.f32 %v3714, %v3758
      %v3782 = vmul.f32 %v3340, %v3763
      %v3783 = vmul.f32 %v3717, %v3763
      %v3784 = vmul.f32 %v3342, %v3768
      %v3785 = vmul.f32 %v3719, %v3768
      %s3786 = scalar_lea.vmem %s5, 64
      %v3787 = vld [vmem:[%s3786] sm:$0xff]
      %v3788 = vld [vmem:[%s3786 + $0x8] sm:$0xff]
      %v3789 = vld [vmem:[%s3786 + $0x10] sm:$0xff]
      %v3790 = vld [vmem:[%s3786 + $0x18] sm:$0xff]
      %v3791 = vld [vmem:[%s3786 + $0x20] sm:$0xff]
      %v3792 = vld [vmem:[%s3786 + $0x28] sm:$0xff]
      %v3793 = vld [vmem:[%s3786 + $0x30] sm:$0xff]
      %v3794 = vld [vmem:[%s3786 + $0x38] sm:$0xff]
      %3796 = vset.pattern.permute.xlu0 0
      %3797 = vperm.xlu0 %3796, %v3787
      %v3798 = vpop.permute.xlu0 %3797
      %3801 = vset.pattern.permute.xlu0 0
      %3802 = vperm.xlu0 %3801, %v3788
      %v3803 = vpop.permute.xlu0 %3802
      %3806 = vset.pattern.permute.xlu0 0
      %3807 = vperm.xlu0 %3806, %v3789
      %v3808 = vpop.permute.xlu0 %3807
      %3811 = vset.pattern.permute.xlu0 0
      %3812 = vperm.xlu0 %3811, %v3790
      %v3813 = vpop.permute.xlu0 %3812
      %3816 = vset.pattern.permute.xlu0 0
      %3817 = vperm.xlu0 %3816, %v3791
      %v3818 = vpop.permute.xlu0 %3817
      %3821 = vset.pattern.permute.xlu0 0
      %3822 = vperm.xlu0 %3821, %v3792
      %v3823 = vpop.permute.xlu0 %3822
      %3826 = vset.pattern.permute.xlu0 0
      %3827 = vperm.xlu0 %3826, %v3793
      %v3828 = vpop.permute.xlu0 %3827
      %3831 = vset.pattern.permute.xlu0 0
      %3832 = vperm.xlu0 %3831, %v3794
      %v3833 = vpop.permute.xlu0 %3832
      %v3835 = vadd.f32 %v3770, %v3798
      %v3836 = vadd.f32 %v3771, %v3798
      %v3837 = vadd.f32 %v3772, %v3803
      %v3838 = vadd.f32 %v3773, %v3803
      %v3839 = vadd.f32 %v3774, %v3808
      %v3840 = vadd.f32 %v3775, %v3808
      %v3841 = vadd.f32 %v3776, %v3813
      %v3842 = vadd.f32 %v3777, %v3813
      %v3843 = vadd.f32 %v3778, %v3818
      %v3844 = vadd.f32 %v3779, %v3818
      %v3845 = vadd.f32 %v3780, %v3823
      %v3846 = vadd.f32 %v3781, %v3823
      %v3847 = vadd.f32 %v3782, %v3828
      %v3848 = vadd.f32 %v3783, %v3828
      %v3849 = vadd.f32 %v3784, %v3833
      %v3850 = vadd.f32 %v3785, %v3833
      %v3851 = vmax.f32 %v3835, 0.0
      %v3852 = vmax.f32 %v3836, 0.0
      %v3853 = vmax.f32 %v3837, 0.0
      %v3854 = vmax.f32 %v3838, 0.0
      %v3855 = vmax.f32 %v3839, 0.0
      %v3856 = vmax.f32 %v3840, 0.0
      %v3857 = vmax.f32 %v3841, 0.0
      %v3858 = vmax.f32 %v3842, 0.0
      %v3859 = vmax.f32 %v3843, 0.0
      %v3860 = vmax.f32 %v3844, 0.0
      %v3861 = vmax.f32 %v3845, 0.0
      %v3862 = vmax.f32 %v3846, 0.0
      %v3863 = vmax.f32 %v3847, 0.0
      %v3864 = vmax.f32 %v3848, 0.0
      %v3865 = vmax.f32 %v3849, 0.0
      %v3866 = vmax.f32 %v3850, 0.0
      %s3867 = scalar_lea.vmem [#allocation2], 128
      %3868 = vst [vmem:[%s3867] sm:$0xff] %v3851
      %3869 = vst [vmem:[%s3867 + $0x8] sm:$0xff] %v3852
      %3870 = vst [vmem:[%s3867 + $0x10] sm:$0xff] %v3853
      %3871 = vst [vmem:[%s3867 + $0x18] sm:$0xff] %v3854
      %3872 = vst [vmem:[%s3867 + $0x20] sm:$0xff] %v3855
      %3873 = vst [vmem:[%s3867 + $0x28] sm:$0xff] %v3856
      %3874 = vst [vmem:[%s3867 + $0x30] sm:$0xff] %v3857
      %3875 = vst [vmem:[%s3867 + $0x38] sm:$0xff] %v3858
      %3876 = vst [vmem:[%s3867 + $0x40] sm:$0xff] %v3859
      %3877 = vst [vmem:[%s3867 + $0x48] sm:$0xff] %v3860
      %3878 = vst [vmem:[%s3867 + $0x50] sm:$0xff] %v3861
      %3879 = vst [vmem:[%s3867 + $0x58] sm:$0xff] %v3862
      %3880 = vst [vmem:[%s3867 + $0x60] sm:$0xff] %v3863
      %3881 = vst [vmem:[%s3867 + $0x68] sm:$0xff] %v3864
      %3882 = vst [vmem:[%s3867 + $0x70] sm:$0xff] %v3865
      %3883 = vst [vmem:[%s3867 + $0x78] sm:$0xff] %v3866
      %v3884 = vadd.f32 %v3851, %v3852
      %3885 = vadd.xlane.f32.xlu0 %v3884
      %v3886 = vpop.xlane.xlu0 %3885
      %v3887 = vadd.f32 %v3853, %v3854
      %3888 = vadd.xlane.f32.xlu0 %v3887
      %v3889 = vpop.xlane.xlu0 %3888
      %v3890 = vadd.f32 %v3855, %v3856
      %3891 = vadd.xlane.f32.xlu0 %v3890
      %v3892 = vpop.xlane.xlu0 %3891
      %v3893 = vadd.f32 %v3857, %v3858
      %3894 = vadd.xlane.f32.xlu0 %v3893
      %v3895 = vpop.xlane.xlu0 %3894
      %v3896 = vadd.f32 %v3859, %v3860
      %3897 = vadd.xlane.f32.xlu0 %v3896
      %v3898 = vpop.xlane.xlu0 %3897
      %v3899 = vadd.f32 %v3861, %v3862
      %3900 = vadd.xlane.f32.xlu0 %v3899
      %v3901 = vpop.xlane.xlu0 %3900
      %v3902 = vadd.f32 %v3863, %v3864
      %3903 = vadd.xlane.f32.xlu0 %v3902
      %v3904 = vpop.xlane.xlu0 %3903
      %v3905 = vadd.f32 %v3865, %v3866
      %3906 = vadd.xlane.f32.xlu0 %v3905
      %v3907 = vpop.xlane.xlu0 %3906
      %v3908 = vmul.f32 %v3886, %v1430
      %v3909 = vmul.f32 %v3889, %v1430
      %v3910 = vmul.f32 %v3892, %v1430
      %v3911 = vmul.f32 %v3895, %v1430
      %v3912 = vmul.f32 %v3898, %v1430
      %v3913 = vmul.f32 %v3901, %v1430
      %v3914 = vmul.f32 %v3904, %v1430
      %v3915 = vmul.f32 %v3907, %v1430
      %v3916 = vadd.f32 %v1431, %v3908
      %v3917 = vadd.f32 %v1432, %v3909
      %v3918 = vadd.f32 %v1433, %v3910
      %v3919 = vadd.f32 %v1434, %v3911
      %v3920 = vadd.f32 %v1435, %v3912
      %v3921 = vadd.f32 %v1436, %v3913
      %v3922 = vadd.f32 %v1437, %v3914
      %v3923 = vadd.f32 %v1438, %v3915
      %v3924 = vld [vmem:[%s6] sm:$0xff]
      %v3925 = vld [vmem:[%s6 + $0x8] sm:$0xff]
      %v3926 = vld [vmem:[%s6 + $0x10] sm:$0xff]
      %v3927 = vld [vmem:[%s6 + $0x18] sm:$0xff]
      %v3928 = vld [vmem:[%s7] sm:$0xff]
      %v3929 = vld [vmem:[%s7 + $0x8] sm:$0xff]
      %v3930 = vld [vmem:[%s7 + $0x10] sm:$0xff]
      %v3931 = vld [vmem:[%s7 + $0x18] sm:$0xff]
      %v3933 = vsel %vm937, %v3924, 0
      %v3936 = vsel %vm937, %v3925, 0
      %v3939 = vsel %vm937, %v3926, 0
      %v3942 = vsel %vm937, %v3927, 0
      %3944 = vmatpush.msra.mxu0 0.0
      %3945 = vmatpush.msra.mxu0 0.0
      %3946 = vmatpush.msra.mxu0 0.0
      %3947 = vmatpush.msra.mxu0 0.0
      %3948 = vmatpush.msra.mxu0 0.0
      %3949 = vmatpush.msra.mxu0 0.0
      %3950 = vmatpush.msra.mxu0 0.0
      %3951 = vmatpush.msra.mxu0 0.0
      %3952 = vmatpush.msra.mxu0 %v3923
      %3953 = vmatpush.msra.mxu0 %v3922
      %3954 = vmatpush.msra.mxu0 %v3921
      %3955 = vmatpush.msra.mxu0 %v3920
      %3956 = vmatpush.msra.mxu0 %v3919
      %3957 = vmatpush.msra.mxu0 %v3918
      %3958 = vmatpush.msra.mxu0 %v3917
      %3959 = vmatpush.msra.mxu0 %v3916
      %3960 = vmatmul.f32.gmra.mxu0 %v3933
      %v3961 = vpop.f32.mrf.mxu0
      %v3962 = vadd.f32 %v3928, %v3961
      %3963 = vmatmul.f32.gmra.mxu0 %v3936
      %v3964 = vpop.f32.mrf.mxu0
      %v3965 = vadd.f32 %v3929, %v3964
      %3966 = vmatmul.f32.gmra.mxu0 %v3939
      %v3967 = vpop.f32.mrf.mxu0
      %v3968 = vadd.f32 %v3930, %v3967
      %3969 = vmatmul.f32.gmra.mxu0 %v3942
      %v3970 = vpop.f32.mrf.mxu0
      %v3971 = vadd.f32 %v3931, %v3970
      %3972 = vdwg.mxu0
      %v3973 = vld [vmem:[%s8] sm:$0xff]
      %v3974 = vld [vmem:[%s8 + $0x8] sm:$0xff]
      %v3975 = vld [vmem:[%s8 + $0x10] sm:$0xff]
      %v3976 = vld [vmem:[%s8 + $0x18] sm:$0xff]
      %v3977 = vld [vmem:[%s8 + $0x20] sm:$0xff]
      %v3978 = vld [vmem:[%s8 + $0x28] sm:$0xff]
      %v3979 = vld [vmem:[%s8 + $0x30] sm:$0xff]
      %v3980 = vld [vmem:[%s8 + $0x38] sm:$0xff]
      %v3981 = vld [vmem:[%s9] sm:$0xff]
      %v3982 = vld [vmem:[%s9 + $0x8] sm:$0xff]
      %v3983 = vld [vmem:[%s9 + $0x10] sm:$0xff]
      %v3984 = vld [vmem:[%s9 + $0x18] sm:$0xff]
      %v3985 = vld [vmem:[%s9 + $0x20] sm:$0xff]
      %v3986 = vld [vmem:[%s9 + $0x28] sm:$0xff]
      %v3987 = vld [vmem:[%s9 + $0x30] sm:$0xff]
      %v3988 = vld [vmem:[%s9 + $0x38] sm:$0xff]
      %vm3989 = vcmask 261120
      %v3991 = vsel %vm3989, %v3973, 0
      %v3994 = vsel %vm3989, %v3974, 0
      %v3997 = vsel %vm3989, %v3975, 0
      %v4000 = vsel %vm3989, %v3976, 0
      %v4003 = vsel %vm3989, %v3977, 0
      %v4006 = vsel %vm3989, %v3978, 0
      %v4009 = vsel %vm3989, %v3979, 0
      %v4012 = vsel %vm3989, %v3980, 0
      %4014 = vmatpush.msra.mxu0 0.0
      %4015 = vmatpush.msra.mxu0 0.0
      %4016 = vmatpush.msra.mxu0 0.0
      %4017 = vmatpush.msra.mxu0 0.0
      %4018 = vmatpush.msra.mxu0 0.0
      %4019 = vmatpush.msra.mxu0 0.0
      %4020 = vmatpush.msra.mxu0 0.0
      %4021 = vmatpush.msra.mxu0 0.0
      %4022 = vmatpush.msra.mxu0 0.0
      %4023 = vmatpush.msra.mxu0 0.0
      %4024 = vmatpush.msra.mxu0 0.0
      %4025 = vmatpush.msra.mxu0 0.0
      %4026 = vmatpush.msra.mxu0 %v3971
      %4027 = vmatpush.msra.mxu0 %v3968
      %4028 = vmatpush.msra.mxu0 %v3965
      %4029 = vmatpush.msra.mxu0 %v3962
      %4030 = vmatmul.f32.gmra.mxu0 %v3991
      %v4031 = vpop.f32.mrf.mxu0
      %v4032 = vadd.f32 %v3981, %v4031
      %4033 = vmatmul.f32.gmra.mxu0 %v3994
      %v4034 = vpop.f32.mrf.mxu0
      %v4035 = vadd.f32 %v3982, %v4034
      %4036 = vmatmul.f32.gmra.mxu0 %v3997
      %v4037 = vpop.f32.mrf.mxu0
      %v4038 = vadd.f32 %v3983, %v4037
      %4039 = vmatmul.f32.gmra.mxu0 %v4000
      %v4040 = vpop.f32.mrf.mxu0
      %v4041 = vadd.f32 %v3984, %v4040
      %4042 = vmatmul.f32.gmra.mxu0 %v4003
      %v4043 = vpop.f32.mrf.mxu0
      %v4044 = vadd.f32 %v3985, %v4043
      %4045 = vmatmul.f32.gmra.mxu0 %v4006
      %v4046 = vpop.f32.mrf.mxu0
      %v4047 = vadd.f32 %v3986, %v4046
      %4048 = vmatmul.f32.gmra.mxu0 %v4009
      %v4049 = vpop.f32.mrf.mxu0
      %v4050 = vadd.f32 %v3987, %v4049
      %4051 = vmatmul.f32.gmra.mxu0 %v4012
      %v4052 = vpop.f32.mrf.mxu0
      %v4053 = vadd.f32 %v3988, %v4052
      %4054 = vdwg.mxu0
      %s4055 = scalar_lea.vmem %s8, 64
      %v4056 = vld [vmem:[%s4055] sm:$0xff]
      %v4057 = vld [vmem:[%s4055 + $0x8] sm:$0xff]
      %v4058 = vld [vmem:[%s4055 + $0x10] sm:$0xff]
      %v4059 = vld [vmem:[%s4055 + $0x18] sm:$0xff]
      %v4060 = vld [vmem:[%s4055 + $0x20] sm:$0xff]
      %v4061 = vld [vmem:[%s4055 + $0x28] sm:$0xff]
      %v4062 = vld [vmem:[%s4055 + $0x30] sm:$0xff]
      %v4063 = vld [vmem:[%s4055 + $0x38] sm:$0xff]
      %s4064 = scalar_lea.vmem %s9, 64
      %v4065 = vld [vmem:[%s4064] sm:$0xff]
      %v4066 = vld [vmem:[%s4064 + $0x8] sm:$0xff]
      %v4067 = vld [vmem:[%s4064 + $0x10] sm:$0xff]
      %v4068 = vld [vmem:[%s4064 + $0x18] sm:$0xff]
      %v4069 = vld [vmem:[%s4064 + $0x20] sm:$0xff]
      %v4070 = vld [vmem:[%s4064 + $0x28] sm:$0xff]
      %v4071 = vld [vmem:[%s4064 + $0x30] sm:$0xff]
      %v4072 = vld [vmem:[%s4064 + $0x38] sm:$0xff]
      %v4074 = vsel %vm3989, %v4056, 0
      %v4077 = vsel %vm3989, %v4057, 0
      %v4080 = vsel %vm3989, %v4058, 0
      %v4083 = vsel %vm3989, %v4059, 0
      %v4086 = vsel %vm3989, %v4060, 0
      %v4089 = vsel %vm3989, %v4061, 0
      %v4092 = vsel %vm3989, %v4062, 0
      %v4095 = vsel %vm3989, %v4063, 0
      %4097 = vmatpush.msra.mxu0 0.0
      %4098 = vmatpush.msra.mxu0 0.0
      %4099 = vmatpush.msra.mxu0 0.0
      %4100 = vmatpush.msra.mxu0 0.0
      %4101 = vmatpush.msra.mxu0 0.0
      %4102 = vmatpush.msra.mxu0 0.0
      %4103 = vmatpush.msra.mxu0 0.0
      %4104 = vmatpush.msra.mxu0 0.0
      %4105 = vmatpush.msra.mxu0 0.0
      %4106 = vmatpush.msra.mxu0 0.0
      %4107 = vmatpush.msra.mxu0 0.0
      %4108 = vmatpush.msra.mxu0 0.0
      %4109 = vmatpush.msra.mxu0 %v3971
      %4110 = vmatpush.msra.mxu0 %v3968
      %4111 = vmatpush.msra.mxu0 %v3965
      %4112 = vmatpush.msra.mxu0 %v3962
      %4113 = vmatmul.f32.gmra.mxu0 %v4074
      %v4114 = vpop.f32.mrf.mxu0
      %v4115 = vadd.f32 %v4065, %v4114
      %4116 = vmatmul.f32.gmra.mxu0 %v4077
      %v4117 = vpop.f32.mrf.mxu0
      %v4118 = vadd.f32 %v4066, %v4117
      %4119 = vmatmul.f32.gmra.mxu0 %v4080
      %v4120 = vpop.f32.mrf.mxu0
      %v4121 = vadd.f32 %v4067, %v4120
      %4122 = vmatmul.f32.gmra.mxu0 %v4083
      %v4123 = vpop.f32.mrf.mxu0
      %v4124 = vadd.f32 %v4068, %v4123
      %4125 = vmatmul.f32.gmra.mxu0 %v4086
      %v4126 = vpop.f32.mrf.mxu0
      %v4127 = vadd.f32 %v4069, %v4126
      %4128 = vmatmul.f32.gmra.mxu0 %v4089
      %v4129 = vpop.f32.mrf.mxu0
      %v4130 = vadd.f32 %v4070, %v4129
      %4131 = vmatmul.f32.gmra.mxu0 %v4092
      %v4132 = vpop.f32.mrf.mxu0
      %v4133 = vadd.f32 %v4071, %v4132
      %4134 = vmatmul.f32.gmra.mxu0 %v4095
      %v4135 = vpop.f32.mrf.mxu0
      %v4136 = vadd.f32 %v4072, %v4135
      %4137 = vdwg.mxu0
      %v4138 = vmax.f32 %v4032, %v4115
      %v4139 = vmax.f32 %v4035, %v4118
      %v4140 = vmax.f32 %v4038, %v4121
      %v4141 = vmax.f32 %v4041, %v4124
      %v4142 = vmax.f32 %v4044, %v4127
      %v4143 = vmax.f32 %v4047, %v4130
      %v4144 = vmax.f32 %v4050, %v4133
      %v4145 = vmax.f32 %v4053, %v4136
      %v4146 = vsub.f32 %v4032, %v4138
      %v4147 = vsub.f32 %v4035, %v4139
      %v4148 = vsub.f32 %v4038, %v4140
      %v4149 = vsub.f32 %v4041, %v4141
      %v4150 = vsub.f32 %v4044, %v4142
      %v4151 = vsub.f32 %v4047, %v4143
      %v4152 = vsub.f32 %v4050, %v4144
      %v4153 = vsub.f32 %v4053, %v4145
      %v4154 = vmul.f32 %v4146, 1.442695
      %v4155 = vpow.pop %v4154
      %v4156 = vmul.f32 %v4147, 1.442695
      %v4157 = vpow.pop %v4156
      %v4158 = vmul.f32 %v4148, 1.442695
      %v4159 = vpow.pop %v4158
      %v4160 = vmul.f32 %v4149, 1.442695
      %v4161 = vpow.pop %v4160
      %v4162 = vmul.f32 %v4150, 1.442695
      %v4163 = vpow.pop %v4162
      %v4164 = vmul.f32 %v4151, 1.442695
      %v4165 = vpow.pop %v4164
      %v4166 = vmul.f32 %v4152, 1.442695
      %v4167 = vpow.pop %v4166
      %v4168 = vmul.f32 %v4153, 1.442695
      %v4169 = vpow.pop %v4168
      %v4170 = vsub.f32 %v4115, %v4138
      %v4171 = vsub.f32 %v4118, %v4139
      %v4172 = vsub.f32 %v4121, %v4140
      %v4173 = vsub.f32 %v4124, %v4141
      %v4174 = vsub.f32 %v4127, %v4142
      %v4175 = vsub.f32 %v4130, %v4143
      %v4176 = vsub.f32 %v4133, %v4144
      %v4177 = vsub.f32 %v4136, %v4145
      %v4178 = vmul.f32 %v4170, 1.442695
      %v4179 = vpow.pop %v4178
      %v4180 = vmul.f32 %v4171, 1.442695
      %v4181 = vpow.pop %v4180
      %v4182 = vmul.f32 %v4172, 1.442695
      %v4183 = vpow.pop %v4182
      %v4184 = vmul.f32 %v4173, 1.442695
      %v4185 = vpow.pop %v4184
      %v4186 = vmul.f32 %v4174, 1.442695
      %v4187 = vpow.pop %v4186
      %v4188 = vmul.f32 %v4175, 1.442695
      %v4189 = vpow.pop %v4188
      %v4190 = vmul.f32 %v4176, 1.442695
      %v4191 = vpow.pop %v4190
      %v4192 = vmul.f32 %v4177, 1.442695
      %v4193 = vpow.pop %v4192
      %v4194 = vadd.f32 %v4155, %v4179
      %v4195 = vadd.f32 %v4157, %v4181
      %v4196 = vadd.f32 %v4159, %v4183
      %v4197 = vadd.f32 %v4161, %v4185
      %v4198 = vadd.f32 %v4163, %v4187
      %v4199 = vadd.f32 %v4165, %v4189
      %v4200 = vadd.f32 %v4167, %v4191
      %v4201 = vadd.f32 %v4169, %v4193
      %v4202 = vrcp.pop %v4194
      %v4203 = vmul.f32 %v4194, %v4202
      %v4204 = vsub.f32 1.0, %v4203
      %v4205 = vmul.f32 %v4202, %v4204
      %v4206 = vadd.f32 %v4202, %v4205
      %vm4207 = vweird.f32 %v4194
      %vm4208 = vweird.f32 %v4202
      %vm4209 = vmor %vm4207, %vm4208
      %v4210 = vsel %vm4209, %v4202, %v4206
      %v4211 = vand.u32 2147483647, %v4194
      %vm4212 = vcmp.eq.f32.partialorder %v4211, 8.507059e+37
      %v4213 = vand.u32 %v4194, 2147483648
      %v4214 = vor.u32 1.1754944e-38, %v4213
      %v4215 = vsel %vm4212, %v4214, %v4210
      %v4216 = vmul.f32 1.0, %v4215
      %v4217 = vrcp.pop %v4195
      %v4218 = vmul.f32 %v4195, %v4217
      %v4219 = vsub.f32 1.0, %v4218
      %v4220 = vmul.f32 %v4217, %v4219
      %v4221 = vadd.f32 %v4217, %v4220
      %vm4222 = vweird.f32 %v4195
      %vm4223 = vweird.f32 %v4217
      %vm4224 = vmor %vm4222, %vm4223
      %v4225 = vsel %vm4224, %v4217, %v4221
      %v4226 = vand.u32 2147483647, %v4195
      %vm4227 = vcmp.eq.f32.partialorder %v4226, 8.507059e+37
      %v4228 = vand.u32 %v4195, 2147483648
      %v4229 = vor.u32 1.1754944e-38, %v4228
      %v4230 = vsel %vm4227, %v4229, %v4225
      %v4231 = vmul.f32 1.0, %v4230
      %v4232 = vrcp.pop %v4196
      %v4233 = vmul.f32 %v4196, %v4232
      %v4234 = vsub.f32 1.0, %v4233
      %v4235 = vmul.f32 %v4232, %v4234
      %v4236 = vadd.f32 %v4232, %v4235
      %vm4237 = vweird.f32 %v4196
      %vm4238 = vweird.f32 %v4232
      %vm4239 = vmor %vm4237, %vm4238
      %v4240 = vsel %vm4239, %v4232, %v4236
      %v4241 = vand.u32 2147483647, %v4196
      %vm4242 = vcmp.eq.f32.partialorder %v4241, 8.507059e+37
      %v4243 = vand.u32 %v4196, 2147483648
      %v4244 = vor.u32 1.1754944e-38, %v4243
      %v4245 = vsel %vm4242, %v4244, %v4240
      %v4246 = vmul.f32 1.0, %v4245
      %v4247 = vrcp.pop %v4197
      %v4248 = vmul.f32 %v4197, %v4247
      %v4249 = vsub.f32 1.0, %v4248
      %v4250 = vmul.f32 %v4247, %v4249
      %v4251 = vadd.f32 %v4247, %v4250
      %vm4252 = vweird.f32 %v4197
      %vm4253 = vweird.f32 %v4247
      %vm4254 = vmor %vm4252, %vm4253
      %v4255 = vsel %vm4254, %v4247, %v4251
      %v4256 = vand.u32 2147483647, %v4197
      %vm4257 = vcmp.eq.f32.partialorder %v4256, 8.507059e+37
      %v4258 = vand.u32 %v4197, 2147483648
      %v4259 = vor.u32 1.1754944e-38, %v4258
      %v4260 = vsel %vm4257, %v4259, %v4255
      %v4261 = vmul.f32 1.0, %v4260
      %v4262 = vrcp.pop %v4198
      %v4263 = vmul.f32 %v4198, %v4262
      %v4264 = vsub.f32 1.0, %v4263
      %v4265 = vmul.f32 %v4262, %v4264
      %v4266 = vadd.f32 %v4262, %v4265
      %vm4267 = vweird.f32 %v4198
      %vm4268 = vweird.f32 %v4262
      %vm4269 = vmor %vm4267, %vm4268
      %v4270 = vsel %vm4269, %v4262, %v4266
      %v4271 = vand.u32 2147483647, %v4198
      %vm4272 = vcmp.eq.f32.partialorder %v4271, 8.507059e+37
      %v4273 = vand.u32 %v4198, 2147483648
      %v4274 = vor.u32 1.1754944e-38, %v4273
      %v4275 = vsel %vm4272, %v4274, %v4270
      %v4276 = vmul.f32 1.0, %v4275
      %v4277 = vrcp.pop %v4199
      %v4278 = vmul.f32 %v4199, %v4277
      %v4279 = vsub.f32 1.0, %v4278
      %v4280 = vmul.f32 %v4277, %v4279
      %v4281 = vadd.f32 %v4277, %v4280
      %vm4282 = vweird.f32 %v4199
      %vm4283 = vweird.f32 %v4277
      %vm4284 = vmor %vm4282, %vm4283
      %v4285 = vsel %vm4284, %v4277, %v4281
      %v4286 = vand.u32 2147483647, %v4199
      %vm4287 = vcmp.eq.f32.partialorder %v4286, 8.507059e+37
      %v4288 = vand.u32 %v4199, 2147483648
      %v4289 = vor.u32 1.1754944e-38, %v4288
      %v4290 = vsel %vm4287, %v4289, %v4285
      %v4291 = vmul.f32 1.0, %v4290
      %v4292 = vrcp.pop %v4200
      %v4293 = vmul.f32 %v4200, %v4292
      %v4294 = vsub.f32 1.0, %v4293
      %v4295 = vmul.f32 %v4292, %v4294
      %v4296 = vadd.f32 %v4292, %v4295
      %vm4297 = vweird.f32 %v4200
      %vm4298 = vweird.f32 %v4292
      %vm4299 = vmor %vm4297, %vm4298
      %v4300 = vsel %vm4299, %v4292, %v4296
      %v4301 = vand.u32 2147483647, %v4200
      %vm4302 = vcmp.eq.f32.partialorder %v4301, 8.507059e+37
      %v4303 = vand.u32 %v4200, 2147483648
      %v4304 = vor.u32 1.1754944e-38, %v4303
      %v4305 = vsel %vm4302, %v4304, %v4300
      %v4306 = vmul.f32 1.0, %v4305
      %v4307 = vrcp.pop %v4201
      %v4308 = vmul.f32 %v4201, %v4307
      %v4309 = vsub.f32 1.0, %v4308
      %v4310 = vmul.f32 %v4307, %v4309
      %v4311 = vadd.f32 %v4307, %v4310
      %vm4312 = vweird.f32 %v4201
      %vm4313 = vweird.f32 %v4307
      %vm4314 = vmor %vm4312, %vm4313
      %v4315 = vsel %vm4314, %v4307, %v4311
      %v4316 = vand.u32 2147483647, %v4201
      %vm4317 = vcmp.eq.f32.partialorder %v4316, 8.507059e+37
      %v4318 = vand.u32 %v4201, 2147483648
      %v4319 = vor.u32 1.1754944e-38, %v4318
      %v4320 = vsel %vm4317, %v4319, %v4315
      %v4321 = vmul.f32 1.0, %v4320
      %v4322 = vmul.f32 %v4155, %v4216
      %v4323 = vmul.f32 %v4157, %v4231
      %v4324 = vmul.f32 %v4159, %v4246
      %v4325 = vmul.f32 %v4161, %v4261
      %v4326 = vmul.f32 %v4163, %v4276
      %v4327 = vmul.f32 %v4165, %v4291
      %v4328 = vmul.f32 %v4167, %v4306
      %v4329 = vmul.f32 %v4169, %v4321
      %v4330 = vld [vmem:[#allocation2] sm:$0xff]
      %v4331 = vld [vmem:[#allocation2 + $0x8] sm:$0xff]
      %v4332 = vld [vmem:[#allocation2 + $0x10] sm:$0xff]
      %v4333 = vld [vmem:[#allocation2 + $0x18] sm:$0xff]
      %v4334 = vld [vmem:[#allocation2 + $0x20] sm:$0xff]
      %v4335 = vld [vmem:[#allocation2 + $0x28] sm:$0xff]
      %v4336 = vld [vmem:[#allocation2 + $0x30] sm:$0xff]
      %v4337 = vld [vmem:[#allocation2 + $0x38] sm:$0xff]
      %v4338 = vld [vmem:[#allocation2 + $0x40] sm:$0xff]
      %v4339 = vld [vmem:[#allocation2 + $0x48] sm:$0xff]
      %v4340 = vld [vmem:[#allocation2 + $0x50] sm:$0xff]
      %v4341 = vld [vmem:[#allocation2 + $0x58] sm:$0xff]
      %v4342 = vld [vmem:[#allocation2 + $0x60] sm:$0xff]
      %v4343 = vld [vmem:[#allocation2 + $0x68] sm:$0xff]
      %v4344 = vld [vmem:[#allocation2 + $0x70] sm:$0xff]
      %v4345 = vld [vmem:[#allocation2 + $0x78] sm:$0xff]
      %4347 = vset.pattern.permute.xlu0 0
      %4348 = vperm.xlu0 %4347, %v4322
      %v4349 = vpop.permute.xlu0 %4348
      %4352 = vset.pattern.permute.xlu0 0
      %4353 = vperm.xlu0 %4352, %v4323
      %v4354 = vpop.permute.xlu0 %4353
      %4357 = vset.pattern.permute.xlu0 0
      %4358 = vperm.xlu0 %4357, %v4324
      %v4359 = vpop.permute.xlu0 %4358
      %4362 = vset.pattern.permute.xlu0 0
      %4363 = vperm.xlu0 %4362, %v4325
      %v4364 = vpop.permute.xlu0 %4363
      %4367 = vset.pattern.permute.xlu0 0
      %4368 = vperm.xlu0 %4367, %v4326
      %v4369 = vpop.permute.xlu0 %4368
      %4372 = vset.pattern.permute.xlu0 0
      %4373 = vperm.xlu0 %4372, %v4327
      %v4374 = vpop.permute.xlu0 %4373
      %4377 = vset.pattern.permute.xlu0 0
      %4378 = vperm.xlu0 %4377, %v4328
      %v4379 = vpop.permute.xlu0 %4378
      %4382 = vset.pattern.permute.xlu0 0
      %4383 = vperm.xlu0 %4382, %v4329
      %v4384 = vpop.permute.xlu0 %4383
      %v4386 = vmul.f32 %v4349, %v4330
      %v4387 = vmul.f32 %v4349, %v4331
      %v4388 = vmul.f32 %v4354, %v4332
      %v4389 = vmul.f32 %v4354, %v4333
      %v4390 = vmul.f32 %v4359, %v4334
      %v4391 = vmul.f32 %v4359, %v4335
      %v4392 = vmul.f32 %v4364, %v4336
      %v4393 = vmul.f32 %v4364, %v4337
      %v4394 = vmul.f32 %v4369, %v4338
      %v4395 = vmul.f32 %v4369, %v4339
      %v4396 = vmul.f32 %v4374, %v4340
      %v4397 = vmul.f32 %v4374, %v4341
      %v4398 = vmul.f32 %v4379, %v4342
      %v4399 = vmul.f32 %v4379, %v4343
      %v4400 = vmul.f32 %v4384, %v4344
      %v4401 = vmul.f32 %v4384, %v4345
      %v4402 = vmul.f32 %v4179, %v4216
      %v4403 = vmul.f32 %v4181, %v4231
      %v4404 = vmul.f32 %v4183, %v4246
      %v4405 = vmul.f32 %v4185, %v4261
      %v4406 = vmul.f32 %v4187, %v4276
      %v4407 = vmul.f32 %v4189, %v4291
      %v4408 = vmul.f32 %v4191, %v4306
      %v4409 = vmul.f32 %v4193, %v4321
      %v4410 = vld [vmem:[%s3867] sm:$0xff]
      %v4411 = vld [vmem:[%s3867 + $0x8] sm:$0xff]
      %v4412 = vld [vmem:[%s3867 + $0x10] sm:$0xff]
      %v4413 = vld [vmem:[%s3867 + $0x18] sm:$0xff]
      %v4414 = vld [vmem:[%s3867 + $0x20] sm:$0xff]
      %v4415 = vld [vmem:[%s3867 + $0x28] sm:$0xff]
      %v4416 = vld [vmem:[%s3867 + $0x30] sm:$0xff]
      %v4417 = vld [vmem:[%s3867 + $0x38] sm:$0xff]
      %v4418 = vld [vmem:[%s3867 + $0x40] sm:$0xff]
      %v4419 = vld [vmem:[%s3867 + $0x48] sm:$0xff]
      %v4420 = vld [vmem:[%s3867 + $0x50] sm:$0xff]
      %v4421 = vld [vmem:[%s3867 + $0x58] sm:$0xff]
      %v4422 = vld [vmem:[%s3867 + $0x60] sm:$0xff]
      %v4423 = vld [vmem:[%s3867 + $0x68] sm:$0xff]
      %v4424 = vld [vmem:[%s3867 + $0x70] sm:$0xff]
      %v4425 = vld [vmem:[%s3867 + $0x78] sm:$0xff]
      %4427 = vset.pattern.permute.xlu0 0
      %4428 = vperm.xlu0 %4427, %v4402
      %v4429 = vpop.permute.xlu0 %4428
      %4432 = vset.pattern.permute.xlu0 0
      %4433 = vperm.xlu0 %4432, %v4403
      %v4434 = vpop.permute.xlu0 %4433
      %4437 = vset.pattern.permute.xlu0 0
      %4438 = vperm.xlu0 %4437, %v4404
      %v4439 = vpop.permute.xlu0 %4438
      %4442 = vset.pattern.permute.xlu0 0
      %4443 = vperm.xlu0 %4442, %v4405
      %v4444 = vpop.permute.xlu0 %4443
      %4447 = vset.pattern.permute.xlu0 0
      %4448 = vperm.xlu0 %4447, %v4406
      %v4449 = vpop.permute.xlu0 %4448
      %4452 = vset.pattern.permute.xlu0 0
      %4453 = vperm.xlu0 %4452, %v4407
      %v4454 = vpop.permute.xlu0 %4453
      %4457 = vset.pattern.permute.xlu0 0
      %4458 = vperm.xlu0 %4457, %v4408
      %v4459 = vpop.permute.xlu0 %4458
      %4462 = vset.pattern.permute.xlu0 0
      %4463 = vperm.xlu0 %4462, %v4409
      %v4464 = vpop.permute.xlu0 %4463
      %v4466 = vmul.f32 %v4429, %v4410
      %v4467 = vmul.f32 %v4429, %v4411
      %v4468 = vmul.f32 %v4434, %v4412
      %v4469 = vmul.f32 %v4434, %v4413
      %v4470 = vmul.f32 %v4439, %v4414
      %v4471 = vmul.f32 %v4439, %v4415
      %v4472 = vmul.f32 %v4444, %v4416
      %v4473 = vmul.f32 %v4444, %v4417
      %v4474 = vmul.f32 %v4449, %v4418
      %v4475 = vmul.f32 %v4449, %v4419
      %v4476 = vmul.f32 %v4454, %v4420
      %v4477 = vmul.f32 %v4454, %v4421
      %v4478 = vmul.f32 %v4459, %v4422
      %v4479 = vmul.f32 %v4459, %v4423
      %v4480 = vmul.f32 %v4464, %v4424
      %v4481 = vmul.f32 %v4464, %v4425
      %v4482 = vadd.f32 %v4386, %v4466
      %v4483 = vadd.f32 %v4387, %v4467
      %v4484 = vadd.f32 %v4388, %v4468
      %v4485 = vadd.f32 %v4389, %v4469
      %v4486 = vadd.f32 %v4390, %v4470
      %v4487 = vadd.f32 %v4391, %v4471
      %v4488 = vadd.f32 %v4392, %v4472
      %v4489 = vadd.f32 %v4393, %v4473
      %v4490 = vadd.f32 %v4394, %v4474
      %v4491 = vadd.f32 %v4395, %v4475
      %v4492 = vadd.f32 %v4396, %v4476
      %v4493 = vadd.f32 %v4397, %v4477
      %v4494 = vadd.f32 %v4398, %v4478
      %v4495 = vadd.f32 %v4399, %v4479
      %v4496 = vadd.f32 %v4400, %v4480
      %v4497 = vadd.f32 %v4401, %v4481
      %4498 = vst [vmem:[%s379] sm:$0xff] %v4482
      %4499 = vst [vmem:[%s379 + $0x8] sm:$0xff] %v4483
      %4500 = vst [vmem:[%s379 + $0x10] sm:$0xff] %v4484
      %4501 = vst [vmem:[%s379 + $0x18] sm:$0xff] %v4485
      %4502 = vst [vmem:[%s379 + $0x20] sm:$0xff] %v4486
      %4503 = vst [vmem:[%s379 + $0x28] sm:$0xff] %v4487
      %4504 = vst [vmem:[%s379 + $0x30] sm:$0xff] %v4488
      %4505 = vst [vmem:[%s379 + $0x38] sm:$0xff] %v4489
      %4506 = vst [vmem:[%s379 + $0x40] sm:$0xff] %v4490
      %4507 = vst [vmem:[%s379 + $0x48] sm:$0xff] %v4491
      %4508 = vst [vmem:[%s379 + $0x50] sm:$0xff] %v4492
      %4509 = vst [vmem:[%s379 + $0x58] sm:$0xff] %v4493
      %4510 = vst [vmem:[%s379 + $0x60] sm:$0xff] %v4494
      %4511 = vst [vmem:[%s379 + $0x68] sm:$0xff] %v4495
      %4512 = vst [vmem:[%s379 + $0x70] sm:$0xff] %v4496
      %4513 = vst [vmem:[%s379 + $0x78] sm:$0xff] %v4497
      %p4514 = scmp.lt.s32.totalorder %s21, 1
      %s4515 = scalar_select %p4514, %s21, 1
      %s4516 = smul.addr %s4515, 16
      %s4517 = smul.addr %s4516, 8
      %s4518 = scalar_lea.vmem %s10, %s4517
      // Predicated region
      $region61: #{skconv_pallas.1} parent=59 // pred_check
        %p4519 = pneg %p259
      $region62: #{skconv_pallas.1} parent=59 // pred_check_branch
        %4521 = sbr.rel (%p4519) target = $region64
      $region63: #{skconv_pallas.1} parent=59 // pred_region
        _
      $region64: #{skconv_pallas.1} parent=59 // pred_fallthru
        _
    $region60: #{skconv_pallas.1} parent=5 // pred_fallthru
      _
    %p4522 = scmp.le.s32.totalorder 2, %s16
    // Predicated region
    $region65: #{skconv_pallas.1} parent=5 // pred_check
      %p4523 = pneg %p4522
    $region66: #{skconv_pallas.1} parent=5 // pred_check_branch
      %4525 = sbr.rel (%p4523) target = $region68
    $region67: #{skconv_pallas.1} parent=5 // pred_region
      %s4526 = ssub.s32 %s16, 2
      // Predicated region
      $region69: #{skconv_pallas.1} parent=67 // pred_check
        %p4527 = pneg %p265
      $region70: #{skconv_pallas.1} parent=67 // pred_check_branch
        %4529 = sbr.rel (%p4527) target = $region72
      $region71: #{skconv_pallas.1} parent=67 // pred_region
        %p4530 = scmp.lt.s32.totalorder %s22, 1
        %s4531 = scalar_select %p4530, %s22, 1
        %s4532 = smul.addr %s4531, 16
        %s4533 = smul.addr %s4532, 8
        %s4534 = scalar_lea.vmem %s10, %s4533
      $region72: #{skconv_pallas.1} parent=67 // pred_fallthru
        _
    $region68: #{skconv_pallas.1} parent=5 // pred_fallthru
      _
  $region6: #{skconv_pallas.1} parent=0 // loop_footer
    %s20 = sadd.s32 1, %s16
  $region7: #{skconv_pallas.1} parent=0 // loop_footer_branch
    %15 = sbr.rel target = $region3
  $region8: #{skconv_pallas.1} parent=0 // loop_exit
    _

</llo_original>
